<compile_context>
chip_gen: v5e
topology: v5e:2x2
jax: 0.10.0
libtpu: 0.0.40
codegen_flags: <defaults>
</compile_context>

<pallas_src>
import jax
import jax.numpy as jnp
from jax.experimental import pallas as pl
from jax.experimental.pallas import tpu as pltpu


def autoenc_kernel(x_ref,
                   w1t_ref, b1_ref, w2_ref, b2_ref, w3_ref, b3_ref,
                   wd1_ref, s1_ref, t1_ref, wd2_ref, s2_ref, t2_ref,
                   wd3_ref, bd3_ref,
                   enc_ref, rec_ref):
    tb, _, n = x_ref.shape
    kp = w3_ref.shape[1]

    x = x_ref[...]                                        # (TB, 3, n) f32, points in lanes
    w1t = w1t_ref[...]                                    # (64, 3) f32

    # ---- encoder layer 1 on the VPU (contraction dim is only 3) ----
    # z1[b, f, p] = sum_c x[b, c, p] * w1[c, f] + b1_eff[f]
    z1 = (x[:, 0:1, :] * w1t[:, 0:1][None]
          + x[:, 1:2, :] * w1t[:, 1:2][None]
          + x[:, 2:3, :] * w1t[:, 2:3][None]
          + b1_ref[...][None])                            # (TB, 64, n)
    z1 = jnp.maximum(z1, 0.0)

    # ---- move to points-in-sublanes / features-in-lanes for the MXU ----
    h = jnp.transpose(z1, (0, 2, 1)).reshape(tb * n, 64)  # (TB*n, 64)
    h = h.astype(jnp.bfloat16)

    h = jnp.dot(h, w2_ref[...], preferred_element_type=jnp.float32) + b2_ref[...]
    h = jnp.maximum(h, 0.0).astype(jnp.bfloat16)          # (TB*n, 128)

    h = jnp.dot(h, w3_ref[...], preferred_element_type=jnp.float32) + b3_ref[...]  # (TB*n, KP)

    # ---- global max-pool over the points of each cloud ----
    enc = jnp.max(h.reshape(tb, n, kp), axis=1)           # (TB, KP)
    enc_ref[...] = enc

    # ---- decoder: Conv1d(kernel=1) on a length-1 input == matmul ----
    d = jnp.dot(enc.astype(jnp.bfloat16), wd1_ref[...],
                preferred_element_type=jnp.float32)       # (TB, 256)
    d = jnp.maximum(d * s1_ref[...] + t1_ref[...], 0.0)   # BN(eval) + ReLU
    d = jnp.dot(d.astype(jnp.bfloat16), wd2_ref[...],
                preferred_element_type=jnp.float32)       # (TB, 256)
    d = jnp.maximum(d * s2_ref[...] + t2_ref[...], 0.0)
    rec = jnp.dot(d.astype(jnp.bfloat16), wd3_ref[...],
                  preferred_element_type=jnp.float32) + bd3_ref[...]   # (TB, 3n)
    rec_ref[...] = rec


def _pick_tb(b, n, kp, vmem_budget_bytes=24 * 1024 * 1024):
    """Largest multiple-of-8 divisor of b that keeps the per-step working set
    in budget and (when possible) leaves >= 2 grid steps so both v7x
    TensorCores get work."""
    per_elem = (4 * 2 * 3 * n                       # input block (f32, double-buffered)
                + 4 * 2 * (3 * n + kp)              # output blocks (f32, double-buffered)
                + n * (8 * 64 + 6 * 128 + 4 * kp)   # encoder intermediates
                + 8 * 1024)                         # decoder activations, slack
    cap = max(8, vmem_budget_bytes // max(per_elem, 1))
    if b % 8 != 0:
        return b            # small / odd batch: single full-array grid step
    best = 8
    t = 8
    while t <= min(b, cap):
        if b % t == 0 and b // t >= 2:
            best = t
        t += 8
    return min(best, b)


def init_params(key, k, num_points):
    keys = jax.random.split(key, 10)

    def w(kk, shape, scale=0.1):
        return jax.random.normal(kk, shape, jnp.float32) * scale

    eps = 1e-5
    gamma = jnp.ones((1, 256), jnp.float32)
    beta = jnp.zeros((1, 256), jnp.float32)
    run_mean = jnp.zeros((1, 256), jnp.float32)
    run_var = jnp.ones((1, 256), jnp.float32)
    bn_scale = gamma / jnp.sqrt(run_var + eps)
    bn_shift = beta - run_mean * bn_scale

    return {
        # PointNet per-point MLP (5 -> 64 -> 128 -> k); weights stored [in, out]
        'w1': w(keys[0], (5, 64)),        'b1': w(keys[1], (1, 64), 0.01),
        'w2': w(keys[2], (64, 128)),      'b2': w(keys[3], (1, 128), 0.01),
        'w3': w(keys[4], (128, k)),       'b3': w(keys[5], (1, k), 0.01),
        # Decoder conv1d(kernel=1) weights, stored transposed as [in, out]
        'wd1': w(keys[6], (k, 256)),
        's1': bn_scale, 't1': bn_shift,
        'wd2': w(keys[7], (256, 256)),
        's2': bn_scale, 't2': bn_shift,
        'wd3': w(keys[8], (256, 3 * num_points)),
        'bd3': w(keys[9], (1, 3 * num_points), 0.01),
    }


def autoencoder_pn_forward(x, params, tb=None):
    """x: [b, 3, num_points] -> (encoding [b, k, 1], restoration [b, 3, num_points])"""
    b, c, n = x.shape
    assert c == 3
    k = params['w3'].shape[1]
    kp = ((k + 127) // 128) * 128          # lane-dense encoder slab width

    f32, bf16 = jnp.float32, jnp.bfloat16

    # data = cat(x, ones(b,2,n)) in the reference: fold the two constant "ones"
    # features into the first-layer bias instead of materializing the concat.
    w1_full = params['w1'].astype(f32)                                  # (5, 64)
    w1t = jnp.transpose(w1_full[:3])                                    # (64, 3)
    b1c = jnp.transpose(params['b1'].astype(f32)
                        + w1_full[3:].sum(axis=0, keepdims=True))       # (64, 1)

    w2 = params['w2'].astype(bf16)
    b2 = params['b2'].astype(f32)

    # Pad the k-dim to KP lanes with zeros; the zero rows added to wd1 cancel it.
    w3 = jnp.zeros((128, kp), bf16).at[:, :k].set(params['w3'].astype(bf16))
    b3 = jnp.zeros((1, kp), f32).at[:, :k].set(params['b3'].astype(f32))
    wd1 = jnp.zeros((kp, 256), bf16).at[:k, :].set(params['wd1'].astype(bf16))

    s1, t1 = params['s1'].astype(f32), params['t1'].astype(f32)
    wd2 = params['wd2'].astype(bf16)
    s2, t2 = params['s2'].astype(f32), params['t2'].astype(f32)
    wd3 = params['wd3'].astype(bf16)
    bd3 = params['bd3'].astype(f32)

    weights = [w1t, b1c, w2, b2, w3, b3, wd1, s1, t1, wd2, s2, t2, wd3, bd3]

    if tb is None:
        tb = _pick_tb(b, n, kp)
    assert b % tb == 0, (b, tb)

    def wspec(p):
        # Constant index maps: the same weight block is reused on every step.
        nd = p.ndim
        return pl.BlockSpec(p.shape, lambda i, _nd=nd: (0,) * _nd)

    enc_out, rec_out = pl.pallas_call(
        autoenc_kernel,
        out_shape=(jax.ShapeDtypeStruct((b, kp), jnp.float32),
                   jax.ShapeDtypeStruct((b, 3 * n), jnp.float32)),
        grid_spec=pltpu.PrefetchScalarGridSpec(
            num_scalar_prefetch=0,
            grid=(b // tb,),
            in_specs=[pl.BlockSpec((tb, 3, n), lambda i: (i, 0, 0))]
                     + [wspec(p) for p in weights],
            out_specs=(pl.BlockSpec((tb, kp), lambda i: (i, 0)),
                       pl.BlockSpec((tb, 3 * n), lambda i: (i, 0))),
        ),
        compiler_params=pltpu.CompilerParams(
            dimension_semantics=("parallel",),
            vmem_limit_bytes=48 * 1024 * 1024,
        ),
    )(x.astype(f32), *weights)

    encoding = enc_out[:, :k][..., None]          # [b, k, 1]  (matches .unsqueeze(2))
    restoration = rec_out.reshape(b, 3, n)        # [b, 3, num_points]
    return encoding, restoration


def reference_forward(x, params):
    """Pure-JAX f32 reference with the original concat/permute semantics."""
    b, _, n = x.shape
    data = jnp.concatenate([x, jnp.ones((b, 2, n), x.dtype)], axis=1)   # (b, 5, n)
    data = jnp.transpose(data, (0, 2, 1))                               # (b, n, 5)
    h = jnp.maximum(data @ params['w1'] + params['b1'], 0.0)
    h = jnp.maximum(h @ params['w2'] + params['b2'], 0.0)
    h = h @ params['w3'] + params['b3']
    enc = jnp.max(h, axis=1)                                            # (b, k)
    d = jnp.maximum((enc @ params['wd1']) * params['s1'] + params['t1'], 0.0)
    d = jnp.maximum((d @ params['wd2']) * params['s2'] + params['t2'], 0.0)
    out = d @ params['wd3'] + params['bd3']
    return enc[..., None], out.reshape(b, 3, n)


if __name__ == "__main__":
    k = 64
    num_points = 128
    batch = 16

    key = jax.random.PRNGKey(0)
    key_x, key_p = jax.random.split(key)

    x = jax.random.normal(key_x, (batch, 3, num_points), jnp.float32)
    params = init_params(key_p, k, num_points)

    encoding, restoration = jax.jit(autoencoder_pn_forward)(x, params)
    jax.block_until_ready((encoding, restoration))

    assert encoding.shape == (batch, k, 1), encoding.shape
    assert restoration.shape == (batch, 3, num_points), restoration.shape

    enc_ref, rec_ref = reference_forward(x, params)
    assert jnp.allclose(encoding, enc_ref, atol=5e-2, rtol=5e-2), \
        float(jnp.max(jnp.abs(encoding - enc_ref)))
    assert jnp.allclose(restoration, rec_ref, atol=5e-2, rtol=5e-2), \
        float(jnp.max(jnp.abs(restoration - rec_ref)))

    print("KERNEL_OK")
</pallas_src>

<mosaic_0001>
module attributes {stable_mosaic.version = 11 : i64} {
  func.func @autoenc_kernel(%arg0: i32, %arg1: memref<8x3x128xf32, #tpu.memory_space<vmem>>, %arg2: memref<64x3xf32, #tpu.memory_space<vmem>>, %arg3: memref<64x1xf32, #tpu.memory_space<vmem>>, %arg4: memref<64x128xbf16, #tpu.memory_space<vmem>>, %arg5: memref<1x128xf32, #tpu.memory_space<vmem>>, %arg6: memref<128x128xbf16, #tpu.memory_space<vmem>>, %arg7: memref<1x128xf32, #tpu.memory_space<vmem>>, %arg8: memref<128x256xbf16, #tpu.memory_space<vmem>>, %arg9: memref<1x256xf32, #tpu.memory_space<vmem>>, %arg10: memref<1x256xf32, #tpu.memory_space<vmem>>, %arg11: memref<256x256xbf16, #tpu.memory_space<vmem>>, %arg12: memref<1x256xf32, #tpu.memory_space<vmem>>, %arg13: memref<1x256xf32, #tpu.memory_space<vmem>>, %arg14: memref<256x384xbf16, #tpu.memory_space<vmem>>, %arg15: memref<1x384xf32, #tpu.memory_space<vmem>>, %arg16: memref<8x128xf32, #tpu.memory_space<vmem>>, %arg17: memref<8x384xf32, #tpu.memory_space<vmem>>) attributes {dimension_semantics = [#tpu.dimension_semantics<parallel>], iteration_bounds = array<i64: 2>, scalar_prefetch = 0 : i64, scratch_operands = 0 : i64, tpu.core_type = #tpu.core_type<tc>, window_params = [{transform_indices = @transform_0, window_bounds = array<i64: 8, 3, 128>}, {pipeline_mode = #tpu.pipeline_mode<synchronous>, transform_indices = @transform_1, window_bounds = array<i64: 64, 3>}, {pipeline_mode = #tpu.pipeline_mode<synchronous>, transform_indices = @transform_2, window_bounds = array<i64: 64, 1>}, {pipeline_mode = #tpu.pipeline_mode<synchronous>, transform_indices = @transform_3, window_bounds = array<i64: 64, 128>}, {pipeline_mode = #tpu.pipeline_mode<synchronous>, transform_indices = @transform_4, window_bounds = array<i64: 1, 128>}, {pipeline_mode = #tpu.pipeline_mode<synchronous>, transform_indices = @transform_5, window_bounds = array<i64: 128, 128>}, {pipeline_mode = #tpu.pipeline_mode<synchronous>, transform_indices = @transform_6, window_bounds = array<i64: 1, 128>}, {pipeline_mode = #tpu.pipeline_mode<synchronous>, transform_indices = @transform_7, window_bounds = array<i64: 128, 256>}, {pipeline_mode = #tpu.pipeline_mode<synchronous>, transform_indices = @transform_8, window_bounds = array<i64: 1, 256>}, {pipeline_mode = #tpu.pipeline_mode<synchronous>, transform_indices = @transform_9, window_bounds = array<i64: 1, 256>}, {pipeline_mode = #tpu.pipeline_mode<synchronous>, transform_indices = @transform_10, window_bounds = array<i64: 256, 256>}, {pipeline_mode = #tpu.pipeline_mode<synchronous>, transform_indices = @transform_11, window_bounds = array<i64: 1, 256>}, {pipeline_mode = #tpu.pipeline_mode<synchronous>, transform_indices = @transform_12, window_bounds = array<i64: 1, 256>}, {pipeline_mode = #tpu.pipeline_mode<synchronous>, transform_indices = @transform_13, window_bounds = array<i64: 256, 384>}, {pipeline_mode = #tpu.pipeline_mode<synchronous>, transform_indices = @transform_14, window_bounds = array<i64: 1, 384>}, {transform_indices = @transform_15, window_bounds = array<i64: 8, 128>}, {transform_indices = @transform_16, window_bounds = array<i64: 8, 384>}]} {
    %c0 = arith.constant 0 : index
    %c0_0 = arith.constant 0 : index
    %c0_1 = arith.constant 0 : index
    %0 = vector.load %arg1[%c0, %c0_0, %c0_1] : memref<8x3x128xf32, #tpu.memory_space<vmem>>, vector<8x3x128xf32>
    %c0_2 = arith.constant 0 : index
    %c0_3 = arith.constant 0 : index
    %1 = vector.load %arg2[%c0_2, %c0_3] : memref<64x3xf32, #tpu.memory_space<vmem>>, vector<64x3xf32>
    %2 = vector.extract_strided_slice %0 {offsets = [0, 0, 0], sizes = [8, 1, 128], strides = [1, 1, 1]} : vector<8x3x128xf32> to vector<8x1x128xf32>
    %3 = vector.extract_strided_slice %1 {offsets = [0, 0], sizes = [64, 1], strides = [1, 1]} : vector<64x3xf32> to vector<64x1xf32>
    %4 = vector.shape_cast %3 : vector<64x1xf32> to vector<1x64x1xf32>
    %5 = vector.broadcast %2 : vector<8x1x128xf32> to vector<8x64x128xf32>
    %6 = vector.broadcast %4 : vector<1x64x1xf32> to vector<8x64x128xf32>
    %7 = arith.mulf %5, %6 : vector<8x64x128xf32>
    %8 = vector.extract_strided_slice %0 {offsets = [0, 1, 0], sizes = [8, 1, 128], strides = [1, 1, 1]} : vector<8x3x128xf32> to vector<8x1x128xf32>
    %9 = vector.extract_strided_slice %1 {offsets = [0, 1], sizes = [64, 1], strides = [1, 1]} : vector<64x3xf32> to vector<64x1xf32>
    %10 = vector.shape_cast %9 : vector<64x1xf32> to vector<1x64x1xf32>
    %11 = vector.broadcast %8 : vector<8x1x128xf32> to vector<8x64x128xf32>
    %12 = vector.broadcast %10 : vector<1x64x1xf32> to vector<8x64x128xf32>
    %13 = arith.mulf %11, %12 : vector<8x64x128xf32>
    %14 = arith.addf %7, %13 : vector<8x64x128xf32>
    %15 = vector.extract_strided_slice %0 {offsets = [0, 2, 0], sizes = [8, 1, 128], strides = [1, 1, 1]} : vector<8x3x128xf32> to vector<8x1x128xf32>
    %16 = vector.extract_strided_slice %1 {offsets = [0, 2], sizes = [64, 1], strides = [1, 1]} : vector<64x3xf32> to vector<64x1xf32>
    %17 = vector.shape_cast %16 : vector<64x1xf32> to vector<1x64x1xf32>
    %18 = vector.broadcast %15 : vector<8x1x128xf32> to vector<8x64x128xf32>
    %19 = vector.broadcast %17 : vector<1x64x1xf32> to vector<8x64x128xf32>
    %20 = arith.mulf %18, %19 : vector<8x64x128xf32>
    %21 = arith.addf %14, %20 : vector<8x64x128xf32>
    %c0_4 = arith.constant 0 : index
    %c0_5 = arith.constant 0 : index
    %22 = vector.load %arg3[%c0_4, %c0_5] : memref<64x1xf32, #tpu.memory_space<vmem>>, vector<64x1xf32>
    %23 = vector.shape_cast %22 : vector<64x1xf32> to vector<1x64x1xf32>
    %24 = vector.broadcast %23 : vector<1x64x1xf32> to vector<8x64x128xf32>
    %25 = arith.addf %21, %24 : vector<8x64x128xf32>
    %cst = arith.constant 0.000000e+00 : f32
    %26 = vector.broadcast %cst : f32 to vector<8x64x128xf32>
    %27 = arith.maximumf %25, %26 : vector<8x64x128xf32>
    %28 = tpu.transpose %27, [0, 2, 1] : vector<8x64x128xf32> -> vector<8x128x64xf32>
    %29 = vector.shape_cast %28 : vector<8x128x64xf32> to vector<1024x64xf32>
    %30 = arith.truncf %29 : vector<1024x64xf32> to vector<1024x64xbf16>
    %c0_6 = arith.constant 0 : index
    %c0_7 = arith.constant 0 : index
    %31 = vector.load %arg4[%c0_6, %c0_7] : memref<64x128xbf16, #tpu.memory_space<vmem>>, vector<64x128xbf16>
    %cst_8 = arith.constant dense<0.000000e+00> : vector<1024x128xf32>
    %32 = tpu.matmul %30, %31, %cst_8 {dimension_numbers = #tpu.dot_dimension_numbers<[1], [0], [0], [1], [0, 0, 1, 1], [], []>} : vector<1024x64xbf16>, vector<64x128xbf16>, vector<1024x128xf32> -> vector<1024x128xf32>
    %c0_9 = arith.constant 0 : index
    %c0_10 = arith.constant 0 : index
    %33 = vector.load %arg5[%c0_9, %c0_10] : memref<1x128xf32, #tpu.memory_space<vmem>>, vector<1x128xf32>
    %34 = vector.broadcast %33 : vector<1x128xf32> to vector<1024x128xf32>
    %35 = arith.addf %32, %34 : vector<1024x128xf32>
    %cst_11 = arith.constant 0.000000e+00 : f32
    %36 = vector.broadcast %cst_11 : f32 to vector<1024x128xf32>
    %37 = arith.maximumf %35, %36 : vector<1024x128xf32>
    %38 = arith.truncf %37 : vector<1024x128xf32> to vector<1024x128xbf16>
    %c0_12 = arith.constant 0 : index
    %c0_13 = arith.constant 0 : index
    %39 = vector.load %arg6[%c0_12, %c0_13] : memref<128x128xbf16, #tpu.memory_space<vmem>>, vector<128x128xbf16>
    %cst_14 = arith.constant dense<0.000000e+00> : vector<1024x128xf32>
    %40 = tpu.matmul %38, %39, %cst_14 {dimension_numbers = #tpu.dot_dimension_numbers<[1], [0], [0], [1], [0, 0, 1, 1], [], []>} : vector<1024x128xbf16>, vector<128x128xbf16>, vector<1024x128xf32> -> vector<1024x128xf32>
    %c0_15 = arith.constant 0 : index
    %c0_16 = arith.constant 0 : index
    %41 = vector.load %arg7[%c0_15, %c0_16] : memref<1x128xf32, #tpu.memory_space<vmem>>, vector<1x128xf32>
    %42 = vector.broadcast %41 : vector<1x128xf32> to vector<1024x128xf32>
    %43 = arith.addf %40, %42 : vector<1024x128xf32>
    %44 = vector.shape_cast %43 : vector<1024x128xf32> to vector<8x128x128xf32>
    %cst_17 = arith.constant dense<0xFF800000> : vector<8x128xf32>
    %45 = vector.multi_reduction <maximumf>, %44, %cst_17 [1] : vector<8x128x128xf32> to vector<8x128xf32>
    %c0_18 = arith.constant 0 : index
    %c0_19 = arith.constant 0 : index
    %46 = vector.load %arg16[%c0_18, %c0_19] : memref<8x128xf32, #tpu.memory_space<vmem>>, vector<8x128xf32>
    tpu.vector_store %arg16[%c0_18, %c0_19], %45 {strides = array<i32>} : memref<8x128xf32, #tpu.memory_space<vmem>>, vector<8x128xf32>,
    %47 = arith.truncf %45 : vector<8x128xf32> to vector<8x128xbf16>
    %c0_20 = arith.constant 0 : index
    %c0_21 = arith.constant 0 : index
    %48 = vector.load %arg8[%c0_20, %c0_21] : memref<128x256xbf16, #tpu.memory_space<vmem>>, vector<128x256xbf16>
    %cst_22 = arith.constant dense<0.000000e+00> : vector<8x256xf32>
    %49 = tpu.matmul %47, %48, %cst_22 {dimension_numbers = #tpu.dot_dimension_numbers<[1], [0], [0], [1], [0, 0, 1, 1], [], []>} : vector<8x128xbf16>, vector<128x256xbf16>, vector<8x256xf32> -> vector<8x256xf32>
    %c0_23 = arith.constant 0 : index
    %c0_24 = arith.constant 0 : index
    %50 = vector.load %arg9[%c0_23, %c0_24] : memref<1x256xf32, #tpu.memory_space<vmem>>, vector<1x256xf32>
    %51 = vector.broadcast %50 : vector<1x256xf32> to vector<8x256xf32>
    %52 = arith.mulf %49, %51 : vector<8x256xf32>
    %c0_25 = arith.constant 0 : index
    %c0_26 = arith.constant 0 : index
    %53 = vector.load %arg10[%c0_25, %c0_26] : memref<1x256xf32, #tpu.memory_space<vmem>>, vector<1x256xf32>
    %54 = vector.broadcast %53 : vector<1x256xf32> to vector<8x256xf32>
    %55 = arith.addf %52, %54 : vector<8x256xf32>
    %cst_27 = arith.constant 0.000000e+00 : f32
    %56 = vector.broadcast %cst_27 : f32 to vector<8x256xf32>
    %57 = arith.maximumf %55, %56 : vector<8x256xf32>
    %58 = arith.truncf %57 : vector<8x256xf32> to vector<8x256xbf16>
    %c0_28 = arith.constant 0 : index
    %c0_29 = arith.constant 0 : index
    %59 = vector.load %arg11[%c0_28, %c0_29] : memref<256x256xbf16, #tpu.memory_space<vmem>>, vector<256x256xbf16>
    %cst_30 = arith.constant dense<0.000000e+00> : vector<8x256xf32>
    %60 = tpu.matmul %58, %59, %cst_30 {dimension_numbers = #tpu.dot_dimension_numbers<[1], [0], [0], [1], [0, 0, 1, 1], [], []>} : vector<8x256xbf16>, vector<256x256xbf16>, vector<8x256xf32> -> vector<8x256xf32>
    %c0_31 = arith.constant 0 : index
    %c0_32 = arith.constant 0 : index
    %61 = vector.load %arg12[%c0_31, %c0_32] : memref<1x256xf32, #tpu.memory_space<vmem>>, vector<1x256xf32>
    %62 = vector.broadcast %61 : vector<1x256xf32> to vector<8x256xf32>
    %63 = arith.mulf %60, %62 : vector<8x256xf32>
    %c0_33 = arith.constant 0 : index
    %c0_34 = arith.constant 0 : index
    %64 = vector.load %arg13[%c0_33, %c0_34] : memref<1x256xf32, #tpu.memory_space<vmem>>, vector<1x256xf32>
    %65 = vector.broadcast %64 : vector<1x256xf32> to vector<8x256xf32>
    %66 = arith.addf %63, %65 : vector<8x256xf32>
    %cst_35 = arith.constant 0.000000e+00 : f32
    %67 = vector.broadcast %cst_35 : f32 to vector<8x256xf32>
    %68 = arith.maximumf %66, %67 : vector<8x256xf32>
    %69 = arith.truncf %68 : vector<8x256xf32> to vector<8x256xbf16>
    %c0_36 = arith.constant 0 : index
    %c0_37 = arith.constant 0 : index
    %70 = vector.load %arg14[%c0_36, %c0_37] : memref<256x384xbf16, #tpu.memory_space<vmem>>, vector<256x384xbf16>
    %cst_38 = arith.constant dense<0.000000e+00> : vector<8x384xf32>
    %71 = tpu.matmul %69, %70, %cst_38 {dimension_numbers = #tpu.dot_dimension_numbers<[1], [0], [0], [1], [0, 0, 1, 1], [], []>} : vector<8x256xbf16>, vector<256x384xbf16>, vector<8x384xf32> -> vector<8x384xf32>
    %c0_39 = arith.constant 0 : index
    %c0_40 = arith.constant 0 : index
    %72 = vector.load %arg15[%c0_39, %c0_40] : memref<1x384xf32, #tpu.memory_space<vmem>>, vector<1x384xf32>
    %73 = vector.broadcast %72 : vector<1x384xf32> to vector<8x384xf32>
    %74 = arith.addf %71, %73 : vector<8x384xf32>
    %c0_41 = arith.constant 0 : index
    %c0_42 = arith.constant 0 : index
    %75 = vector.load %arg17[%c0_41, %c0_42] : memref<8x384xf32, #tpu.memory_space<vmem>>, vector<8x384xf32>
    tpu.vector_store %arg17[%c0_41, %c0_42], %74 {strides = array<i32>} : memref<8x384xf32, #tpu.memory_space<vmem>>, vector<8x384xf32>,
    return
  }
  func.func @transform_0(%arg0: i32) -> (i32, i32, i32) {
    %c0_i32 = arith.constant 0 : i32
    %c0_i32_0 = arith.constant 0 : i32
    %c0_i32_1 = arith.constant 0 : i32
    return %arg0, %c0_i32, %c0_i32_0 : i32, i32, i32
  }
  func.func @transform_1(%arg0: i32) -> (i32, i32) {
    %c0_i32 = arith.constant 0 : i32
    %c0_i32_0 = arith.constant 0 : i32
    %c0_i32_1 = arith.constant 0 : i32
    return %c0_i32, %c0_i32_0 : i32, i32
  }
  func.func @transform_2(%arg0: i32) -> (i32, i32) {
    %c0_i32 = arith.constant 0 : i32
    %c0_i32_0 = arith.constant 0 : i32
    %c0_i32_1 = arith.constant 0 : i32
    return %c0_i32, %c0_i32_0 : i32, i32
  }
  func.func @transform_3(%arg0: i32) -> (i32, i32) {
    %c0_i32 = arith.constant 0 : i32
    %c0_i32_0 = arith.constant 0 : i32
    %c0_i32_1 = arith.constant 0 : i32
    return %c0_i32, %c0_i32_0 : i32, i32
  }
  func.func @transform_4(%arg0: i32) -> (i32, i32) {
    %c0_i32 = arith.constant 0 : i32
    %c0_i32_0 = arith.constant 0 : i32
    %c0_i32_1 = arith.constant 0 : i32
    return %c0_i32, %c0_i32_0 : i32, i32
  }
  func.func @transform_5(%arg0: i32) -> (i32, i32) {
    %c0_i32 = arith.constant 0 : i32
    %c0_i32_0 = arith.constant 0 : i32
    %c0_i32_1 = arith.constant 0 : i32
    return %c0_i32, %c0_i32_0 : i32, i32
  }
  func.func @transform_6(%arg0: i32) -> (i32, i32) {
    %c0_i32 = arith.constant 0 : i32
    %c0_i32_0 = arith.constant 0 : i32
    %c0_i32_1 = arith.constant 0 : i32
    return %c0_i32, %c0_i32_0 : i32, i32
  }
  func.func @transform_7(%arg0: i32) -> (i32, i32) {
    %c0_i32 = arith.constant 0 : i32
    %c0_i32_0 = arith.constant 0 : i32
    %c0_i32_1 = arith.constant 0 : i32
    return %c0_i32, %c0_i32_0 : i32, i32
  }
  func.func @transform_8(%arg0: i32) -> (i32, i32) {
    %c0_i32 = arith.constant 0 : i32
    %c0_i32_0 = arith.constant 0 : i32
    %c0_i32_1 = arith.constant 0 : i32
    return %c0_i32, %c0_i32_0 : i32, i32
  }
  func.func @transform_9(%arg0: i32) -> (i32, i32) {
    %c0_i32 = arith.constant 0 : i32
    %c0_i32_0 = arith.constant 0 : i32
    %c0_i32_1 = arith.constant 0 : i32
    return %c0_i32, %c0_i32_0 : i32, i32
  }
  func.func @transform_10(%arg0: i32) -> (i32, i32) {
    %c0_i32 = arith.constant 0 : i32
    %c0_i32_0 = arith.constant 0 : i32
    %c0_i32_1 = arith.constant 0 : i32
    return %c0_i32, %c0_i32_0 : i32, i32
  }
  func.func @transform_11(%arg0: i32) -> (i32, i32) {
    %c0_i32 = arith.constant 0 : i32
    %c0_i32_0 = arith.constant 0 : i32
    %c0_i32_1 = arith.constant 0 : i32
    return %c0_i32, %c0_i32_0 : i32, i32
  }
  func.func @transform_12(%arg0: i32) -> (i32, i32) {
    %c0_i32 = arith.constant 0 : i32
    %c0_i32_0 = arith.constant 0 : i32
    %c0_i32_1 = arith.constant 0 : i32
    return %c0_i32, %c0_i32_0 : i32, i32
  }
  func.func @transform_13(%arg0: i32) -> (i32, i32) {
    %c0_i32 = arith.constant 0 : i32
    %c0_i32_0 = arith.constant 0 : i32
    %c0_i32_1 = arith.constant 0 : i32
    return %c0_i32, %c0_i32_0 : i32, i32
  }
  func.func @transform_14(%arg0: i32) -> (i32, i32) {
    %c0_i32 = arith.constant 0 : i32
    %c0_i32_0 = arith.constant 0 : i32
    %c0_i32_1 = arith.constant 0 : i32
    return %c0_i32, %c0_i32_0 : i32, i32
  }
  func.func @transform_15(%arg0: i32) -> (i32, i32) {
    %c0_i32 = arith.constant 0 : i32
    %c0_i32_0 = arith.constant 0 : i32
    return %arg0, %c0_i32 : i32, i32
  }
  func.func @transform_16(%arg0: i32) -> (i32, i32) {
    %c0_i32 = arith.constant 0 : i32
    %c0_i32_0 = arith.constant 0 : i32
    return %arg0, %c0_i32 : i32, i32
  }
}

</mosaic_0001>

<llo_original>
// kernel: autoencoder_pn_forward.1
$region0: #{autoencoder_pn_forward.1}
  #allocation0 [shape = 'u32[]', space=smem, size = 0x4, offset = 0x4, fixed_abs, tag = 'smem constant byte address 0x4 - core index']
  #allocation1 [shape = 'u32[72,128]{1,0:T(1,128)}', space=vmem, size = 0x9000, scoped, tag = 'internal scratch']
  %s0 = inlined_call_operand.vmem [shape: f32[16,3,128], index: 0, kind: input, shape index: {}]
  %s1 = inlined_call_operand.vmem [shape: f32[64,3], index: 1, kind: input, shape index: {}]
  %s2 = inlined_call_operand.vmem [shape: f32[64,1], index: 2, kind: input, shape index: {}]
  %s3 = inlined_call_operand.vmem [shape: bf16[64,128], index: 3, kind: input, shape index: {}]
  %s4 = inlined_call_operand.vmem [shape: f32[1,128], index: 4, kind: input, shape index: {}]
  %s5 = inlined_call_operand.vmem [shape: bf16[128,128], index: 5, kind: input, shape index: {}]
  %s6 = inlined_call_operand.vmem [shape: f32[1,128], index: 6, kind: input, shape index: {}]
  %s7 = inlined_call_operand.vmem [shape: bf16[128,256], index: 7, kind: input, shape index: {}]
  %s8 = inlined_call_operand.vmem [shape: f32[1,256], index: 8, kind: input, shape index: {}]
  %s9 = inlined_call_operand.vmem [shape: f32[1,256], index: 9, kind: input, shape index: {}]
  %s10 = inlined_call_operand.vmem [shape: bf16[256,256], index: 10, kind: input, shape index: {}]
  %s11 = inlined_call_operand.vmem [shape: f32[1,256], index: 11, kind: input, shape index: {}]
  %s12 = inlined_call_operand.vmem [shape: f32[1,256], index: 12, kind: input, shape index: {}]
  %s13 = inlined_call_operand.vmem [shape: bf16[256,384], index: 13, kind: input, shape index: {}]
  %s14 = inlined_call_operand.vmem [shape: f32[1,384], index: 14, kind: input, shape index: {}]
  %s15 = inlined_call_operand.hbm [shape: f32[16,128], index: 15, kind: output, shape index: {0}]
  %s16 = inlined_call_operand.vmem [shape: f32[16,384], index: 16, kind: output, shape index: {1}]
  %17 = xla_tuple %s15, %s16
  %s18 = sld [smem:[#allocation0]]
  $region101: #{autoencoder_pn_forward.1} parent=0
    _
  %s20 = ssub.s32 1, %s18
  %s21 = scalar_select 0, %s20, %s18
  $region1: #{autoencoder_pn_forward.1} parent=0
    #allocation2 [shape = 'u8[8192]{0}', space=vmem, size = 0x2000, scoped, tag = 'output window, operand 0']
    #allocation3 [shape = 's32[2]{0}', space=sflag, size = 0x8, scoped, tag = 'scoped memory for autoencoder_pn_forward.1']
    %22 = vsyncpa [#allocation3], 0
    %s23 = scalar_lea.sflag [#allocation3], 1
    %24 = vsyncpa %s23, 0
    loop: start=0, step=1, limit=4
    $region2: #{autoencoder_pn_forward.1} parent=1 // loop_pre_header
      _
    $region3: #{autoencoder_pn_forward.1} parent=1 // loop_header
      %s26 = sphi 0, %s30
      %p27 = scmp.ge.s32.totalorder %s26, 4
      %s36 = sphi 0, %s38
      %s39 = sphi 0, %s36
      %s40 = sphi 0, %s39
      %s56 = sphi 0, %s40
      %s60 = sphi 0, %s60
      %s62 = sphi 0, %s60
      %s63 = sphi 0, %s62
      %s77 = sphi 0, %s63
      %s81 = sphi 0, %s81
      %s83 = sphi 0, %s81
      %s84 = sphi 0, %s83
      %s98 = sphi 0, %s84
      %s102 = sphi 0, %s102
      %s104 = sphi 0, %s102
      %s105 = sphi 0, %s104
      %s119 = sphi 0, %s105
      %s123 = sphi 0, %s123
      %s125 = sphi 0, %s123
      %s126 = sphi 0, %s125
      %s140 = sphi 0, %s126
      %s144 = sphi 0, %s144
      %s146 = sphi 0, %s144
      %s147 = sphi 0, %s146
      %s161 = sphi 0, %s147
      %s165 = sphi 0, %s165
      %s167 = sphi 0, %s165
      %s168 = sphi 0, %s167
      %s182 = sphi 0, %s168
      %s186 = sphi 0, %s186
      %s188 = sphi 0, %s186
      %s189 = sphi 0, %s188
      %s203 = sphi 0, %s189
      %s207 = sphi 0, %s207
      %s209 = sphi 0, %s207
      %s210 = sphi 0, %s209
      %s224 = sphi 0, %s210
      %s228 = sphi 0, %s228
      %s230 = sphi 0, %s228
      %s231 = sphi 0, %s230
      %s245 = sphi 0, %s231
      %s249 = sphi 0, %s249
      %s251 = sphi 0, %s249
      %s252 = sphi 0, %s251
      %s266 = sphi 0, %s252
      %s270 = sphi 0, %s270
      %s272 = sphi 0, %s270
      %s273 = sphi 0, %s272
      %s287 = sphi 0, %s273
      %s291 = sphi 0, %s291
      %s293 = sphi 0, %s291
      %s294 = sphi 0, %s293
      %s308 = sphi 0, %s294
      %s312 = sphi 0, %s312
      %s314 = sphi 0, %s312
      %s315 = sphi 0, %s314
      %s329 = sphi 0, %s315
      %s333 = sphi 0, %s333
      %s335 = sphi 0, %s333
      %s336 = sphi 0, %s335
      %s350 = sphi 0, %s336
      %s356 = sphi 0, %s358
      %s359 = sphi 0, %s356
      %s360 = sphi 0, %s359
      %s376 = sphi 0, %s360
      %s382 = sphi 0, %s384
      %s385 = sphi 0, %s382
      %s386 = sphi 0, %s385
      %s402 = sphi 0, %s386
    $region4: #{autoencoder_pn_forward.1} parent=1 // loop_header_branch
      %29 = sbr.rel (%p27) target = $region8
    $region5: #{autoencoder_pn_forward.1} parent=1 // loop_body
      %s31 = ssub.s32 %s26, 1
      %s32 = ssub.s32 %s26, 2
      %s33 = sadd.s32 %s26, 1
      %s34 = ssub.s32 %s26, %s33
      %p35 = scmp.eq.s32.totalorder %s34, 0
      %s37 = sadd.s32 %s36, 1
      %s38 = scalar_select %p35, %s36, %s37
      %p41 = pneg %p35
      %p42 = scmp.eq.s32.totalorder %s26, 1
      %p43 = por %p41, %p42
      %p44 = scmp.ne.s32.totalorder %s36, %s39
      %p45 = scmp.eq.s32.totalorder %s26, 0
      %p46 = por %p44, %p45
      %p47 = scmp.ne.s32.totalorder %s36, %s39
      %p48 = scmp.eq.s32.totalorder %s31, 1
      %p49 = por %p47, %p48
      %p50 = scmp.ne.s32.totalorder %s39, %s40
      %p51 = scmp.eq.s32.totalorder %s31, 0
      %p52 = por %p50, %p51
      %p53 = scmp.ne.s32.totalorder %s39, %s40
      %p54 = scmp.eq.s32.totalorder %s32, 1
      %p55 = por %p53, %p54
      %p57 = scmp.ne.s32.totalorder %s40, %s56
      %p58 = scmp.eq.s32.totalorder %s32, 0
      %p59 = por %p57, %p58
      %s61 = sadd.s32 %s60, 1
      %p64 = scmp.eq.s32.totalorder %s26, 1
      %p65 = scmp.ne.s32.totalorder %s60, %s62
      %p66 = scmp.eq.s32.totalorder %s26, 0
      %p67 = por %p65, %p66
      %p68 = scmp.ne.s32.totalorder %s60, %s62
      %p69 = scmp.eq.s32.totalorder %s31, 1
      %p70 = por %p68, %p69
      %p71 = scmp.ne.s32.totalorder %s62, %s63
      %p72 = scmp.eq.s32.totalorder %s31, 0
      %p73 = por %p71, %p72
      %p74 = scmp.ne.s32.totalorder %s62, %s63
      %p75 = scmp.eq.s32.totalorder %s32, 1
      %p76 = por %p74, %p75
      %p78 = scmp.ne.s32.totalorder %s63, %s77
      %p79 = scmp.eq.s32.totalorder %s32, 0
      %p80 = por %p78, %p79
      %s82 = sadd.s32 %s81, 1
      %p85 = scmp.eq.s32.totalorder %s26, 1
      %p86 = scmp.ne.s32.totalorder %s81, %s83
      %p87 = scmp.eq.s32.totalorder %s26, 0
      %p88 = por %p86, %p87
      %p89 = scmp.ne.s32.totalorder %s81, %s83
      %p90 = scmp.eq.s32.totalorder %s31, 1
      %p91 = por %p89, %p90
      %p92 = scmp.ne.s32.totalorder %s83, %s84
      %p93 = scmp.eq.s32.totalorder %s31, 0
      %p94 = por %p92, %p93
      %p95 = scmp.ne.s32.totalorder %s83, %s84
      %p96 = scmp.eq.s32.totalorder %s32, 1
      %p97 = por %p95, %p96
      %p99 = scmp.ne.s32.totalorder %s84, %s98
      %p100 = scmp.eq.s32.totalorder %s32, 0
      %p101 = por %p99, %p100
      %s103 = sadd.s32 %s102, 1
      %p106 = scmp.eq.s32.totalorder %s26, 1
      %p107 = scmp.ne.s32.totalorder %s102, %s104
      %p108 = scmp.eq.s32.totalorder %s26, 0
      %p109 = por %p107, %p108
      %p110 = scmp.ne.s32.totalorder %s102, %s104
      %p111 = scmp.eq.s32.totalorder %s31, 1
      %p112 = por %p110, %p111
      %p113 = scmp.ne.s32.totalorder %s104, %s105
      %p114 = scmp.eq.s32.totalorder %s31, 0
      %p115 = por %p113, %p114
      %p116 = scmp.ne.s32.totalorder %s104, %s105
      %p117 = scmp.eq.s32.totalorder %s32, 1
      %p118 = por %p116, %p117
      %p120 = scmp.ne.s32.totalorder %s105, %s119
      %p121 = scmp.eq.s32.totalorder %s32, 0
      %p122 = por %p120, %p121
      %s124 = sadd.s32 %s123, 1
      %p127 = scmp.eq.s32.totalorder %s26, 1
      %p128 = scmp.ne.s32.totalorder %s123, %s125
      %p129 = scmp.eq.s32.totalorder %s26, 0
      %p130 = por %p128, %p129
      %p131 = scmp.ne.s32.totalorder %s123, %s125
      %p132 = scmp.eq.s32.totalorder %s31, 1
      %p133 = por %p131, %p132
      %p134 = scmp.ne.s32.totalorder %s125, %s126
      %p135 = scmp.eq.s32.totalorder %s31, 0
      %p136 = por %p134, %p135
      %p137 = scmp.ne.s32.totalorder %s125, %s126
      %p138 = scmp.eq.s32.totalorder %s32, 1
      %p139 = por %p137, %p138
      %p141 = scmp.ne.s32.totalorder %s126, %s140
      %p142 = scmp.eq.s32.totalorder %s32, 0
      %p143 = por %p141, %p142
      %s145 = sadd.s32 %s144, 1
      %p148 = scmp.eq.s32.totalorder %s26, 1
      %p149 = scmp.ne.s32.totalorder %s144, %s146
      %p150 = scmp.eq.s32.totalorder %s26, 0
      %p151 = por %p149, %p150
      %p152 = scmp.ne.s32.totalorder %s144, %s146
      %p153 = scmp.eq.s32.totalorder %s31, 1
      %p154 = por %p152, %p153
      %p155 = scmp.ne.s32.totalorder %s146, %s147
      %p156 = scmp.eq.s32.totalorder %s31, 0
      %p157 = por %p155, %p156
      %p158 = scmp.ne.s32.totalorder %s146, %s147
      %p159 = scmp.eq.s32.totalorder %s32, 1
      %p160 = por %p158, %p159
      %p162 = scmp.ne.s32.totalorder %s147, %s161
      %p163 = scmp.eq.s32.totalorder %s32, 0
      %p164 = por %p162, %p163
      %s166 = sadd.s32 %s165, 1
      %p169 = scmp.eq.s32.totalorder %s26, 1
      %p170 = scmp.ne.s32.totalorder %s165, %s167
      %p171 = scmp.eq.s32.totalorder %s26, 0
      %p172 = por %p170, %p171
      %p173 = scmp.ne.s32.totalorder %s165, %s167
      %p174 = scmp.eq.s32.totalorder %s31, 1
      %p175 = por %p173, %p174
      %p176 = scmp.ne.s32.totalorder %s167, %s168
      %p177 = scmp.eq.s32.totalorder %s31, 0
      %p178 = por %p176, %p177
      %p179 = scmp.ne.s32.totalorder %s167, %s168
      %p180 = scmp.eq.s32.totalorder %s32, 1
      %p181 = por %p179, %p180
      %p183 = scmp.ne.s32.totalorder %s168, %s182
      %p184 = scmp.eq.s32.totalorder %s32, 0
      %p185 = por %p183, %p184
      %s187 = sadd.s32 %s186, 1
      %p190 = scmp.eq.s32.totalorder %s26, 1
      %p191 = scmp.ne.s32.totalorder %s186, %s188
      %p192 = scmp.eq.s32.totalorder %s26, 0
      %p193 = por %p191, %p192
      %p194 = scmp.ne.s32.totalorder %s186, %s188
      %p195 = scmp.eq.s32.totalorder %s31, 1
      %p196 = por %p194, %p195
      %p197 = scmp.ne.s32.totalorder %s188, %s189
      %p198 = scmp.eq.s32.totalorder %s31, 0
      %p199 = por %p197, %p198
      %p200 = scmp.ne.s32.totalorder %s188, %s189
      %p201 = scmp.eq.s32.totalorder %s32, 1
      %p202 = por %p200, %p201
      %p204 = scmp.ne.s32.totalorder %s189, %s203
      %p205 = scmp.eq.s32.totalorder %s32, 0
      %p206 = por %p204, %p205
      %s208 = sadd.s32 %s207, 1
      %p211 = scmp.eq.s32.totalorder %s26, 1
      %p212 = scmp.ne.s32.totalorder %s207, %s209
      %p213 = scmp.eq.s32.totalorder %s26, 0
      %p214 = por %p212, %p213
      %p215 = scmp.ne.s32.totalorder %s207, %s209
      %p216 = scmp.eq.s32.totalorder %s31, 1
      %p217 = por %p215, %p216
      %p218 = scmp.ne.s32.totalorder %s209, %s210
      %p219 = scmp.eq.s32.totalorder %s31, 0
      %p220 = por %p218, %p219
      %p221 = scmp.ne.s32.totalorder %s209, %s210
      %p222 = scmp.eq.s32.totalorder %s32, 1
      %p223 = por %p221, %p222
      %p225 = scmp.ne.s32.totalorder %s210, %s224
      %p226 = scmp.eq.s32.totalorder %s32, 0
      %p227 = por %p225, %p226
      %s229 = sadd.s32 %s228, 1
      %p232 = scmp.eq.s32.totalorder %s26, 1
      %p233 = scmp.ne.s32.totalorder %s228, %s230
      %p234 = scmp.eq.s32.totalorder %s26, 0
      %p235 = por %p233, %p234
      %p236 = scmp.ne.s32.totalorder %s228, %s230
      %p237 = scmp.eq.s32.totalorder %s31, 1
      %p238 = por %p236, %p237
      %p239 = scmp.ne.s32.totalorder %s230, %s231
      %p240 = scmp.eq.s32.totalorder %s31, 0
      %p241 = por %p239, %p240
      %p242 = scmp.ne.s32.totalorder %s230, %s231
      %p243 = scmp.eq.s32.totalorder %s32, 1
      %p244 = por %p242, %p243
      %p246 = scmp.ne.s32.totalorder %s231, %s245
      %p247 = scmp.eq.s32.totalorder %s32, 0
      %p248 = por %p246, %p247
      %s250 = sadd.s32 %s249, 1
      %p253 = scmp.eq.s32.totalorder %s26, 1
      %p254 = scmp.ne.s32.totalorder %s249, %s251
      %p255 = scmp.eq.s32.totalorder %s26, 0
      %p256 = por %p254, %p255
      %p257 = scmp.ne.s32.totalorder %s249, %s251
      %p258 = scmp.eq.s32.totalorder %s31, 1
      %p259 = por %p257, %p258
      %p260 = scmp.ne.s32.totalorder %s251, %s252
      %p261 = scmp.eq.s32.totalorder %s31, 0
      %p262 = por %p260, %p261
      %p263 = scmp.ne.s32.totalorder %s251, %s252
      %p264 = scmp.eq.s32.totalorder %s32, 1
      %p265 = por %p263, %p264
      %p267 = scmp.ne.s32.totalorder %s252, %s266
      %p268 = scmp.eq.s32.totalorder %s32, 0
      %p269 = por %p267, %p268
      %s271 = sadd.s32 %s270, 1
      %p274 = scmp.eq.s32.totalorder %s26, 1
      %p275 = scmp.ne.s32.totalorder %s270, %s272
      %p276 = scmp.eq.s32.totalorder %s26, 0
      %p277 = por %p275, %p276
      %p278 = scmp.ne.s32.totalorder %s270, %s272
      %p279 = scmp.eq.s32.totalorder %s31, 1
      %p280 = por %p278, %p279
      %p281 = scmp.ne.s32.totalorder %s272, %s273
      %p282 = scmp.eq.s32.totalorder %s31, 0
      %p283 = por %p281, %p282
      %p284 = scmp.ne.s32.totalorder %s272, %s273
      %p285 = scmp.eq.s32.totalorder %s32, 1
      %p286 = por %p284, %p285
      %p288 = scmp.ne.s32.totalorder %s273, %s287
      %p289 = scmp.eq.s32.totalorder %s32, 0
      %p290 = por %p288, %p289
      %s292 = sadd.s32 %s291, 1
      %p295 = scmp.eq.s32.totalorder %s26, 1
      %p296 = scmp.ne.s32.totalorder %s291, %s293
      %p297 = scmp.eq.s32.totalorder %s26, 0
      %p298 = por %p296, %p297
      %p299 = scmp.ne.s32.totalorder %s291, %s293
      %p300 = scmp.eq.s32.totalorder %s31, 1
      %p301 = por %p299, %p300
      %p302 = scmp.ne.s32.totalorder %s293, %s294
      %p303 = scmp.eq.s32.totalorder %s31, 0
      %p304 = por %p302, %p303
      %p305 = scmp.ne.s32.totalorder %s293, %s294
      %p306 = scmp.eq.s32.totalorder %s32, 1
      %p307 = por %p305, %p306
      %p309 = scmp.ne.s32.totalorder %s294, %s308
      %p310 = scmp.eq.s32.totalorder %s32, 0
      %p311 = por %p309, %p310
      %s313 = sadd.s32 %s312, 1
      %p316 = scmp.eq.s32.totalorder %s26, 1
      %p317 = scmp.ne.s32.totalorder %s312, %s314
      %p318 = scmp.eq.s32.totalorder %s26, 0
      %p319 = por %p317, %p318
      %p320 = scmp.ne.s32.totalorder %s312, %s314
      %p321 = scmp.eq.s32.totalorder %s31, 1
      %p322 = por %p320, %p321
      %p323 = scmp.ne.s32.totalorder %s314, %s315
      %p324 = scmp.eq.s32.totalorder %s31, 0
      %p325 = por %p323, %p324
      %p326 = scmp.ne.s32.totalorder %s314, %s315
      %p327 = scmp.eq.s32.totalorder %s32, 1
      %p328 = por %p326, %p327
      %p330 = scmp.ne.s32.totalorder %s315, %s329
      %p331 = scmp.eq.s32.totalorder %s32, 0
      %p332 = por %p330, %p331
      %s334 = sadd.s32 %s333, 1
      %p337 = scmp.eq.s32.totalorder %s26, 1
      %p338 = scmp.ne.s32.totalorder %s333, %s335
      %p339 = scmp.eq.s32.totalorder %s26, 0
      %p340 = por %p338, %p339
      %p341 = scmp.ne.s32.totalorder %s333, %s335
      %p342 = scmp.eq.s32.totalorder %s31, 1
      %p343 = por %p341, %p342
      %p344 = scmp.ne.s32.totalorder %s335, %s336
      %p345 = scmp.eq.s32.totalorder %s31, 0
      %p346 = por %p344, %p345
      %p347 = scmp.ne.s32.totalorder %s335, %s336
      %p348 = scmp.eq.s32.totalorder %s32, 1
      %p349 = por %p347, %p348
      %p351 = scmp.ne.s32.totalorder %s336, %s350
      %p352 = scmp.eq.s32.totalorder %s32, 0
      %p353 = por %p351, %p352
      %s354 = ssub.s32 %s26, %s33
      %p355 = scmp.eq.s32.totalorder %s354, 0
      %s357 = sadd.s32 %s356, 1
      %s358 = scalar_select %p355, %s356, %s357
      %p361 = pneg %p355
      %p362 = scmp.eq.s32.totalorder %s26, 1
      %p363 = por %p361, %p362
      %p364 = scmp.ne.s32.totalorder %s356, %s359
      %p365 = scmp.eq.s32.totalorder %s26, 0
      %p366 = por %p364, %p365
      %p367 = scmp.ne.s32.totalorder %s356, %s359
      %p368 = scmp.eq.s32.totalorder %s31, 1
      %p369 = por %p367, %p368
      %p370 = scmp.ne.s32.totalorder %s359, %s360
      %p371 = scmp.eq.s32.totalorder %s31, 0
      %p372 = por %p370, %p371
      %p373 = scmp.ne.s32.totalorder %s359, %s360
      %p374 = scmp.eq.s32.totalorder %s32, 1
      %p375 = por %p373, %p374
      %p377 = scmp.ne.s32.totalorder %s360, %s376
      %p378 = scmp.eq.s32.totalorder %s32, 0
      %p379 = por %p377, %p378
      %s380 = ssub.s32 %s26, %s33
      %p381 = scmp.eq.s32.totalorder %s380, 0
      %s383 = sadd.s32 %s382, 1
      %s384 = scalar_select %p381, %s382, %s383
      %p387 = pneg %p381
      %p388 = scmp.eq.s32.totalorder %s26, 1
      %p389 = por %p387, %p388
      %p390 = scmp.ne.s32.totalorder %s382, %s385
      %p391 = scmp.eq.s32.totalorder %s26, 0
      %p392 = por %p390, %p391
      %p393 = scmp.ne.s32.totalorder %s382, %s385
      %p394 = scmp.eq.s32.totalorder %s31, 1
      %p395 = por %p393, %p394
      %p396 = scmp.ne.s32.totalorder %s385, %s386
      %p397 = scmp.eq.s32.totalorder %s31, 0
      %p398 = por %p396, %p397
      %p399 = scmp.ne.s32.totalorder %s385, %s386
      %p400 = scmp.eq.s32.totalorder %s32, 1
      %p401 = por %p399, %p400
      %p403 = scmp.ne.s32.totalorder %s386, %s402
      %p404 = scmp.eq.s32.totalorder %s32, 0
      %p405 = por %p403, %p404
      %p406 = scmp.le.s32.totalorder 1, %s26
      %p407 = scmp.lt.s32.totalorder %s26, 3
      %p408 = pnand %p406, %p407
      %p409 = pneg %p408
      // Predicated region
      $region9: #{autoencoder_pn_forward.1} parent=5 // pred_check
        _
      $region10: #{autoencoder_pn_forward.1} parent=5 // pred_check_branch
        %411 = sbr.rel (%p408) target = $region12
      $region11: #{autoencoder_pn_forward.1} parent=5 // pred_region
        %s412 = ssub.s32 %s26, 1
        // Predicated region
        $region13: #{autoencoder_pn_forward.1} parent=11 // pred_check
          %p413 = pneg %p73
        $region14: #{autoencoder_pn_forward.1} parent=11 // pred_check_branch
          %415 = sbr.rel (%p413) target = $region16
        $region15: #{autoencoder_pn_forward.1} parent=11 // pred_region
          _
        $region16: #{autoencoder_pn_forward.1} parent=11 // pred_fallthru
          _
        // Predicated region
        $region17: #{autoencoder_pn_forward.1} parent=11 // pred_check
          %p416 = pneg %p94
        $region18: #{autoencoder_pn_forward.1} parent=11 // pred_check_branch
          %418 = sbr.rel (%p416) target = $region20
        $region19: #{autoencoder_pn_forward.1} parent=11 // pred_region
          _
        $region20: #{autoencoder_pn_forward.1} parent=11 // pred_fallthru
          _
        // Predicated region
        $region21: #{autoencoder_pn_forward.1} parent=11 // pred_check
          %p419 = pneg %p115
        $region22: #{autoencoder_pn_forward.1} parent=11 // pred_check_branch
          %421 = sbr.rel (%p419) target = $region24
        $region23: #{autoencoder_pn_forward.1} parent=11 // pred_region
          _
        $region24: #{autoencoder_pn_forward.1} parent=11 // pred_fallthru
          _
        // Predicated region
        $region25: #{autoencoder_pn_forward.1} parent=11 // pred_check
          %p422 = pneg %p136
        $region26: #{autoencoder_pn_forward.1} parent=11 // pred_check_branch
          %424 = sbr.rel (%p422) target = $region28
        $region27: #{autoencoder_pn_forward.1} parent=11 // pred_region
          _
        $region28: #{autoencoder_pn_forward.1} parent=11 // pred_fallthru
          _
        // Predicated region
        $region29: #{autoencoder_pn_forward.1} parent=11 // pred_check
          %p425 = pneg %p157
        $region30: #{autoencoder_pn_forward.1} parent=11 // pred_check_branch
          %427 = sbr.rel (%p425) target = $region32
        $region31: #{autoencoder_pn_forward.1} parent=11 // pred_region
          _
        $region32: #{autoencoder_pn_forward.1} parent=11 // pred_fallthru
          _
        // Predicated region
        $region33: #{autoencoder_pn_forward.1} parent=11 // pred_check
          %p428 = pneg %p178
        $region34: #{autoencoder_pn_forward.1} parent=11 // pred_check_branch
          %430 = sbr.rel (%p428) target = $region36
        $region35: #{autoencoder_pn_forward.1} parent=11 // pred_region
          _
        $region36: #{autoencoder_pn_forward.1} parent=11 // pred_fallthru
          _
        // Predicated region
        $region37: #{autoencoder_pn_forward.1} parent=11 // pred_check
          %p431 = pneg %p199
        $region38: #{autoencoder_pn_forward.1} parent=11 // pred_check_branch
          %433 = sbr.rel (%p431) target = $region40
        $region39: #{autoencoder_pn_forward.1} parent=11 // pred_region
          _
        $region40: #{autoencoder_pn_forward.1} parent=11 // pred_fallthru
          _
        // Predicated region
        $region41: #{autoencoder_pn_forward.1} parent=11 // pred_check
          %p434 = pneg %p220
        $region42: #{autoencoder_pn_forward.1} parent=11 // pred_check_branch
          %436 = sbr.rel (%p434) target = $region44
        $region43: #{autoencoder_pn_forward.1} parent=11 // pred_region
          _
        $region44: #{autoencoder_pn_forward.1} parent=11 // pred_fallthru
          _
        // Predicated region
        $region45: #{autoencoder_pn_forward.1} parent=11 // pred_check
          %p437 = pneg %p241
        $region46: #{autoencoder_pn_forward.1} parent=11 // pred_check_branch
          %439 = sbr.rel (%p437) target = $region48
        $region47: #{autoencoder_pn_forward.1} parent=11 // pred_region
          _
        $region48: #{autoencoder_pn_forward.1} parent=11 // pred_fallthru
          _
        // Predicated region
        $region49: #{autoencoder_pn_forward.1} parent=11 // pred_check
          %p440 = pneg %p262
        $region50: #{autoencoder_pn_forward.1} parent=11 // pred_check_branch
          %442 = sbr.rel (%p440) target = $region52
        $region51: #{autoencoder_pn_forward.1} parent=11 // pred_region
          _
        $region52: #{autoencoder_pn_forward.1} parent=11 // pred_fallthru
          _
        // Predicated region
        $region53: #{autoencoder_pn_forward.1} parent=11 // pred_check
          %p443 = pneg %p283
        $region54: #{autoencoder_pn_forward.1} parent=11 // pred_check_branch
          %445 = sbr.rel (%p443) target = $region56
        $region55: #{autoencoder_pn_forward.1} parent=11 // pred_region
          _
        $region56: #{autoencoder_pn_forward.1} parent=11 // pred_fallthru
          _
        // Predicated region
        $region57: #{autoencoder_pn_forward.1} parent=11 // pred_check
          %p446 = pneg %p304
        $region58: #{autoencoder_pn_forward.1} parent=11 // pred_check_branch
          %448 = sbr.rel (%p446) target = $region60
        $region59: #{autoencoder_pn_forward.1} parent=11 // pred_region
          _
        $region60: #{autoencoder_pn_forward.1} parent=11 // pred_fallthru
          _
        // Predicated region
        $region61: #{autoencoder_pn_forward.1} parent=11 // pred_check
          %p449 = pneg %p325
        $region62: #{autoencoder_pn_forward.1} parent=11 // pred_check_branch
          %451 = sbr.rel (%p449) target = $region64
        $region63: #{autoencoder_pn_forward.1} parent=11 // pred_region
          _
        $region64: #{autoencoder_pn_forward.1} parent=11 // pred_fallthru
          _
        // Predicated region
        $region65: #{autoencoder_pn_forward.1} parent=11 // pred_check
          %p452 = pneg %p346
        $region66: #{autoencoder_pn_forward.1} parent=11 // pred_check_branch
          %454 = sbr.rel (%p452) target = $region68
        $region67: #{autoencoder_pn_forward.1} parent=11 // pred_region
          _
        $region68: #{autoencoder_pn_forward.1} parent=11 // pred_fallthru
          _
      $region12: #{autoencoder_pn_forward.1} parent=5 // pred_fallthru
        _
      %p455 = scmp.lt.s32.totalorder %s26, 2
      // Predicated region
      $region69: #{autoencoder_pn_forward.1} parent=5 // pred_check
        %p456 = pneg %p455
      $region70: #{autoencoder_pn_forward.1} parent=5 // pred_check_branch
        %458 = sbr.rel (%p456) target = $region72
      $region71: #{autoencoder_pn_forward.1} parent=5 // pred_region
        // Predicated region
        $region73: #{autoencoder_pn_forward.1} parent=71 // pred_check
          %p459 = pneg %p46
        $region74: #{autoencoder_pn_forward.1} parent=71 // pred_check_branch
          %461 = sbr.rel (%p459) target = $region76
        $region75: #{autoencoder_pn_forward.1} parent=71 // pred_region
          %s462 = smul.u32 8, %s26
          %p463 = scmp.lt.s32.totalorder %s462, 15
          %s464 = scalar_select %p463, %s462, 15
          %s465 = smul.addr %s464, 4
          %s466 = scalar_lea.vmem %s0, %s465
          %s467 = smul.u32 8, %s26
        $region76: #{autoencoder_pn_forward.1} parent=71 // pred_fallthru
          _
      $region72: #{autoencoder_pn_forward.1} parent=5 // pred_fallthru
        _
      %p468 = scmp.le.s32.totalorder 1, %s26
      %p469 = scmp.lt.s32.totalorder %s26, 3
      %p470 = pnand %p468, %p469
      %p471 = pneg %p470
      // Predicated region
      $region77: #{autoencoder_pn_forward.1} parent=5 // pred_check
        _
      $region78: #{autoencoder_pn_forward.1} parent=5 // pred_check_branch
        %473 = sbr.rel (%p470) target = $region80
      $region79: #{autoencoder_pn_forward.1} parent=5 // pred_region
        %s474 = ssub.s32 %s26, 1
        %s475 = smul.u32 8, %s31
        %p476 = scmp.lt.s32.totalorder %s475, 15
        %s477 = scalar_select %p476, %s475, 15
        %s478 = smul.addr %s477, 4
        %s479 = scalar_lea.vmem %s0, %s478
        %p480 = pneg %p52
        %p481 = pneg %p49
        %p482 = pneg %p73
        %p483 = pneg %p70
        %p484 = pneg %p94
        %p485 = pneg %p91
        %p486 = pneg %p115
        %p487 = pneg %p112
        %p488 = pneg %p136
        %p489 = pneg %p133
        %p490 = pneg %p157
        %p491 = pneg %p154
        %p492 = pneg %p178
        %p493 = pneg %p175
        %p494 = pneg %p199
        %p495 = pneg %p196
        %p496 = pneg %p220
        %p497 = pneg %p217
        %p498 = pneg %p241
        %p499 = pneg %p238
        %p500 = pneg %p262
        %p501 = pneg %p259
        %p502 = pneg %p283
        %p503 = pneg %p280
        %p504 = pneg %p304
        %p505 = pneg %p301
        %p506 = pneg %p325
        %p507 = pneg %p322
        %p508 = pneg %p346
        %p509 = pneg %p343
        %p510 = pneg %p372
        %p511 = pneg %p369
        %s512 = sand.u32 %s359, 1
        %s513 = scalar_lea.sflag [#allocation3], %s512
        %s514 = sand.u32 %s359, 1
        %s515 = smul.addr %s514, 8
        %s516 = scalar_lea.vmem [#allocation2], %s515
        %p517 = pneg %p398
        %p518 = pneg %p395
        %p519 = scmp.lt.s32.totalorder %s31, 1
        %s520 = scalar_select %p519, %s31, 1
        %s521 = smul.addr %s520, 3
        %s522 = smul.addr %s521, 8
        %s523 = scalar_lea.vmem %s16, %s522
        %s524 = smul.u32 8, %s31
        %p525 = scmp.lt.s32.totalorder %s524, 15
        %s526 = scalar_select %p525, %s524, 15
        %s527 = smul.addr %s526, 4
        %s528 = scalar_lea.vmem %s0, %s527
        %s529 = smul.u32 8, %s31
        %p530 = scmp.lt.s32.totalorder %s31, 1
        %s531 = scalar_select %p530, %s31, 1
        %s532 = smul.addr %s531, 3
        %s533 = smul.addr %s532, 8
        %s534 = scalar_lea.vmem %s16, %s533
        %v536 = vld [vmem:[%s528] sm:$0x7]
        %v537 = vld [vmem:[%s528 + $0x4] sm:$0x7]
        %v538 = vld [vmem:[%s528 + $0x8] sm:$0x7]
        %v539 = vld [vmem:[%s528 + $0xc] sm:$0x7]
        %v540 = vld [vmem:[%s528 + $0x10] sm:$0x7]
        %v541 = vld [vmem:[%s528 + $0x14] sm:$0x7]
        %v542 = vld [vmem:[%s528 + $0x18] sm:$0x7]
        %v543 = vld [vmem:[%s528 + $0x1c] sm:$0x7]
        %v544 = vld [vmem:[%s1] sm:$0xff]
        %v545 = vld [vmem:[%s1 + $0x8] sm:$0xff]
        %v546 = vld [vmem:[%s1 + $0x10] sm:$0xff]
        %v547 = vld [vmem:[%s1 + $0x18] sm:$0xff]
        %v548 = vld [vmem:[%s1 + $0x20] sm:$0xff]
        %v549 = vld [vmem:[%s1 + $0x28] sm:$0xff]
        %v550 = vld [vmem:[%s1 + $0x30] sm:$0xff]
        %v551 = vld [vmem:[%s1 + $0x38] sm:$0xff]
        %v552 = vperm.slane %v536, 0
        %v553 = vperm.slane %v537, 0
        %v554 = vperm.slane %v538, 0
        %v555 = vperm.slane %v539, 0
        %v556 = vperm.slane %v540, 0
        %v557 = vperm.slane %v541, 0
        %v558 = vperm.slane %v542, 0
        %v559 = vperm.slane %v543, 0
        %561 = vset.pattern.permute.xlu0 0
        %562 = vperm.xlu0 %561, %v544
        %v563 = vpop.permute.xlu0 %562
        %566 = vset.pattern.permute.xlu0 0
        %567 = vperm.xlu0 %566, %v545
        %v568 = vpop.permute.xlu0 %567
        %571 = vset.pattern.permute.xlu0 0
        %572 = vperm.xlu0 %571, %v546
        %v573 = vpop.permute.xlu0 %572
        %576 = vset.pattern.permute.xlu0 0
        %577 = vperm.xlu0 %576, %v547
        %v578 = vpop.permute.xlu0 %577
        %581 = vset.pattern.permute.xlu0 0
        %582 = vperm.xlu0 %581, %v548
        %v583 = vpop.permute.xlu0 %582
        %586 = vset.pattern.permute.xlu0 0
        %587 = vperm.xlu0 %586, %v549
        %v588 = vpop.permute.xlu0 %587
        %591 = vset.pattern.permute.xlu0 0
        %592 = vperm.xlu0 %591, %v550
        %v593 = vpop.permute.xlu0 %592
        %596 = vset.pattern.permute.xlu0 0
        %597 = vperm.xlu0 %596, %v551
        %v598 = vpop.permute.xlu0 %597
        %v600 = vmul.f32 %v552, %v563
        %v601 = vmul.f32 %v552, %v568
        %v602 = vmul.f32 %v552, %v573
        %v603 = vmul.f32 %v552, %v578
        %v604 = vmul.f32 %v552, %v583
        %v605 = vmul.f32 %v552, %v588
        %v606 = vmul.f32 %v552, %v593
        %v607 = vmul.f32 %v552, %v598
        %v608 = vmul.f32 %v553, %v563
        %v609 = vmul.f32 %v553, %v568
        %v610 = vmul.f32 %v553, %v573
        %v611 = vmul.f32 %v553, %v578
        %v612 = vmul.f32 %v553, %v583
        %v613 = vmul.f32 %v553, %v588
        %v614 = vmul.f32 %v553, %v593
        %v615 = vmul.f32 %v553, %v598
        %v616 = vmul.f32 %v554, %v563
        %v617 = vmul.f32 %v554, %v568
        %v618 = vmul.f32 %v554, %v573
        %v619 = vmul.f32 %v554, %v578
        %v620 = vmul.f32 %v554, %v583
        %v621 = vmul.f32 %v554, %v588
        %v622 = vmul.f32 %v554, %v593
        %v623 = vmul.f32 %v554, %v598
        %v624 = vmul.f32 %v555, %v563
        %v625 = vmul.f32 %v555, %v568
        %v626 = vmul.f32 %v555, %v573
        %v627 = vmul.f32 %v555, %v578
        %v628 = vmul.f32 %v555, %v583
        %v629 = vmul.f32 %v555, %v588
        %v630 = vmul.f32 %v555, %v593
        %v631 = vmul.f32 %v555, %v598
        %v632 = vmul.f32 %v556, %v563
        %v633 = vmul.f32 %v556, %v568
        %v634 = vmul.f32 %v556, %v573
        %v635 = vmul.f32 %v556, %v578
        %v636 = vmul.f32 %v556, %v583
        %v637 = vmul.f32 %v556, %v588
        %v638 = vmul.f32 %v556, %v593
        %v639 = vmul.f32 %v556, %v598
        %v640 = vmul.f32 %v557, %v563
        %v641 = vmul.f32 %v557, %v568
        %v642 = vmul.f32 %v557, %v573
        %v643 = vmul.f32 %v557, %v578
        %v644 = vmul.f32 %v557, %v583
        %v645 = vmul.f32 %v557, %v588
        %v646 = vmul.f32 %v557, %v593
        %v647 = vmul.f32 %v557, %v598
        %v648 = vmul.f32 %v558, %v563
        %v649 = vmul.f32 %v558, %v568
        %v650 = vmul.f32 %v558, %v573
        %v651 = vmul.f32 %v558, %v578
        %v652 = vmul.f32 %v558, %v583
        %v653 = vmul.f32 %v558, %v588
        %v654 = vmul.f32 %v558, %v593
        %v655 = vmul.f32 %v558, %v598
        %v656 = vmul.f32 %v559, %v563
        %v657 = vmul.f32 %v559, %v568
        %v658 = vmul.f32 %v559, %v573
        %v659 = vmul.f32 %v559, %v578
        %v660 = vmul.f32 %v559, %v583
        %v661 = vmul.f32 %v559, %v588
        %v662 = vmul.f32 %v559, %v593
        %v663 = vmul.f32 %v559, %v598
        %v664 = vperm.slane %v536, 1
        %v665 = vperm.slane %v537, 1
        %v666 = vperm.slane %v538, 1
        %v667 = vperm.slane %v539, 1
        %v668 = vperm.slane %v540, 1
        %v669 = vperm.slane %v541, 1
        %v670 = vperm.slane %v542, 1
        %v671 = vperm.slane %v543, 1
        %672 = vset.pattern.permute.xlu0 1
        %673 = vperm.xlu0 %672, %v544
        %v674 = vpop.permute.xlu0 %673
        %676 = vset.pattern.permute.xlu0 1
        %677 = vperm.xlu0 %676, %v545
        %v678 = vpop.permute.xlu0 %677
        %680 = vset.pattern.permute.xlu0 1
        %681 = vperm.xlu0 %680, %v546
        %v682 = vpop.permute.xlu0 %681
        %684 = vset.pattern.permute.xlu0 1
        %685 = vperm.xlu0 %684, %v547
        %v686 = vpop.permute.xlu0 %685
        %688 = vset.pattern.permute.xlu0 1
        %689 = vperm.xlu0 %688, %v548
        %v690 = vpop.permute.xlu0 %689
        %692 = vset.pattern.permute.xlu0 1
        %693 = vperm.xlu0 %692, %v549
        %v694 = vpop.permute.xlu0 %693
        %696 = vset.pattern.permute.xlu0 1
        %697 = vperm.xlu0 %696, %v550
        %v698 = vpop.permute.xlu0 %697
        %700 = vset.pattern.permute.xlu0 1
        %701 = vperm.xlu0 %700, %v551
        %v702 = vpop.permute.xlu0 %701
        %v704 = vmul.f32 %v664, %v674
        %v705 = vmul.f32 %v664, %v678
        %v706 = vmul.f32 %v664, %v682
        %v707 = vmul.f32 %v664, %v686
        %v708 = vmul.f32 %v664, %v690
        %v709 = vmul.f32 %v664, %v694
        %v710 = vmul.f32 %v664, %v698
        %v711 = vmul.f32 %v664, %v702
        %v712 = vmul.f32 %v665, %v674
        %v713 = vmul.f32 %v665, %v678
        %v714 = vmul.f32 %v665, %v682
        %v715 = vmul.f32 %v665, %v686
        %v716 = vmul.f32 %v665, %v690
        %v717 = vmul.f32 %v665, %v694
        %v718 = vmul.f32 %v665, %v698
        %v719 = vmul.f32 %v665, %v702
        %v720 = vmul.f32 %v666, %v674
        %v721 = vmul.f32 %v666, %v678
        %v722 = vmul.f32 %v666, %v682
        %v723 = vmul.f32 %v666, %v686
        %v724 = vmul.f32 %v666, %v690
        %v725 = vmul.f32 %v666, %v694
        %v726 = vmul.f32 %v666, %v698
        %v727 = vmul.f32 %v666, %v702
        %v728 = vmul.f32 %v667, %v674
        %v729 = vmul.f32 %v667, %v678
        %v730 = vmul.f32 %v667, %v682
        %v731 = vmul.f32 %v667, %v686
        %v732 = vmul.f32 %v667, %v690
        %v733 = vmul.f32 %v667, %v694
        %v734 = vmul.f32 %v667, %v698
        %v735 = vmul.f32 %v667, %v702
        %v736 = vmul.f32 %v668, %v674
        %v737 = vmul.f32 %v668, %v678
        %v738 = vmul.f32 %v668, %v682
        %v739 = vmul.f32 %v668, %v686
        %v740 = vmul.f32 %v668, %v690
        %v741 = vmul.f32 %v668, %v694
        %v742 = vmul.f32 %v668, %v698
        %v743 = vmul.f32 %v668, %v702
        %v744 = vmul.f32 %v669, %v674
        %v745 = vmul.f32 %v669, %v678
        %v746 = vmul.f32 %v669, %v682
        %v747 = vmul.f32 %v669, %v686
        %v748 = vmul.f32 %v669, %v690
        %v749 = vmul.f32 %v669, %v694
        %v750 = vmul.f32 %v669, %v698
        %v751 = vmul.f32 %v669, %v702
        %v752 = vmul.f32 %v670, %v674
        %v753 = vmul.f32 %v670, %v678
        %v754 = vmul.f32 %v670, %v682
        %v755 = vmul.f32 %v670, %v686
        %v756 = vmul.f32 %v670, %v690
        %v757 = vmul.f32 %v670, %v694
        %v758 = vmul.f32 %v670, %v698
        %v759 = vmul.f32 %v670, %v702
        %v760 = vmul.f32 %v671, %v674
        %v761 = vmul.f32 %v671, %v678
        %v762 = vmul.f32 %v671, %v682
        %v763 = vmul.f32 %v671, %v686
        %v764 = vmul.f32 %v671, %v690
        %v765 = vmul.f32 %v671, %v694
        %v766 = vmul.f32 %v671, %v698
        %v767 = vmul.f32 %v671, %v702
        %v768 = vadd.f32 %v600, %v704
        %v769 = vadd.f32 %v601, %v705
        %v770 = vadd.f32 %v602, %v706
        %v771 = vadd.f32 %v603, %v707
        %v772 = vadd.f32 %v604, %v708
        %v773 = vadd.f32 %v605, %v709
        %v774 = vadd.f32 %v606, %v710
        %v775 = vadd.f32 %v607, %v711
        %v776 = vadd.f32 %v608, %v712
        %v777 = vadd.f32 %v609, %v713
        %v778 = vadd.f32 %v610, %v714
        %v779 = vadd.f32 %v611, %v715
        %v780 = vadd.f32 %v612, %v716
        %v781 = vadd.f32 %v613, %v717
        %v782 = vadd.f32 %v614, %v718
        %v783 = vadd.f32 %v615, %v719
        %v784 = vadd.f32 %v616, %v720
        %v785 = vadd.f32 %v617, %v721
        %v786 = vadd.f32 %v618, %v722
        %v787 = vadd.f32 %v619, %v723
        %v788 = vadd.f32 %v620, %v724
        %v789 = vadd.f32 %v621, %v725
        %v790 = vadd.f32 %v622, %v726
        %v791 = vadd.f32 %v623, %v727
        %v792 = vadd.f32 %v624, %v728
        %v793 = vadd.f32 %v625, %v729
        %v794 = vadd.f32 %v626, %v730
        %v795 = vadd.f32 %v627, %v731
        %v796 = vadd.f32 %v628, %v732
        %v797 = vadd.f32 %v629, %v733
        %v798 = vadd.f32 %v630, %v734
        %v799 = vadd.f32 %v631, %v735
        %v800 = vadd.f32 %v632, %v736
        %v801 = vadd.f32 %v633, %v737
        %v802 = vadd.f32 %v634, %v738
        %v803 = vadd.f32 %v635, %v739
        %v804 = vadd.f32 %v636, %v740
        %v805 = vadd.f32 %v637, %v741
        %v806 = vadd.f32 %v638, %v742
        %v807 = vadd.f32 %v639, %v743
        %v808 = vadd.f32 %v640, %v744
        %v809 = vadd.f32 %v641, %v745
        %v810 = vadd.f32 %v642, %v746
        %v811 = vadd.f32 %v643, %v747
        %v812 = vadd.f32 %v644, %v748
        %v813 = vadd.f32 %v645, %v749
        %v814 = vadd.f32 %v646, %v750
        %v815 = vadd.f32 %v647, %v751
        %v816 = vadd.f32 %v648, %v752
        %v817 = vadd.f32 %v649, %v753
        %v818 = vadd.f32 %v650, %v754
        %v819 = vadd.f32 %v651, %v755
        %v820 = vadd.f32 %v652, %v756
        %v821 = vadd.f32 %v653, %v757
        %v822 = vadd.f32 %v654, %v758
        %v823 = vadd.f32 %v655, %v759
        %v824 = vadd.f32 %v656, %v760
        %v825 = vadd.f32 %v657, %v761
        %v826 = vadd.f32 %v658, %v762
        %v827 = vadd.f32 %v659, %v763
        %v828 = vadd.f32 %v660, %v764
        %v829 = vadd.f32 %v661, %v765
        %v830 = vadd.f32 %v662, %v766
        %v831 = vadd.f32 %v663, %v767
        %v832 = vperm.slane %v536, 2
        %v833 = vperm.slane %v537, 2
        %v834 = vperm.slane %v538, 2
        %v835 = vperm.slane %v539, 2
        %v836 = vperm.slane %v540, 2
        %v837 = vperm.slane %v541, 2
        %v838 = vperm.slane %v542, 2
        %v839 = vperm.slane %v543, 2
        %840 = vset.pattern.permute.xlu0 2
        %841 = vperm.xlu0 %840, %v544
        %v842 = vpop.permute.xlu0 %841
        %844 = vset.pattern.permute.xlu0 2
        %845 = vperm.xlu0 %844, %v545
        %v846 = vpop.permute.xlu0 %845
        %848 = vset.pattern.permute.xlu0 2
        %849 = vperm.xlu0 %848, %v546
        %v850 = vpop.permute.xlu0 %849
        %852 = vset.pattern.permute.xlu0 2
        %853 = vperm.xlu0 %852, %v547
        %v854 = vpop.permute.xlu0 %853
        %856 = vset.pattern.permute.xlu0 2
        %857 = vperm.xlu0 %856, %v548
        %v858 = vpop.permute.xlu0 %857
        %860 = vset.pattern.permute.xlu0 2
        %861 = vperm.xlu0 %860, %v549
        %v862 = vpop.permute.xlu0 %861
        %864 = vset.pattern.permute.xlu0 2
        %865 = vperm.xlu0 %864, %v550
        %v866 = vpop.permute.xlu0 %865
        %868 = vset.pattern.permute.xlu0 2
        %869 = vperm.xlu0 %868, %v551
        %v870 = vpop.permute.xlu0 %869
        %v872 = vmul.f32 %v832, %v842
        %v873 = vmul.f32 %v832, %v846
        %v874 = vmul.f32 %v832, %v850
        %v875 = vmul.f32 %v832, %v854
        %v876 = vmul.f32 %v832, %v858
        %v877 = vmul.f32 %v832, %v862
        %v878 = vmul.f32 %v832, %v866
        %v879 = vmul.f32 %v832, %v870
        %v880 = vmul.f32 %v833, %v842
        %v881 = vmul.f32 %v833, %v846
        %v882 = vmul.f32 %v833, %v850
        %v883 = vmul.f32 %v833, %v854
        %v884 = vmul.f32 %v833, %v858
        %v885 = vmul.f32 %v833, %v862
        %v886 = vmul.f32 %v833, %v866
        %v887 = vmul.f32 %v833, %v870
        %v888 = vmul.f32 %v834, %v842
        %v889 = vmul.f32 %v834, %v846
        %v890 = vmul.f32 %v834, %v850
        %v891 = vmul.f32 %v834, %v854
        %v892 = vmul.f32 %v834, %v858
        %v893 = vmul.f32 %v834, %v862
        %v894 = vmul.f32 %v834, %v866
        %v895 = vmul.f32 %v834, %v870
        %v896 = vmul.f32 %v835, %v842
        %v897 = vmul.f32 %v835, %v846
        %v898 = vmul.f32 %v835, %v850
        %v899 = vmul.f32 %v835, %v854
        %v900 = vmul.f32 %v835, %v858
        %v901 = vmul.f32 %v835, %v862
        %v902 = vmul.f32 %v835, %v866
        %v903 = vmul.f32 %v835, %v870
        %v904 = vmul.f32 %v836, %v842
        %v905 = vmul.f32 %v836, %v846
        %v906 = vmul.f32 %v836, %v850
        %v907 = vmul.f32 %v836, %v854
        %v908 = vmul.f32 %v836, %v858
        %v909 = vmul.f32 %v836, %v862
        %v910 = vmul.f32 %v836, %v866
        %v911 = vmul.f32 %v836, %v870
        %v912 = vmul.f32 %v837, %v842
        %v913 = vmul.f32 %v837, %v846
        %v914 = vmul.f32 %v837, %v850
        %v915 = vmul.f32 %v837, %v854
        %v916 = vmul.f32 %v837, %v858
        %v917 = vmul.f32 %v837, %v862
        %v918 = vmul.f32 %v837, %v866
        %v919 = vmul.f32 %v837, %v870
        %v920 = vmul.f32 %v838, %v842
        %v921 = vmul.f32 %v838, %v846
        %v922 = vmul.f32 %v838, %v850
        %v923 = vmul.f32 %v838, %v854
        %v924 = vmul.f32 %v838, %v858
        %v925 = vmul.f32 %v838, %v862
        %v926 = vmul.f32 %v838, %v866
        %v927 = vmul.f32 %v838, %v870
        %v928 = vmul.f32 %v839, %v842
        %v929 = vmul.f32 %v839, %v846
        %v930 = vmul.f32 %v839, %v850
        %v931 = vmul.f32 %v839, %v854
        %v932 = vmul.f32 %v839, %v858
        %v933 = vmul.f32 %v839, %v862
        %v934 = vmul.f32 %v839, %v866
        %v935 = vmul.f32 %v839, %v870
        %v936 = vadd.f32 %v768, %v872
        %v937 = vadd.f32 %v769, %v873
        %v938 = vadd.f32 %v770, %v874
        %v939 = vadd.f32 %v771, %v875
        %v940 = vadd.f32 %v772, %v876
        %v941 = vadd.f32 %v773, %v877
        %v942 = vadd.f32 %v774, %v878
        %v943 = vadd.f32 %v775, %v879
        %v944 = vadd.f32 %v776, %v880
        %v945 = vadd.f32 %v777, %v881
        %v946 = vadd.f32 %v778, %v882
        %v947 = vadd.f32 %v779, %v883
        %v948 = vadd.f32 %v780, %v884
        %v949 = vadd.f32 %v781, %v885
        %v950 = vadd.f32 %v782, %v886
        %v951 = vadd.f32 %v783, %v887
        %v952 = vadd.f32 %v784, %v888
        %v953 = vadd.f32 %v785, %v889
        %v954 = vadd.f32 %v786, %v890
        %v955 = vadd.f32 %v787, %v891
        %v956 = vadd.f32 %v788, %v892
        %v957 = vadd.f32 %v789, %v893
        %v958 = vadd.f32 %v790, %v894
        %v959 = vadd.f32 %v791, %v895
        %v960 = vadd.f32 %v792, %v896
        %v961 = vadd.f32 %v793, %v897
        %v962 = vadd.f32 %v794, %v898
        %v963 = vadd.f32 %v795, %v899
        %v964 = vadd.f32 %v796, %v900
        %v965 = vadd.f32 %v797, %v901
        %v966 = vadd.f32 %v798, %v902
        %v967 = vadd.f32 %v799, %v903
        %v968 = vadd.f32 %v800, %v904
        %v969 = vadd.f32 %v801, %v905
        %v970 = vadd.f32 %v802, %v906
        %v971 = vadd.f32 %v803, %v907
        %v972 = vadd.f32 %v804, %v908
        %v973 = vadd.f32 %v805, %v909
        %v974 = vadd.f32 %v806, %v910
        %v975 = vadd.f32 %v807, %v911
        %v976 = vadd.f32 %v808, %v912
        %v977 = vadd.f32 %v809, %v913
        %v978 = vadd.f32 %v810, %v914
        %v979 = vadd.f32 %v811, %v915
        %v980 = vadd.f32 %v812, %v916
        %v981 = vadd.f32 %v813, %v917
        %v982 = vadd.f32 %v814, %v918
        %v983 = vadd.f32 %v815, %v919
        %v984 = vadd.f32 %v816, %v920
        %v985 = vadd.f32 %v817, %v921
        %v986 = vadd.f32 %v818, %v922
        %v987 = vadd.f32 %v819, %v923
        %v988 = vadd.f32 %v820, %v924
        %v989 = vadd.f32 %v821, %v925
        %v990 = vadd.f32 %v822, %v926
        %v991 = vadd.f32 %v823, %v927
        %v992 = vadd.f32 %v824, %v928
        %v993 = vadd.f32 %v825, %v929
        %v994 = vadd.f32 %v826, %v930
        %v995 = vadd.f32 %v827, %v931
        %v996 = vadd.f32 %v828, %v932
        %v997 = vadd.f32 %v829, %v933
        %v998 = vadd.f32 %v830, %v934
        %v999 = vadd.f32 %v831, %v935
        %v1000 = vld [vmem:[%s2] sm:$0xff]
        %v1001 = vld [vmem:[%s2 + $0x8] sm:$0xff]
        %v1002 = vld [vmem:[%s2 + $0x10] sm:$0xff]
        %v1003 = vld [vmem:[%s2 + $0x18] sm:$0xff]
        %v1004 = vld [vmem:[%s2 + $0x20] sm:$0xff]
        %v1005 = vld [vmem:[%s2 + $0x28] sm:$0xff]
        %v1006 = vld [vmem:[%s2 + $0x30] sm:$0xff]
        %v1007 = vld [vmem:[%s2 + $0x38] sm:$0xff]
        %1009 = vset.pattern.permute.xlu0 0
        %1010 = vperm.xlu0 %1009, %v1000
        %v1011 = vpop.permute.xlu0 %1010
        %1014 = vset.pattern.permute.xlu0 0
        %1015 = vperm.xlu0 %1014, %v1001
        %v1016 = vpop.permute.xlu0 %1015
        %1019 = vset.pattern.permute.xlu0 0
        %1020 = vperm.xlu0 %1019, %v1002
        %v1021 = vpop.permute.xlu0 %1020
        %1024 = vset.pattern.permute.xlu0 0
        %1025 = vperm.xlu0 %1024, %v1003
        %v1026 = vpop.permute.xlu0 %1025
        %1029 = vset.pattern.permute.xlu0 0
        %1030 = vperm.xlu0 %1029, %v1004
        %v1031 = vpop.permute.xlu0 %1030
        %1034 = vset.pattern.permute.xlu0 0
        %1035 = vperm.xlu0 %1034, %v1005
        %v1036 = vpop.permute.xlu0 %1035
        %1039 = vset.pattern.permute.xlu0 0
        %1040 = vperm.xlu0 %1039, %v1006
        %v1041 = vpop.permute.xlu0 %1040
        %1044 = vset.pattern.permute.xlu0 0
        %1045 = vperm.xlu0 %1044, %v1007
        %v1046 = vpop.permute.xlu0 %1045
        %v1048 = vadd.f32 %v936, %v1011
        %v1049 = vadd.f32 %v937, %v1016
        %v1050 = vadd.f32 %v938, %v1021
        %v1051 = vadd.f32 %v939, %v1026
        %v1052 = vadd.f32 %v940, %v1031
        %v1053 = vadd.f32 %v941, %v1036
        %v1054 = vadd.f32 %v942, %v1041
        %v1055 = vadd.f32 %v943, %v1046
        %v1056 = vadd.f32 %v944, %v1011
        %v1057 = vadd.f32 %v945, %v1016
        %v1058 = vadd.f32 %v946, %v1021
        %v1059 = vadd.f32 %v947, %v1026
        %v1060 = vadd.f32 %v948, %v1031
        %v1061 = vadd.f32 %v949, %v1036
        %v1062 = vadd.f32 %v950, %v1041
        %v1063 = vadd.f32 %v951, %v1046
        %v1064 = vadd.f32 %v952, %v1011
        %v1065 = vadd.f32 %v953, %v1016
        %v1066 = vadd.f32 %v954, %v1021
        %v1067 = vadd.f32 %v955, %v1026
        %v1068 = vadd.f32 %v956, %v1031
        %v1069 = vadd.f32 %v957, %v1036
        %v1070 = vadd.f32 %v958, %v1041
        %v1071 = vadd.f32 %v959, %v1046
        %v1072 = vadd.f32 %v960, %v1011
        %v1073 = vadd.f32 %v961, %v1016
        %v1074 = vadd.f32 %v962, %v1021
        %v1075 = vadd.f32 %v963, %v1026
        %v1076 = vadd.f32 %v964, %v1031
        %v1077 = vadd.f32 %v965, %v1036
        %v1078 = vadd.f32 %v966, %v1041
        %v1079 = vadd.f32 %v967, %v1046
        %v1080 = vadd.f32 %v968, %v1011
        %v1081 = vadd.f32 %v969, %v1016
        %v1082 = vadd.f32 %v970, %v1021
        %v1083 = vadd.f32 %v971, %v1026
        %v1084 = vadd.f32 %v972, %v1031
        %v1085 = vadd.f32 %v973, %v1036
        %v1086 = vadd.f32 %v974, %v1041
        %v1087 = vadd.f32 %v975, %v1046
        %v1088 = vadd.f32 %v976, %v1011
        %v1089 = vadd.f32 %v977, %v1016
        %v1090 = vadd.f32 %v978, %v1021
        %v1091 = vadd.f32 %v979, %v1026
        %v1092 = vadd.f32 %v980, %v1031
        %v1093 = vadd.f32 %v981, %v1036
        %v1094 = vadd.f32 %v982, %v1041
        %v1095 = vadd.f32 %v983, %v1046
        %v1096 = vadd.f32 %v984, %v1011
        %v1097 = vadd.f32 %v985, %v1016
        %v1098 = vadd.f32 %v986, %v1021
        %v1099 = vadd.f32 %v987, %v1026
        %v1100 = vadd.f32 %v988, %v1031
        %v1101 = vadd.f32 %v989, %v1036
        %v1102 = vadd.f32 %v990, %v1041
        %v1103 = vadd.f32 %v991, %v1046
        %v1104 = vadd.f32 %v992, %v1011
        %v1105 = vadd.f32 %v993, %v1016
        %v1106 = vadd.f32 %v994, %v1021
        %v1107 = vadd.f32 %v995, %v1026
        %v1108 = vadd.f32 %v996, %v1031
        %v1109 = vadd.f32 %v997, %v1036
        %v1110 = vadd.f32 %v998, %v1041
        %v1111 = vadd.f32 %v999, %v1046
        %v1112 = vmax.f32 %v1048, 0.0
        %v1113 = vmax.f32 %v1049, 0.0
        %v1114 = vmax.f32 %v1050, 0.0
        %v1115 = vmax.f32 %v1051, 0.0
        %v1116 = vmax.f32 %v1052, 0.0
        %v1117 = vmax.f32 %v1053, 0.0
        %v1118 = vmax.f32 %v1054, 0.0
        %v1119 = vmax.f32 %v1055, 0.0
        %v1120 = vmax.f32 %v1056, 0.0
        %v1121 = vmax.f32 %v1057, 0.0
        %v1122 = vmax.f32 %v1058, 0.0
        %v1123 = vmax.f32 %v1059, 0.0
        %v1124 = vmax.f32 %v1060, 0.0
        %v1125 = vmax.f32 %v1061, 0.0
        %v1126 = vmax.f32 %v1062, 0.0
        %v1127 = vmax.f32 %v1063, 0.0
        %v1128 = vmax.f32 %v1064, 0.0
        %v1129 = vmax.f32 %v1065, 0.0
        %v1130 = vmax.f32 %v1066, 0.0
        %v1131 = vmax.f32 %v1067, 0.0
        %v1132 = vmax.f32 %v1068, 0.0
        %v1133 = vmax.f32 %v1069, 0.0
        %v1134 = vmax.f32 %v1070, 0.0
        %v1135 = vmax.f32 %v1071, 0.0
        %v1136 = vmax.f32 %v1072, 0.0
        %v1137 = vmax.f32 %v1073, 0.0
        %v1138 = vmax.f32 %v1074, 0.0
        %v1139 = vmax.f32 %v1075, 0.0
        %v1140 = vmax.f32 %v1076, 0.0
        %v1141 = vmax.f32 %v1077, 0.0
        %v1142 = vmax.f32 %v1078, 0.0
        %v1143 = vmax.f32 %v1079, 0.0
        %v1144 = vmax.f32 %v1080, 0.0
        %v1145 = vmax.f32 %v1081, 0.0
        %v1146 = vmax.f32 %v1082, 0.0
        %v1147 = vmax.f32 %v1083, 0.0
        %v1148 = vmax.f32 %v1084, 0.0
        %v1149 = vmax.f32 %v1085, 0.0
        %v1150 = vmax.f32 %v1086, 0.0
        %v1151 = vmax.f32 %v1087, 0.0
        %v1152 = vmax.f32 %v1088, 0.0
        %v1153 = vmax.f32 %v1089, 0.0
        %v1154 = vmax.f32 %v1090, 0.0
        %v1155 = vmax.f32 %v1091, 0.0
        %v1156 = vmax.f32 %v1092, 0.0
        %v1157 = vmax.f32 %v1093, 0.0
        %v1158 = vmax.f32 %v1094, 0.0
        %v1159 = vmax.f32 %v1095, 0.0
        %v1160 = vmax.f32 %v1096, 0.0
        %v1161 = vmax.f32 %v1097, 0.0
        %v1162 = vmax.f32 %v1098, 0.0
        %v1163 = vmax.f32 %v1099, 0.0
        %v1164 = vmax.f32 %v1100, 0.0
        %v1165 = vmax.f32 %v1101, 0.0
        %v1166 = vmax.f32 %v1102, 0.0
        %v1167 = vmax.f32 %v1103, 0.0
        %v1168 = vmax.f32 %v1104, 0.0
        %v1169 = vmax.f32 %v1105, 0.0
        %v1170 = vmax.f32 %v1106, 0.0
        %v1171 = vmax.f32 %v1107, 0.0
        %v1172 = vmax.f32 %v1108, 0.0
        %v1173 = vmax.f32 %v1109, 0.0
        %v1174 = vmax.f32 %v1110, 0.0
        %v1175 = vmax.f32 %v1111, 0.0
        %1176 = vxpose.xlu0.b32.start [1/16] %v1112, 128
        %1177 = vxpose.xlu0.b32.cont [2/16] %v1113, 128
        %1178 = vxpose.xlu0.b32.cont [3/16] %v1114, 128
        %1179 = vxpose.xlu0.b32.cont [4/16] %v1115, 128
        %1180 = vxpose.xlu0.b32.cont [5/16] %v1116, 128
        %1181 = vxpose.xlu0.b32.cont [6/16] %v1117, 128
        %1182 = vxpose.xlu0.b32.cont [7/16] %v1118, 128
        %1183 = vxpose.xlu0.b32.cont [8/16] %v1119, 128
        %1184 = vxpose.xlu0.b32.cont [9/16] 0.0, 128
        %1185 = vxpose.xlu0.b32.cont [10/16] 0.0, 128
        %1186 = vxpose.xlu0.b32.cont [11/16] 0.0, 128
        %1187 = vxpose.xlu0.b32.cont [12/16] 0.0, 128
        %1188 = vxpose.xlu0.b32.cont [13/16] 0.0, 128
        %1189 = vxpose.xlu0.b32.cont [14/16] 0.0, 128
        %1190 = vxpose.xlu0.b32.cont [15/16] 0.0, 128
        %1191 = vxpose.xlu0.b32.end [16/16] 0.0, 128
        %v1192 = vpop.trf.xlu0
        %v1193 = vpop.trf.xlu0
        %v1194 = vpop.trf.xlu0
        %v1195 = vpop.trf.xlu0
        %v1196 = vpop.trf.xlu0
        %v1197 = vpop.trf.xlu0
        %v1198 = vpop.trf.xlu0
        %v1199 = vpop.trf.xlu0
        %v1200 = vpop.trf.xlu0
        %v1201 = vpop.trf.xlu0
        %v1202 = vpop.trf.xlu0
        %v1203 = vpop.trf.xlu0
        %v1204 = vpop.trf.xlu0
        %v1205 = vpop.trf.xlu0
        %v1206 = vpop.trf.xlu0
        %v1207 = vpop.trf.xlu0
        %1208 = vxpose.xlu0.b32.start [1/16] %v1120, 128
        %1209 = vxpose.xlu0.b32.cont [2/16] %v1121, 128
        %1210 = vxpose.xlu0.b32.cont [3/16] %v1122, 128
        %1211 = vxpose.xlu0.b32.cont [4/16] %v1123, 128
        %1212 = vxpose.xlu0.b32.cont [5/16] %v1124, 128
        %1213 = vxpose.xlu0.b32.cont [6/16] %v1125, 128
        %1214 = vxpose.xlu0.b32.cont [7/16] %v1126, 128
        %1215 = vxpose.xlu0.b32.cont [8/16] %v1127, 128
        %1216 = vxpose.xlu0.b32.cont [9/16] 0.0, 128
        %1217 = vxpose.xlu0.b32.cont [10/16] 0.0, 128
        %1218 = vxpose.xlu0.b32.cont [11/16] 0.0, 128
        %1219 = vxpose.xlu0.b32.cont [12/16] 0.0, 128
        %1220 = vxpose.xlu0.b32.cont [13/16] 0.0, 128
        %1221 = vxpose.xlu0.b32.cont [14/16] 0.0, 128
        %1222 = vxpose.xlu0.b32.cont [15/16] 0.0, 128
        %1223 = vxpose.xlu0.b32.end [16/16] 0.0, 128
        %v1224 = vpop.trf.xlu0
        %v1225 = vpop.trf.xlu0
        %v1226 = vpop.trf.xlu0
        %v1227 = vpop.trf.xlu0
        %v1228 = vpop.trf.xlu0
        %v1229 = vpop.trf.xlu0
        %v1230 = vpop.trf.xlu0
        %v1231 = vpop.trf.xlu0
        %v1232 = vpop.trf.xlu0
        %v1233 = vpop.trf.xlu0
        %v1234 = vpop.trf.xlu0
        %v1235 = vpop.trf.xlu0
        %v1236 = vpop.trf.xlu0
        %v1237 = vpop.trf.xlu0
        %v1238 = vpop.trf.xlu0
        %v1239 = vpop.trf.xlu0
        %1240 = vxpose.xlu0.b32.start [1/16] %v1128, 128
        %1241 = vxpose.xlu0.b32.cont [2/16] %v1129, 128
        %1242 = vxpose.xlu0.b32.cont [3/16] %v1130, 128
        %1243 = vxpose.xlu0.b32.cont [4/16] %v1131, 128
        %1244 = vxpose.xlu0.b32.cont [5/16] %v1132, 128
        %1245 = vxpose.xlu0.b32.cont [6/16] %v1133, 128
        %1246 = vxpose.xlu0.b32.cont [7/16] %v1134, 128
        %1247 = vxpose.xlu0.b32.cont [8/16] %v1135, 128
        %1248 = vxpose.xlu0.b32.cont [9/16] 0.0, 128
        %1249 = vxpose.xlu0.b32.cont [10/16] 0.0, 128
        %1250 = vxpose.xlu0.b32.cont [11/16] 0.0, 128
        %1251 = vxpose.xlu0.b32.cont [12/16] 0.0, 128
        %1252 = vxpose.xlu0.b32.cont [13/16] 0.0, 128
        %1253 = vxpose.xlu0.b32.cont [14/16] 0.0, 128
        %1254 = vxpose.xlu0.b32.cont [15/16] 0.0, 128
        %1255 = vxpose.xlu0.b32.end [16/16] 0.0, 128
        %v1256 = vpop.trf.xlu0
        %v1257 = vpop.trf.xlu0
        %v1258 = vpop.trf.xlu0
        %v1259 = vpop.trf.xlu0
        %v1260 = vpop.trf.xlu0
        %v1261 = vpop.trf.xlu0
        %v1262 = vpop.trf.xlu0
        %v1263 = vpop.trf.xlu0
        %v1264 = vpop.trf.xlu0
        %v1265 = vpop.trf.xlu0
        %v1266 = vpop.trf.xlu0
        %v1267 = vpop.trf.xlu0
        %v1268 = vpop.trf.xlu0
        %v1269 = vpop.trf.xlu0
        %v1270 = vpop.trf.xlu0
        %v1271 = vpop.trf.xlu0
        %1272 = vxpose.xlu0.b32.start [1/16] %v1136, 128
        %1273 = vxpose.xlu0.b32.cont [2/16] %v1137, 128
        %1274 = vxpose.xlu0.b32.cont [3/16] %v1138, 128
        %1275 = vxpose.xlu0.b32.cont [4/16] %v1139, 128
        %1276 = vxpose.xlu0.b32.cont [5/16] %v1140, 128
        %1277 = vxpose.xlu0.b32.cont [6/16] %v1141, 128
        %1278 = vxpose.xlu0.b32.cont [7/16] %v1142, 128
        %1279 = vxpose.xlu0.b32.cont [8/16] %v1143, 128
        %1280 = vxpose.xlu0.b32.cont [9/16] 0.0, 128
        %1281 = vxpose.xlu0.b32.cont [10/16] 0.0, 128
        %1282 = vxpose.xlu0.b32.cont [11/16] 0.0, 128
        %1283 = vxpose.xlu0.b32.cont [12/16] 0.0, 128
        %1284 = vxpose.xlu0.b32.cont [13/16] 0.0, 128
        %1285 = vxpose.xlu0.b32.cont [14/16] 0.0, 128
        %1286 = vxpose.xlu0.b32.cont [15/16] 0.0, 128
        %1287 = vxpose.xlu0.b32.end [16/16] 0.0, 128
        %v1288 = vpop.trf.xlu0
        %v1289 = vpop.trf.xlu0
        %v1290 = vpop.trf.xlu0
        %v1291 = vpop.trf.xlu0
        %v1292 = vpop.trf.xlu0
        %v1293 = vpop.trf.xlu0
        %v1294 = vpop.trf.xlu0
        %v1295 = vpop.trf.xlu0
        %v1296 = vpop.trf.xlu0
        %v1297 = vpop.trf.xlu0
        %v1298 = vpop.trf.xlu0
        %v1299 = vpop.trf.xlu0
        %v1300 = vpop.trf.xlu0
        %v1301 = vpop.trf.xlu0
        %v1302 = vpop.trf.xlu0
        %v1303 = vpop.trf.xlu0
        %1304 = vxpose.xlu0.b32.start [1/16] %v1144, 128
        %1305 = vxpose.xlu0.b32.cont [2/16] %v1145, 128
        %1306 = vxpose.xlu0.b32.cont [3/16] %v1146, 128
        %1307 = vxpose.xlu0.b32.cont [4/16] %v1147, 128
        %1308 = vxpose.xlu0.b32.cont [5/16] %v1148, 128
        %1309 = vxpose.xlu0.b32.cont [6/16] %v1149, 128
        %1310 = vxpose.xlu0.b32.cont [7/16] %v1150, 128
        %1311 = vxpose.xlu0.b32.cont [8/16] %v1151, 128
        %1312 = vxpose.xlu0.b32.cont [9/16] 0.0, 128
        %1313 = vxpose.xlu0.b32.cont [10/16] 0.0, 128
        %1314 = vxpose.xlu0.b32.cont [11/16] 0.0, 128
        %1315 = vxpose.xlu0.b32.cont [12/16] 0.0, 128
        %1316 = vxpose.xlu0.b32.cont [13/16] 0.0, 128
        %1317 = vxpose.xlu0.b32.cont [14/16] 0.0, 128
        %1318 = vxpose.xlu0.b32.cont [15/16] 0.0, 128
        %1319 = vxpose.xlu0.b32.end [16/16] 0.0, 128
        %v1320 = vpop.trf.xlu0
        %v1321 = vpop.trf.xlu0
        %v1322 = vpop.trf.xlu0
        %v1323 = vpop.trf.xlu0
        %v1324 = vpop.trf.xlu0
        %v1325 = vpop.trf.xlu0
        %v1326 = vpop.trf.xlu0
        %v1327 = vpop.trf.xlu0
        %v1328 = vpop.trf.xlu0
        %v1329 = vpop.trf.xlu0
        %v1330 = vpop.trf.xlu0
        %v1331 = vpop.trf.xlu0
        %v1332 = vpop.trf.xlu0
        %v1333 = vpop.trf.xlu0
        %v1334 = vpop.trf.xlu0
        %v1335 = vpop.trf.xlu0
        %1336 = vxpose.xlu0.b32.start [1/16] %v1152, 128
        %1337 = vxpose.xlu0.b32.cont [2/16] %v1153, 128
        %1338 = vxpose.xlu0.b32.cont [3/16] %v1154, 128
        %1339 = vxpose.xlu0.b32.cont [4/16] %v1155, 128
        %1340 = vxpose.xlu0.b32.cont [5/16] %v1156, 128
        %1341 = vxpose.xlu0.b32.cont [6/16] %v1157, 128
        %1342 = vxpose.xlu0.b32.cont [7/16] %v1158, 128
        %1343 = vxpose.xlu0.b32.cont [8/16] %v1159, 128
        %1344 = vxpose.xlu0.b32.cont [9/16] 0.0, 128
        %1345 = vxpose.xlu0.b32.cont [10/16] 0.0, 128
        %1346 = vxpose.xlu0.b32.cont [11/16] 0.0, 128
        %1347 = vxpose.xlu0.b32.cont [12/16] 0.0, 128
        %1348 = vxpose.xlu0.b32.cont [13/16] 0.0, 128
        %1349 = vxpose.xlu0.b32.cont [14/16] 0.0, 128
        %1350 = vxpose.xlu0.b32.cont [15/16] 0.0, 128
        %1351 = vxpose.xlu0.b32.end [16/16] 0.0, 128
        %v1352 = vpop.trf.xlu0
        %v1353 = vpop.trf.xlu0
        %v1354 = vpop.trf.xlu0
        %v1355 = vpop.trf.xlu0
        %v1356 = vpop.trf.xlu0
        %v1357 = vpop.trf.xlu0
        %v1358 = vpop.trf.xlu0
        %v1359 = vpop.trf.xlu0
        %v1360 = vpop.trf.xlu0
        %v1361 = vpop.trf.xlu0
        %v1362 = vpop.trf.xlu0
        %v1363 = vpop.trf.xlu0
        %v1364 = vpop.trf.xlu0
        %v1365 = vpop.trf.xlu0
        %v1366 = vpop.trf.xlu0
        %v1367 = vpop.trf.xlu0
        %1368 = vxpose.xlu0.b32.start [1/16] %v1160, 128
        %1369 = vxpose.xlu0.b32.cont [2/16] %v1161, 128
        %1370 = vxpose.xlu0.b32.cont [3/16] %v1162, 128
        %1371 = vxpose.xlu0.b32.cont [4/16] %v1163, 128
        %1372 = vxpose.xlu0.b32.cont [5/16] %v1164, 128
        %1373 = vxpose.xlu0.b32.cont [6/16] %v1165, 128
        %1374 = vxpose.xlu0.b32.cont [7/16] %v1166, 128
        %1375 = vxpose.xlu0.b32.cont [8/16] %v1167, 128
        %1376 = vxpose.xlu0.b32.cont [9/16] 0.0, 128
        %1377 = vxpose.xlu0.b32.cont [10/16] 0.0, 128
        %1378 = vxpose.xlu0.b32.cont [11/16] 0.0, 128
        %1379 = vxpose.xlu0.b32.cont [12/16] 0.0, 128
        %1380 = vxpose.xlu0.b32.cont [13/16] 0.0, 128
        %1381 = vxpose.xlu0.b32.cont [14/16] 0.0, 128
        %1382 = vxpose.xlu0.b32.cont [15/16] 0.0, 128
        %1383 = vxpose.xlu0.b32.end [16/16] 0.0, 128
        %v1384 = vpop.trf.xlu0
        %v1385 = vpop.trf.xlu0
        %v1386 = vpop.trf.xlu0
        %v1387 = vpop.trf.xlu0
        %v1388 = vpop.trf.xlu0
        %v1389 = vpop.trf.xlu0
        %v1390 = vpop.trf.xlu0
        %v1391 = vpop.trf.xlu0
        %v1392 = vpop.trf.xlu0
        %v1393 = vpop.trf.xlu0
        %v1394 = vpop.trf.xlu0
        %v1395 = vpop.trf.xlu0
        %v1396 = vpop.trf.xlu0
        %v1397 = vpop.trf.xlu0
        %v1398 = vpop.trf.xlu0
        %v1399 = vpop.trf.xlu0
        %1400 = vxpose.xlu0.b32.start [1/16] %v1168, 128
        %1401 = vxpose.xlu0.b32.cont [2/16] %v1169, 128
        %1402 = vxpose.xlu0.b32.cont [3/16] %v1170, 128
        %1403 = vxpose.xlu0.b32.cont [4/16] %v1171, 128
        %1404 = vxpose.xlu0.b32.cont [5/16] %v1172, 128
        %1405 = vxpose.xlu0.b32.cont [6/16] %v1173, 128
        %1406 = vxpose.xlu0.b32.cont [7/16] %v1174, 128
        %1407 = vxpose.xlu0.b32.cont [8/16] %v1175, 128
        %1408 = vxpose.xlu0.b32.cont [9/16] 0.0, 128
        %1409 = vxpose.xlu0.b32.cont [10/16] 0.0, 128
        %1410 = vxpose.xlu0.b32.cont [11/16] 0.0, 128
        %1411 = vxpose.xlu0.b32.cont [12/16] 0.0, 128
        %1412 = vxpose.xlu0.b32.cont [13/16] 0.0, 128
        %1413 = vxpose.xlu0.b32.cont [14/16] 0.0, 128
        %1414 = vxpose.xlu0.b32.cont [15/16] 0.0, 128
        %1415 = vxpose.xlu0.b32.end [16/16] 0.0, 128
        %v1416 = vpop.trf.xlu0
        %v1417 = vpop.trf.xlu0
        %v1418 = vpop.trf.xlu0
        %v1419 = vpop.trf.xlu0
        %v1420 = vpop.trf.xlu0
        %v1421 = vpop.trf.xlu0
        %v1422 = vpop.trf.xlu0
        %v1423 = vpop.trf.xlu0
        %v1424 = vpop.trf.xlu0
        %v1425 = vpop.trf.xlu0
        %v1426 = vpop.trf.xlu0
        %v1427 = vpop.trf.xlu0
        %v1428 = vpop.trf.xlu0
        %v1429 = vpop.trf.xlu0
        %v1430 = vpop.trf.xlu0
        %v1431 = vpop.trf.xlu0
        %v1432 = vpack.c.bf16 %v1193, %v1192
        %v1433 = vpack.c.bf16 %v1195, %v1194
        %v1434 = vpack.c.bf16 %v1197, %v1196
        %v1435 = vpack.c.bf16 %v1199, %v1198
        %v1436 = vpack.c.bf16 %v1201, %v1200
        %v1437 = vpack.c.bf16 %v1203, %v1202
        %v1438 = vpack.c.bf16 %v1205, %v1204
        %v1439 = vpack.c.bf16 %v1207, %v1206
        %v1440 = vpack.c.bf16 %v1225, %v1224
        %v1441 = vpack.c.bf16 %v1227, %v1226
        %v1442 = vpack.c.bf16 %v1229, %v1228
        %v1443 = vpack.c.bf16 %v1231, %v1230
        %v1444 = vpack.c.bf16 %v1233, %v1232
        %v1445 = vpack.c.bf16 %v1235, %v1234
        %v1446 = vpack.c.bf16 %v1237, %v1236
        %v1447 = vpack.c.bf16 %v1239, %v1238
        %v1448 = vpack.c.bf16 %v1257, %v1256
        %v1449 = vpack.c.bf16 %v1259, %v1258
        %v1450 = vpack.c.bf16 %v1261, %v1260
        %v1451 = vpack.c.bf16 %v1263, %v1262
        %v1452 = vpack.c.bf16 %v1265, %v1264
        %v1453 = vpack.c.bf16 %v1267, %v1266
        %v1454 = vpack.c.bf16 %v1269, %v1268
        %v1455 = vpack.c.bf16 %v1271, %v1270
        %v1456 = vpack.c.bf16 %v1289, %v1288
        %v1457 = vpack.c.bf16 %v1291, %v1290
        %v1458 = vpack.c.bf16 %v1293, %v1292
        %v1459 = vpack.c.bf16 %v1295, %v1294
        %v1460 = vpack.c.bf16 %v1297, %v1296
        %v1461 = vpack.c.bf16 %v1299, %v1298
        %v1462 = vpack.c.bf16 %v1301, %v1300
        %v1463 = vpack.c.bf16 %v1303, %v1302
        %v1464 = vpack.c.bf16 %v1321, %v1320
        %v1465 = vpack.c.bf16 %v1323, %v1322
        %v1466 = vpack.c.bf16 %v1325, %v1324
        %v1467 = vpack.c.bf16 %v1327, %v1326
        %v1468 = vpack.c.bf16 %v1329, %v1328
        %v1469 = vpack.c.bf16 %v1331, %v1330
        %v1470 = vpack.c.bf16 %v1333, %v1332
        %v1471 = vpack.c.bf16 %v1335, %v1334
        %v1472 = vpack.c.bf16 %v1353, %v1352
        %v1473 = vpack.c.bf16 %v1355, %v1354
        %v1474 = vpack.c.bf16 %v1357, %v1356
        %v1475 = vpack.c.bf16 %v1359, %v1358
        %v1476 = vpack.c.bf16 %v1361, %v1360
        %v1477 = vpack.c.bf16 %v1363, %v1362
        %v1478 = vpack.c.bf16 %v1365, %v1364
        %v1479 = vpack.c.bf16 %v1367, %v1366
        %v1480 = vpack.c.bf16 %v1385, %v1384
        %v1481 = vpack.c.bf16 %v1387, %v1386
        %v1482 = vpack.c.bf16 %v1389, %v1388
        %v1483 = vpack.c.bf16 %v1391, %v1390
        %v1484 = vpack.c.bf16 %v1393, %v1392
        %v1485 = vpack.c.bf16 %v1395, %v1394
        %v1486 = vpack.c.bf16 %v1397, %v1396
        %v1487 = vpack.c.bf16 %v1399, %v1398
        %v1488 = vpack.c.bf16 %v1417, %v1416
        %v1489 = vpack.c.bf16 %v1419, %v1418
        %v1490 = vpack.c.bf16 %v1421, %v1420
        %v1491 = vpack.c.bf16 %v1423, %v1422
        %v1492 = vpack.c.bf16 %v1425, %v1424
        %v1493 = vpack.c.bf16 %v1427, %v1426
        %v1494 = vpack.c.bf16 %v1429, %v1428
        %v1495 = vpack.c.bf16 %v1431, %v1430
        %v1496 = vld [vmem:[%s3] sm:$0xf]
        %v1497 = vld [vmem:[%s3 + $0x4] sm:$0xf]
        %v1498 = vld [vmem:[%s3 + $0x8] sm:$0xf]
        %v1499 = vld [vmem:[%s3 + $0xc] sm:$0xf]
        %v1500 = vld [vmem:[%s3 + $0x10] sm:$0xf]
        %v1501 = vld [vmem:[%s3 + $0x14] sm:$0xf]
        %v1502 = vld [vmem:[%s3 + $0x18] sm:$0xf]
        %v1503 = vld [vmem:[%s3 + $0x1c] sm:$0xf]
        %v1504 = vld [vmem:[%s4] sm:$0x1]
        %v1506 = vperm.slane %v1504, 0
        %v1516 = vunpack.c.l.b16 %v1496
        %v1517 = vunpack.c.l.b16 %v1497
        %v1518 = vunpack.c.l.b16 %v1498
        %v1519 = vunpack.c.l.b16 %v1499
        %v1520 = vunpack.c.l.b16 %v1500
        %v1521 = vunpack.c.l.b16 %v1501
        %v1522 = vunpack.c.l.b16 %v1502
        %v1523 = vunpack.c.l.b16 %v1503
        %v1524 = vpack.c.b16 %v1517, %v1516
        %v1525 = vpack.c.b16 %v1519, %v1518
        %v1526 = vpack.c.b16 %v1521, %v1520
        %v1527 = vpack.c.b16 %v1523, %v1522
        %vm1532 = vcmask 523264
        %v1534 = vsel %vm1532, %v1432, 0
        %v1537 = vsel %vm1532, %v1433, 0
        %v1540 = vsel %vm1532, %v1434, 0
        %v1543 = vsel %vm1532, %v1435, 0
        %v1546 = vsel %vm1532, %v1436, 0
        %v1549 = vsel %vm1532, %v1437, 0
        %v1552 = vsel %vm1532, %v1438, 0
        %v1555 = vsel %vm1532, %v1439, 0
        %v1558 = vsel %vm1532, %v1440, 0
        %v1561 = vsel %vm1532, %v1441, 0
        %v1564 = vsel %vm1532, %v1442, 0
        %v1567 = vsel %vm1532, %v1443, 0
        %v1570 = vsel %vm1532, %v1444, 0
        %v1573 = vsel %vm1532, %v1445, 0
        %v1576 = vsel %vm1532, %v1446, 0
        %v1579 = vsel %vm1532, %v1447, 0
        %v1582 = vsel %vm1532, %v1448, 0
        %v1585 = vsel %vm1532, %v1449, 0
        %v1588 = vsel %vm1532, %v1450, 0
        %v1591 = vsel %vm1532, %v1451, 0
        %v1594 = vsel %vm1532, %v1452, 0
        %v1597 = vsel %vm1532, %v1453, 0
        %v1600 = vsel %vm1532, %v1454, 0
        %v1603 = vsel %vm1532, %v1455, 0
        %v1606 = vsel %vm1532, %v1456, 0
        %v1609 = vsel %vm1532, %v1457, 0
        %v1612 = vsel %vm1532, %v1458, 0
        %v1615 = vsel %vm1532, %v1459, 0
        %v1618 = vsel %vm1532, %v1460, 0
        %v1621 = vsel %vm1532, %v1461, 0
        %v1624 = vsel %vm1532, %v1462, 0
        %v1627 = vsel %vm1532, %v1463, 0
        %v1630 = vsel %vm1532, %v1464, 0
        %v1633 = vsel %vm1532, %v1465, 0
        %v1636 = vsel %vm1532, %v1466, 0
        %v1639 = vsel %vm1532, %v1467, 0
        %v1642 = vsel %vm1532, %v1468, 0
        %v1645 = vsel %vm1532, %v1469, 0
        %v1648 = vsel %vm1532, %v1470, 0
        %v1651 = vsel %vm1532, %v1471, 0
        %v1654 = vsel %vm1532, %v1472, 0
        %v1657 = vsel %vm1532, %v1473, 0
        %v1660 = vsel %vm1532, %v1474, 0
        %v1663 = vsel %vm1532, %v1475, 0
        %v1666 = vsel %vm1532, %v1476, 0
        %v1669 = vsel %vm1532, %v1477, 0
        %v1672 = vsel %vm1532, %v1478, 0
        %v1675 = vsel %vm1532, %v1479, 0
        %v1678 = vsel %vm1532, %v1480, 0
        %v1681 = vsel %vm1532, %v1481, 0
        %v1684 = vsel %vm1532, %v1482, 0
        %v1687 = vsel %vm1532, %v1483, 0
        %v1690 = vsel %vm1532, %v1484, 0
        %v1693 = vsel %vm1532, %v1485, 0
        %v1696 = vsel %vm1532, %v1486, 0
        %v1699 = vsel %vm1532, %v1487, 0
        %v1702 = vsel %vm1532, %v1488, 0
        %v1705 = vsel %vm1532, %v1489, 0
        %v1708 = vsel %vm1532, %v1490, 0
        %v1711 = vsel %vm1532, %v1491, 0
        %v1714 = vsel %vm1532, %v1492, 0
        %v1717 = vsel %vm1532, %v1493, 0
        %v1720 = vsel %vm1532, %v1494, 0
        %v1723 = vsel %vm1532, %v1495, 0
        %1725 = vmatpush.bf16.msra.mxu0 0
        %1726 = vmatpush.bf16.msra.mxu0 0
        %1727 = vmatpush.bf16.msra.mxu0 0
        %1728 = vmatpush.bf16.msra.mxu0 0
        %1729 = vmatpush.bf16.msra.mxu0 %v1527
        %1730 = vmatpush.bf16.msra.mxu0 %v1526
        %1731 = vmatpush.bf16.msra.mxu0 %v1525
        %1732 = vmatpush.bf16.msra.mxu0 %v1524
        %1733 = vmatmul.bf16.gmra.mxu0 %v1534
        %v1734 = vpop.f32.mrf.mxu0
        %v1735 = vadd.f32 %v1506, %v1734
        %v1736 = vpop.f32.mrf.mxu0
        %v1737 = vadd.f32 %v1506, %v1736
        %1738 = vmatmul.bf16.gmra.mxu0 %v1537
        %v1739 = vpop.f32.mrf.mxu0
        %v1740 = vadd.f32 %v1506, %v1739
        %v1741 = vpop.f32.mrf.mxu0
        %v1742 = vadd.f32 %v1506, %v1741
        %1743 = vmatmul.bf16.gmra.mxu0 %v1540
        %v1744 = vpop.f32.mrf.mxu0
        %v1745 = vadd.f32 %v1506, %v1744
        %v1746 = vpop.f32.mrf.mxu0
        %v1747 = vadd.f32 %v1506, %v1746
        %1748 = vmatmul.bf16.gmra.mxu0 %v1543
        %v1749 = vpop.f32.mrf.mxu0
        %v1750 = vadd.f32 %v1506, %v1749
        %v1751 = vpop.f32.mrf.mxu0
        %v1752 = vadd.f32 %v1506, %v1751
        %1753 = vmatmul.bf16.gmra.mxu0 %v1546
        %v1754 = vpop.f32.mrf.mxu0
        %v1755 = vadd.f32 %v1506, %v1754
        %v1756 = vpop.f32.mrf.mxu0
        %v1757 = vadd.f32 %v1506, %v1756
        %1758 = vmatmul.bf16.gmra.mxu0 %v1549
        %v1759 = vpop.f32.mrf.mxu0
        %v1760 = vadd.f32 %v1506, %v1759
        %v1761 = vpop.f32.mrf.mxu0
        %v1762 = vadd.f32 %v1506, %v1761
        %1763 = vmatmul.bf16.gmra.mxu0 %v1552
        %v1764 = vpop.f32.mrf.mxu0
        %v1765 = vadd.f32 %v1506, %v1764
        %v1766 = vpop.f32.mrf.mxu0
        %v1767 = vadd.f32 %v1506, %v1766
        %1768 = vmatmul.bf16.gmra.mxu0 %v1555
        %v1769 = vpop.f32.mrf.mxu0
        %v1770 = vadd.f32 %v1506, %v1769
        %v1771 = vpop.f32.mrf.mxu0
        %v1772 = vadd.f32 %v1506, %v1771
        %1773 = vmatmul.bf16.gmra.mxu0 %v1558
        %v1774 = vpop.f32.mrf.mxu0
        %v1775 = vadd.f32 %v1506, %v1774
        %v1776 = vpop.f32.mrf.mxu0
        %v1777 = vadd.f32 %v1506, %v1776
        %1778 = vmatmul.bf16.gmra.mxu0 %v1561
        %v1779 = vpop.f32.mrf.mxu0
        %v1780 = vadd.f32 %v1506, %v1779
        %v1781 = vpop.f32.mrf.mxu0
        %v1782 = vadd.f32 %v1506, %v1781
        %1783 = vmatmul.bf16.gmra.mxu0 %v1564
        %v1784 = vpop.f32.mrf.mxu0
        %v1785 = vadd.f32 %v1506, %v1784
        %v1786 = vpop.f32.mrf.mxu0
        %v1787 = vadd.f32 %v1506, %v1786
        %1788 = vmatmul.bf16.gmra.mxu0 %v1567
        %v1789 = vpop.f32.mrf.mxu0
        %v1790 = vadd.f32 %v1506, %v1789
        %v1791 = vpop.f32.mrf.mxu0
        %v1792 = vadd.f32 %v1506, %v1791
        %1793 = vmatmul.bf16.gmra.mxu0 %v1570
        %v1794 = vpop.f32.mrf.mxu0
        %v1795 = vadd.f32 %v1506, %v1794
        %v1796 = vpop.f32.mrf.mxu0
        %v1797 = vadd.f32 %v1506, %v1796
        %1798 = vmatmul.bf16.gmra.mxu0 %v1573
        %v1799 = vpop.f32.mrf.mxu0
        %v1800 = vadd.f32 %v1506, %v1799
        %v1801 = vpop.f32.mrf.mxu0
        %v1802 = vadd.f32 %v1506, %v1801
        %1803 = vmatmul.bf16.gmra.mxu0 %v1576
        %v1804 = vpop.f32.mrf.mxu0
        %v1805 = vadd.f32 %v1506, %v1804
        %v1806 = vpop.f32.mrf.mxu0
        %v1807 = vadd.f32 %v1506, %v1806
        %1808 = vmatmul.bf16.gmra.mxu0 %v1579
        %v1809 = vpop.f32.mrf.mxu0
        %v1810 = vadd.f32 %v1506, %v1809
        %v1811 = vpop.f32.mrf.mxu0
        %v1812 = vadd.f32 %v1506, %v1811
        %1813 = vmatmul.bf16.gmra.mxu0 %v1582
        %v1814 = vpop.f32.mrf.mxu0
        %v1815 = vadd.f32 %v1506, %v1814
        %v1816 = vpop.f32.mrf.mxu0
        %v1817 = vadd.f32 %v1506, %v1816
        %1818 = vmatmul.bf16.gmra.mxu0 %v1585
        %v1819 = vpop.f32.mrf.mxu0
        %v1820 = vadd.f32 %v1506, %v1819
        %v1821 = vpop.f32.mrf.mxu0
        %v1822 = vadd.f32 %v1506, %v1821
        %1823 = vmatmul.bf16.gmra.mxu0 %v1588
        %v1824 = vpop.f32.mrf.mxu0
        %v1825 = vadd.f32 %v1506, %v1824
        %v1826 = vpop.f32.mrf.mxu0
        %v1827 = vadd.f32 %v1506, %v1826
        %1828 = vmatmul.bf16.gmra.mxu0 %v1591
        %v1829 = vpop.f32.mrf.mxu0
        %v1830 = vadd.f32 %v1506, %v1829
        %v1831 = vpop.f32.mrf.mxu0
        %v1832 = vadd.f32 %v1506, %v1831
        %1833 = vmatmul.bf16.gmra.mxu0 %v1594
        %v1834 = vpop.f32.mrf.mxu0
        %v1835 = vadd.f32 %v1506, %v1834
        %v1836 = vpop.f32.mrf.mxu0
        %v1837 = vadd.f32 %v1506, %v1836
        %1838 = vmatmul.bf16.gmra.mxu0 %v1597
        %v1839 = vpop.f32.mrf.mxu0
        %v1840 = vadd.f32 %v1506, %v1839
        %v1841 = vpop.f32.mrf.mxu0
        %v1842 = vadd.f32 %v1506, %v1841
        %1843 = vmatmul.bf16.gmra.mxu0 %v1600
        %v1844 = vpop.f32.mrf.mxu0
        %v1845 = vadd.f32 %v1506, %v1844
        %v1846 = vpop.f32.mrf.mxu0
        %v1847 = vadd.f32 %v1506, %v1846
        %1848 = vmatmul.bf16.gmra.mxu0 %v1603
        %v1849 = vpop.f32.mrf.mxu0
        %v1850 = vadd.f32 %v1506, %v1849
        %v1851 = vpop.f32.mrf.mxu0
        %v1852 = vadd.f32 %v1506, %v1851
        %1853 = vmatmul.bf16.gmra.mxu0 %v1606
        %v1854 = vpop.f32.mrf.mxu0
        %v1855 = vadd.f32 %v1506, %v1854
        %v1856 = vpop.f32.mrf.mxu0
        %v1857 = vadd.f32 %v1506, %v1856
        %1858 = vmatmul.bf16.gmra.mxu0 %v1609
        %v1859 = vpop.f32.mrf.mxu0
        %v1860 = vadd.f32 %v1506, %v1859
        %v1861 = vpop.f32.mrf.mxu0
        %v1862 = vadd.f32 %v1506, %v1861
        %1863 = vmatmul.bf16.gmra.mxu0 %v1612
        %v1864 = vpop.f32.mrf.mxu0
        %v1865 = vadd.f32 %v1506, %v1864
        %v1866 = vpop.f32.mrf.mxu0
        %v1867 = vadd.f32 %v1506, %v1866
        %1868 = vmatmul.bf16.gmra.mxu0 %v1615
        %v1869 = vpop.f32.mrf.mxu0
        %v1870 = vadd.f32 %v1506, %v1869
        %v1871 = vpop.f32.mrf.mxu0
        %v1872 = vadd.f32 %v1506, %v1871
        %1873 = vmatmul.bf16.gmra.mxu0 %v1618
        %v1874 = vpop.f32.mrf.mxu0
        %v1875 = vadd.f32 %v1506, %v1874
        %v1876 = vpop.f32.mrf.mxu0
        %v1877 = vadd.f32 %v1506, %v1876
        %1878 = vmatmul.bf16.gmra.mxu0 %v1621
        %v1879 = vpop.f32.mrf.mxu0
        %v1880 = vadd.f32 %v1506, %v1879
        %v1881 = vpop.f32.mrf.mxu0
        %v1882 = vadd.f32 %v1506, %v1881
        %1883 = vmatmul.bf16.gmra.mxu0 %v1624
        %v1884 = vpop.f32.mrf.mxu0
        %v1885 = vadd.f32 %v1506, %v1884
        %v1886 = vpop.f32.mrf.mxu0
        %v1887 = vadd.f32 %v1506, %v1886
        %1888 = vmatmul.bf16.gmra.mxu0 %v1627
        %v1889 = vpop.f32.mrf.mxu0
        %v1890 = vadd.f32 %v1506, %v1889
        %v1891 = vpop.f32.mrf.mxu0
        %v1892 = vadd.f32 %v1506, %v1891
        %1893 = vmatmul.bf16.gmra.mxu0 %v1630
        %v1894 = vpop.f32.mrf.mxu0
        %v1895 = vadd.f32 %v1506, %v1894
        %v1896 = vpop.f32.mrf.mxu0
        %v1897 = vadd.f32 %v1506, %v1896
        %1898 = vmatmul.bf16.gmra.mxu0 %v1633
        %v1899 = vpop.f32.mrf.mxu0
        %v1900 = vadd.f32 %v1506, %v1899
        %v1901 = vpop.f32.mrf.mxu0
        %v1902 = vadd.f32 %v1506, %v1901
        %1903 = vmatmul.bf16.gmra.mxu0 %v1636
        %v1904 = vpop.f32.mrf.mxu0
        %v1905 = vadd.f32 %v1506, %v1904
        %v1906 = vpop.f32.mrf.mxu0
        %v1907 = vadd.f32 %v1506, %v1906
        %1908 = vmatmul.bf16.gmra.mxu0 %v1639
        %v1909 = vpop.f32.mrf.mxu0
        %v1910 = vadd.f32 %v1506, %v1909
        %v1911 = vpop.f32.mrf.mxu0
        %v1912 = vadd.f32 %v1506, %v1911
        %1913 = vmatmul.bf16.gmra.mxu0 %v1642
        %v1914 = vpop.f32.mrf.mxu0
        %v1915 = vadd.f32 %v1506, %v1914
        %v1916 = vpop.f32.mrf.mxu0
        %v1917 = vadd.f32 %v1506, %v1916
        %1918 = vmatmul.bf16.gmra.mxu0 %v1645
        %v1919 = vpop.f32.mrf.mxu0
        %v1920 = vadd.f32 %v1506, %v1919
        %v1921 = vpop.f32.mrf.mxu0
        %v1922 = vadd.f32 %v1506, %v1921
        %1923 = vmatmul.bf16.gmra.mxu0 %v1648
        %v1924 = vpop.f32.mrf.mxu0
        %v1925 = vadd.f32 %v1506, %v1924
        %v1926 = vpop.f32.mrf.mxu0
        %v1927 = vadd.f32 %v1506, %v1926
        %1928 = vmatmul.bf16.gmra.mxu0 %v1651
        %v1929 = vpop.f32.mrf.mxu0
        %v1930 = vadd.f32 %v1506, %v1929
        %v1931 = vpop.f32.mrf.mxu0
        %v1932 = vadd.f32 %v1506, %v1931
        %1933 = vmatmul.bf16.gmra.mxu0 %v1654
        %v1934 = vpop.f32.mrf.mxu0
        %v1935 = vadd.f32 %v1506, %v1934
        %v1936 = vpop.f32.mrf.mxu0
        %v1937 = vadd.f32 %v1506, %v1936
        %1938 = vmatmul.bf16.gmra.mxu0 %v1657
        %v1939 = vpop.f32.mrf.mxu0
        %v1940 = vadd.f32 %v1506, %v1939
        %v1941 = vpop.f32.mrf.mxu0
        %v1942 = vadd.f32 %v1506, %v1941
        %1943 = vmatmul.bf16.gmra.mxu0 %v1660
        %v1944 = vpop.f32.mrf.mxu0
        %v1945 = vadd.f32 %v1506, %v1944
        %v1946 = vpop.f32.mrf.mxu0
        %v1947 = vadd.f32 %v1506, %v1946
        %1948 = vmatmul.bf16.gmra.mxu0 %v1663
        %v1949 = vpop.f32.mrf.mxu0
        %v1950 = vadd.f32 %v1506, %v1949
        %v1951 = vpop.f32.mrf.mxu0
        %v1952 = vadd.f32 %v1506, %v1951
        %1953 = vmatmul.bf16.gmra.mxu0 %v1666
        %v1954 = vpop.f32.mrf.mxu0
        %v1955 = vadd.f32 %v1506, %v1954
        %v1956 = vpop.f32.mrf.mxu0
        %v1957 = vadd.f32 %v1506, %v1956
        %1958 = vmatmul.bf16.gmra.mxu0 %v1669
        %v1959 = vpop.f32.mrf.mxu0
        %v1960 = vadd.f32 %v1506, %v1959
        %v1961 = vpop.f32.mrf.mxu0
        %v1962 = vadd.f32 %v1506, %v1961
        %1963 = vmatmul.bf16.gmra.mxu0 %v1672
        %v1964 = vpop.f32.mrf.mxu0
        %v1965 = vadd.f32 %v1506, %v1964
        %v1966 = vpop.f32.mrf.mxu0
        %v1967 = vadd.f32 %v1506, %v1966
        %1968 = vmatmul.bf16.gmra.mxu0 %v1675
        %v1969 = vpop.f32.mrf.mxu0
        %v1970 = vadd.f32 %v1506, %v1969
        %v1971 = vpop.f32.mrf.mxu0
        %v1972 = vadd.f32 %v1506, %v1971
        %1973 = vmatmul.bf16.gmra.mxu0 %v1678
        %v1974 = vpop.f32.mrf.mxu0
        %v1975 = vadd.f32 %v1506, %v1974
        %v1976 = vpop.f32.mrf.mxu0
        %v1977 = vadd.f32 %v1506, %v1976
        %1978 = vmatmul.bf16.gmra.mxu0 %v1681
        %v1979 = vpop.f32.mrf.mxu0
        %v1980 = vadd.f32 %v1506, %v1979
        %v1981 = vpop.f32.mrf.mxu0
        %v1982 = vadd.f32 %v1506, %v1981
        %1983 = vmatmul.bf16.gmra.mxu0 %v1684
        %v1984 = vpop.f32.mrf.mxu0
        %v1985 = vadd.f32 %v1506, %v1984
        %v1986 = vpop.f32.mrf.mxu0
        %v1987 = vadd.f32 %v1506, %v1986
        %1988 = vmatmul.bf16.gmra.mxu0 %v1687
        %v1989 = vpop.f32.mrf.mxu0
        %v1990 = vadd.f32 %v1506, %v1989
        %v1991 = vpop.f32.mrf.mxu0
        %v1992 = vadd.f32 %v1506, %v1991
        %1993 = vmatmul.bf16.gmra.mxu0 %v1690
        %v1994 = vpop.f32.mrf.mxu0
        %v1995 = vadd.f32 %v1506, %v1994
        %v1996 = vpop.f32.mrf.mxu0
        %v1997 = vadd.f32 %v1506, %v1996
        %1998 = vmatmul.bf16.gmra.mxu0 %v1693
        %v1999 = vpop.f32.mrf.mxu0
        %v2000 = vadd.f32 %v1506, %v1999
        %v2001 = vpop.f32.mrf.mxu0
        %v2002 = vadd.f32 %v1506, %v2001
        %2003 = vmatmul.bf16.gmra.mxu0 %v1696
        %v2004 = vpop.f32.mrf.mxu0
        %v2005 = vadd.f32 %v1506, %v2004
        %v2006 = vpop.f32.mrf.mxu0
        %v2007 = vadd.f32 %v1506, %v2006
        %2008 = vmatmul.bf16.gmra.mxu0 %v1699
        %v2009 = vpop.f32.mrf.mxu0
        %v2010 = vadd.f32 %v1506, %v2009
        %v2011 = vpop.f32.mrf.mxu0
        %v2012 = vadd.f32 %v1506, %v2011
        %2013 = vmatmul.bf16.gmra.mxu0 %v1702
        %v2014 = vpop.f32.mrf.mxu0
        %v2015 = vadd.f32 %v1506, %v2014
        %v2016 = vpop.f32.mrf.mxu0
        %v2017 = vadd.f32 %v1506, %v2016
        %2018 = vmatmul.bf16.gmra.mxu0 %v1705
        %v2019 = vpop.f32.mrf.mxu0
        %v2020 = vadd.f32 %v1506, %v2019
        %v2021 = vpop.f32.mrf.mxu0
        %v2022 = vadd.f32 %v1506, %v2021
        %2023 = vmatmul.bf16.gmra.mxu0 %v1708
        %v2024 = vpop.f32.mrf.mxu0
        %v2025 = vadd.f32 %v1506, %v2024
        %v2026 = vpop.f32.mrf.mxu0
        %v2027 = vadd.f32 %v1506, %v2026
        %2028 = vmatmul.bf16.gmra.mxu0 %v1711
        %v2029 = vpop.f32.mrf.mxu0
        %v2030 = vadd.f32 %v1506, %v2029
        %v2031 = vpop.f32.mrf.mxu0
        %v2032 = vadd.f32 %v1506, %v2031
        %2033 = vmatmul.bf16.gmra.mxu0 %v1714
        %v2034 = vpop.f32.mrf.mxu0
        %v2035 = vadd.f32 %v1506, %v2034
        %v2036 = vpop.f32.mrf.mxu0
        %v2037 = vadd.f32 %v1506, %v2036
        %2038 = vmatmul.bf16.gmra.mxu0 %v1717
        %v2039 = vpop.f32.mrf.mxu0
        %v2040 = vadd.f32 %v1506, %v2039
        %v2041 = vpop.f32.mrf.mxu0
        %v2042 = vadd.f32 %v1506, %v2041
        %2043 = vmatmul.bf16.gmra.mxu0 %v1720
        %v2044 = vpop.f32.mrf.mxu0
        %v2045 = vadd.f32 %v1506, %v2044
        %v2046 = vpop.f32.mrf.mxu0
        %v2047 = vadd.f32 %v1506, %v2046
        %2048 = vmatmul.bf16.gmra.mxu0 %v1723
        %v2049 = vpop.f32.mrf.mxu0
        %v2050 = vadd.f32 %v1506, %v2049
        %v2051 = vpop.f32.mrf.mxu0
        %v2052 = vadd.f32 %v1506, %v2051
        %2053 = vdwg.mxu0
        %v2054 = vmax.f32 %v1735, 0.0
        %v2055 = vmax.f32 %v1737, 0.0
        %v2056 = vmax.f32 %v1740, 0.0
        %v2057 = vmax.f32 %v1742, 0.0
        %v2058 = vmax.f32 %v1745, 0.0
        %v2059 = vmax.f32 %v1747, 0.0
        %v2060 = vmax.f32 %v1750, 0.0
        %v2061 = vmax.f32 %v1752, 0.0
        %v2062 = vmax.f32 %v1755, 0.0
        %v2063 = vmax.f32 %v1757, 0.0
        %v2064 = vmax.f32 %v1760, 0.0
        %v2065 = vmax.f32 %v1762, 0.0
        %v2066 = vmax.f32 %v1765, 0.0
        %v2067 = vmax.f32 %v1767, 0.0
        %v2068 = vmax.f32 %v1770, 0.0
        %v2069 = vmax.f32 %v1772, 0.0
        %v2070 = vmax.f32 %v1775, 0.0
        %v2071 = vmax.f32 %v1777, 0.0
        %v2072 = vmax.f32 %v1780, 0.0
        %v2073 = vmax.f32 %v1782, 0.0
        %v2074 = vmax.f32 %v1785, 0.0
        %v2075 = vmax.f32 %v1787, 0.0
        %v2076 = vmax.f32 %v1790, 0.0
        %v2077 = vmax.f32 %v1792, 0.0
        %v2078 = vmax.f32 %v1795, 0.0
        %v2079 = vmax.f32 %v1797, 0.0
        %v2080 = vmax.f32 %v1800, 0.0
        %v2081 = vmax.f32 %v1802, 0.0
        %v2082 = vmax.f32 %v1805, 0.0
        %v2083 = vmax.f32 %v1807, 0.0
        %v2084 = vmax.f32 %v1810, 0.0
        %v2085 = vmax.f32 %v1812, 0.0
        %v2086 = vmax.f32 %v1815, 0.0
        %v2087 = vmax.f32 %v1817, 0.0
        %v2088 = vmax.f32 %v1820, 0.0
        %v2089 = vmax.f32 %v1822, 0.0
        %v2090 = vmax.f32 %v1825, 0.0
        %v2091 = vmax.f32 %v1827, 0.0
        %v2092 = vmax.f32 %v1830, 0.0
        %v2093 = vmax.f32 %v1832, 0.0
        %v2094 = vmax.f32 %v1835, 0.0
        %v2095 = vmax.f32 %v1837, 0.0
        %v2096 = vmax.f32 %v1840, 0.0
        %v2097 = vmax.f32 %v1842, 0.0
        %v2098 = vmax.f32 %v1845, 0.0
        %v2099 = vmax.f32 %v1847, 0.0
        %v2100 = vmax.f32 %v1850, 0.0
        %v2101 = vmax.f32 %v1852, 0.0
        %v2102 = vmax.f32 %v1855, 0.0
        %v2103 = vmax.f32 %v1857, 0.0
        %v2104 = vmax.f32 %v1860, 0.0
        %v2105 = vmax.f32 %v1862, 0.0
        %v2106 = vmax.f32 %v1865, 0.0
        %v2107 = vmax.f32 %v1867, 0.0
        %v2108 = vmax.f32 %v1870, 0.0
        %v2109 = vmax.f32 %v1872, 0.0
        %v2110 = vmax.f32 %v1875, 0.0
        %v2111 = vmax.f32 %v1877, 0.0
        %v2112 = vmax.f32 %v1880, 0.0
        %v2113 = vmax.f32 %v1882, 0.0
        %v2114 = vmax.f32 %v1885, 0.0
        %v2115 = vmax.f32 %v1887, 0.0
        %v2116 = vmax.f32 %v1890, 0.0
        %v2117 = vmax.f32 %v1892, 0.0
        %v2118 = vmax.f32 %v1895, 0.0
        %v2119 = vmax.f32 %v1897, 0.0
        %v2120 = vmax.f32 %v1900, 0.0
        %v2121 = vmax.f32 %v1902, 0.0
        %v2122 = vmax.f32 %v1905, 0.0
        %v2123 = vmax.f32 %v1907, 0.0
        %v2124 = vmax.f32 %v1910, 0.0
        %v2125 = vmax.f32 %v1912, 0.0
        %v2126 = vmax.f32 %v1915, 0.0
        %v2127 = vmax.f32 %v1917, 0.0
        %v2128 = vmax.f32 %v1920, 0.0
        %v2129 = vmax.f32 %v1922, 0.0
        %v2130 = vmax.f32 %v1925, 0.0
        %v2131 = vmax.f32 %v1927, 0.0
        %v2132 = vmax.f32 %v1930, 0.0
        %v2133 = vmax.f32 %v1932, 0.0
        %v2134 = vmax.f32 %v1935, 0.0
        %v2135 = vmax.f32 %v1937, 0.0
        %v2136 = vmax.f32 %v1940, 0.0
        %v2137 = vmax.f32 %v1942, 0.0
        %v2138 = vmax.f32 %v1945, 0.0
        %v2139 = vmax.f32 %v1947, 0.0
        %v2140 = vmax.f32 %v1950, 0.0
        %v2141 = vmax.f32 %v1952, 0.0
        %v2142 = vmax.f32 %v1955, 0.0
        %v2143 = vmax.f32 %v1957, 0.0
        %v2144 = vmax.f32 %v1960, 0.0
        %v2145 = vmax.f32 %v1962, 0.0
        %v2146 = vmax.f32 %v1965, 0.0
        %v2147 = vmax.f32 %v1967, 0.0
        %v2148 = vmax.f32 %v1970, 0.0
        %v2149 = vmax.f32 %v1972, 0.0
        %v2150 = vmax.f32 %v1975, 0.0
        %v2151 = vmax.f32 %v1977, 0.0
        %v2152 = vmax.f32 %v1980, 0.0
        %v2153 = vmax.f32 %v1982, 0.0
        %v2154 = vmax.f32 %v1985, 0.0
        %v2155 = vmax.f32 %v1987, 0.0
        %v2156 = vmax.f32 %v1990, 0.0
        %v2157 = vmax.f32 %v1992, 0.0
        %v2158 = vmax.f32 %v1995, 0.0
        %v2159 = vmax.f32 %v1997, 0.0
        %v2160 = vmax.f32 %v2000, 0.0
        %v2161 = vmax.f32 %v2002, 0.0
        %v2162 = vmax.f32 %v2005, 0.0
        %v2163 = vmax.f32 %v2007, 0.0
        %v2164 = vmax.f32 %v2010, 0.0
        %v2165 = vmax.f32 %v2012, 0.0
        %v2166 = vmax.f32 %v2015, 0.0
        %v2167 = vmax.f32 %v2017, 0.0
        %v2168 = vmax.f32 %v2020, 0.0
        %v2169 = vmax.f32 %v2022, 0.0
        %v2170 = vmax.f32 %v2025, 0.0
        %v2171 = vmax.f32 %v2027, 0.0
        %v2172 = vmax.f32 %v2030, 0.0
        %v2173 = vmax.f32 %v2032, 0.0
        %v2174 = vmax.f32 %v2035, 0.0
        %v2175 = vmax.f32 %v2037, 0.0
        %v2176 = vmax.f32 %v2040, 0.0
        %v2177 = vmax.f32 %v2042, 0.0
        %v2178 = vmax.f32 %v2045, 0.0
        %v2179 = vmax.f32 %v2047, 0.0
        %v2180 = vmax.f32 %v2050, 0.0
        %v2181 = vmax.f32 %v2052, 0.0
        %v2182 = vpack.c.bf16 %v2055, %v2054
        %v2183 = vpack.c.bf16 %v2057, %v2056
        %v2184 = vpack.c.bf16 %v2059, %v2058
        %v2185 = vpack.c.bf16 %v2061, %v2060
        %v2186 = vpack.c.bf16 %v2063, %v2062
        %v2187 = vpack.c.bf16 %v2065, %v2064
        %v2188 = vpack.c.bf16 %v2067, %v2066
        %v2189 = vpack.c.bf16 %v2069, %v2068
        %v2190 = vpack.c.bf16 %v2071, %v2070
        %v2191 = vpack.c.bf16 %v2073, %v2072
        %v2192 = vpack.c.bf16 %v2075, %v2074
        %v2193 = vpack.c.bf16 %v2077, %v2076
        %v2194 = vpack.c.bf16 %v2079, %v2078
        %v2195 = vpack.c.bf16 %v2081, %v2080
        %v2196 = vpack.c.bf16 %v2083, %v2082
        %v2197 = vpack.c.bf16 %v2085, %v2084
        %v2198 = vpack.c.bf16 %v2087, %v2086
        %v2199 = vpack.c.bf16 %v2089, %v2088
        %v2200 = vpack.c.bf16 %v2091, %v2090
        %v2201 = vpack.c.bf16 %v2093, %v2092
        %v2202 = vpack.c.bf16 %v2095, %v2094
        %v2203 = vpack.c.bf16 %v2097, %v2096
        %v2204 = vpack.c.bf16 %v2099, %v2098
        %v2205 = vpack.c.bf16 %v2101, %v2100
        %v2206 = vpack.c.bf16 %v2103, %v2102
        %v2207 = vpack.c.bf16 %v2105, %v2104
        %v2208 = vpack.c.bf16 %v2107, %v2106
        %v2209 = vpack.c.bf16 %v2109, %v2108
        %v2210 = vpack.c.bf16 %v2111, %v2110
        %v2211 = vpack.c.bf16 %v2113, %v2112
        %v2212 = vpack.c.bf16 %v2115, %v2114
        %v2213 = vpack.c.bf16 %v2117, %v2116
        %v2214 = vpack.c.bf16 %v2119, %v2118
        %v2215 = vpack.c.bf16 %v2121, %v2120
        %v2216 = vpack.c.bf16 %v2123, %v2122
        %v2217 = vpack.c.bf16 %v2125, %v2124
        %v2218 = vpack.c.bf16 %v2127, %v2126
        %v2219 = vpack.c.bf16 %v2129, %v2128
        %v2220 = vpack.c.bf16 %v2131, %v2130
        %v2221 = vpack.c.bf16 %v2133, %v2132
        %v2222 = vpack.c.bf16 %v2135, %v2134
        %v2223 = vpack.c.bf16 %v2137, %v2136
        %v2224 = vpack.c.bf16 %v2139, %v2138
        %v2225 = vpack.c.bf16 %v2141, %v2140
        %v2226 = vpack.c.bf16 %v2143, %v2142
        %v2227 = vpack.c.bf16 %v2145, %v2144
        %v2228 = vpack.c.bf16 %v2147, %v2146
        %v2229 = vpack.c.bf16 %v2149, %v2148
        %v2230 = vpack.c.bf16 %v2151, %v2150
        %v2231 = vpack.c.bf16 %v2153, %v2152
        %v2232 = vpack.c.bf16 %v2155, %v2154
        %v2233 = vpack.c.bf16 %v2157, %v2156
        %v2234 = vpack.c.bf16 %v2159, %v2158
        %v2235 = vpack.c.bf16 %v2161, %v2160
        %v2236 = vpack.c.bf16 %v2163, %v2162
        %v2237 = vpack.c.bf16 %v2165, %v2164
        %v2238 = vpack.c.bf16 %v2167, %v2166
        %v2239 = vpack.c.bf16 %v2169, %v2168
        %v2240 = vpack.c.bf16 %v2171, %v2170
        %v2241 = vpack.c.bf16 %v2173, %v2172
        %v2242 = vpack.c.bf16 %v2175, %v2174
        %v2243 = vpack.c.bf16 %v2177, %v2176
        %v2244 = vpack.c.bf16 %v2179, %v2178
        %v2245 = vpack.c.bf16 %v2181, %v2180
        %v2246 = vld [vmem:[%s5] sm:$0xf]
        %v2247 = vld [vmem:[%s5 + $0x4] sm:$0xf]
        %v2248 = vld [vmem:[%s5 + $0x8] sm:$0xf]
        %v2249 = vld [vmem:[%s5 + $0xc] sm:$0xf]
        %v2250 = vld [vmem:[%s5 + $0x10] sm:$0xf]
        %v2251 = vld [vmem:[%s5 + $0x14] sm:$0xf]
        %v2252 = vld [vmem:[%s5 + $0x18] sm:$0xf]
        %v2253 = vld [vmem:[%s5 + $0x1c] sm:$0xf]
        %v2254 = vld [vmem:[%s5 + $0x20] sm:$0xf]
        %v2255 = vld [vmem:[%s5 + $0x24] sm:$0xf]
        %v2256 = vld [vmem:[%s5 + $0x28] sm:$0xf]
        %v2257 = vld [vmem:[%s5 + $0x2c] sm:$0xf]
        %v2258 = vld [vmem:[%s5 + $0x30] sm:$0xf]
        %v2259 = vld [vmem:[%s5 + $0x34] sm:$0xf]
        %v2260 = vld [vmem:[%s5 + $0x38] sm:$0xf]
        %v2261 = vld [vmem:[%s5 + $0x3c] sm:$0xf]
        %v2262 = vld [vmem:[%s6] sm:$0x1]
        %v2264 = vperm.slane %v2262, 0
        %v2282 = vunpack.c.l.b16 %v2246
        %v2283 = vunpack.c.l.b16 %v2247
        %v2284 = vunpack.c.l.b16 %v2248
        %v2285 = vunpack.c.l.b16 %v2249
        %v2286 = vunpack.c.l.b16 %v2250
        %v2287 = vunpack.c.l.b16 %v2251
        %v2288 = vunpack.c.l.b16 %v2252
        %v2289 = vunpack.c.l.b16 %v2253
        %v2290 = vunpack.c.l.b16 %v2254
        %v2291 = vunpack.c.l.b16 %v2255
        %v2292 = vunpack.c.l.b16 %v2256
        %v2293 = vunpack.c.l.b16 %v2257
        %v2294 = vunpack.c.l.b16 %v2258
        %v2295 = vunpack.c.l.b16 %v2259
        %v2296 = vunpack.c.l.b16 %v2260
        %v2297 = vunpack.c.l.b16 %v2261
        %v2298 = vpack.c.b16 %v2283, %v2282
        %v2299 = vpack.c.b16 %v2285, %v2284
        %v2300 = vpack.c.b16 %v2287, %v2286
        %v2301 = vpack.c.b16 %v2289, %v2288
        %v2302 = vpack.c.b16 %v2291, %v2290
        %v2303 = vpack.c.b16 %v2293, %v2292
        %v2304 = vpack.c.b16 %v2295, %v2294
        %v2305 = vpack.c.b16 %v2297, %v2296
        %2314 = vmatpush.bf16.msra.mxu0 %v2305
        %2315 = vmatpush.bf16.msra.mxu0 %v2304
        %2316 = vmatpush.bf16.msra.mxu0 %v2303
        %2317 = vmatpush.bf16.msra.mxu0 %v2302
        %2318 = vmatpush.bf16.msra.mxu0 %v2301
        %2319 = vmatpush.bf16.msra.mxu0 %v2300
        %2320 = vmatpush.bf16.msra.mxu0 %v2299
        %2321 = vmatpush.bf16.msra.mxu0 %v2298
        %2322 = vmatmul.bf16.gmra.mxu0 %v2182
        %v2323 = vpop.f32.mrf.mxu0
        %v2324 = vadd.f32 %v2264, %v2323
        %v2325 = vpop.f32.mrf.mxu0
        %v2326 = vadd.f32 %v2264, %v2325
        %2327 = vmatmul.bf16.gmra.mxu0 %v2183
        %v2328 = vpop.f32.mrf.mxu0
        %v2329 = vadd.f32 %v2264, %v2328
        %v2330 = vpop.f32.mrf.mxu0
        %v2331 = vadd.f32 %v2264, %v2330
        %2332 = vmatmul.bf16.gmra.mxu0 %v2184
        %v2333 = vpop.f32.mrf.mxu0
        %v2334 = vadd.f32 %v2264, %v2333
        %v2335 = vpop.f32.mrf.mxu0
        %v2336 = vadd.f32 %v2264, %v2335
        %2337 = vmatmul.bf16.gmra.mxu0 %v2185
        %v2338 = vpop.f32.mrf.mxu0
        %v2339 = vadd.f32 %v2264, %v2338
        %v2340 = vpop.f32.mrf.mxu0
        %v2341 = vadd.f32 %v2264, %v2340
        %2342 = vmatmul.bf16.gmra.mxu0 %v2186
        %v2343 = vpop.f32.mrf.mxu0
        %v2344 = vadd.f32 %v2264, %v2343
        %v2345 = vpop.f32.mrf.mxu0
        %v2346 = vadd.f32 %v2264, %v2345
        %2347 = vmatmul.bf16.gmra.mxu0 %v2187
        %v2348 = vpop.f32.mrf.mxu0
        %v2349 = vadd.f32 %v2264, %v2348
        %v2350 = vpop.f32.mrf.mxu0
        %v2351 = vadd.f32 %v2264, %v2350
        %2352 = vmatmul.bf16.gmra.mxu0 %v2188
        %v2353 = vpop.f32.mrf.mxu0
        %v2354 = vadd.f32 %v2264, %v2353
        %v2355 = vpop.f32.mrf.mxu0
        %v2356 = vadd.f32 %v2264, %v2355
        %2357 = vmatmul.bf16.gmra.mxu0 %v2189
        %v2358 = vpop.f32.mrf.mxu0
        %v2359 = vadd.f32 %v2264, %v2358
        %v2360 = vpop.f32.mrf.mxu0
        %v2361 = vadd.f32 %v2264, %v2360
        %2362 = vmatmul.bf16.gmra.mxu0 %v2190
        %v2363 = vpop.f32.mrf.mxu0
        %v2364 = vadd.f32 %v2264, %v2363
        %v2365 = vpop.f32.mrf.mxu0
        %v2366 = vadd.f32 %v2264, %v2365
        %2367 = vmatmul.bf16.gmra.mxu0 %v2191
        %v2368 = vpop.f32.mrf.mxu0
        %v2369 = vadd.f32 %v2264, %v2368
        %v2370 = vpop.f32.mrf.mxu0
        %v2371 = vadd.f32 %v2264, %v2370
        %2372 = vmatmul.bf16.gmra.mxu0 %v2192
        %v2373 = vpop.f32.mrf.mxu0
        %v2374 = vadd.f32 %v2264, %v2373
        %v2375 = vpop.f32.mrf.mxu0
        %v2376 = vadd.f32 %v2264, %v2375
        %2377 = vmatmul.bf16.gmra.mxu0 %v2193
        %v2378 = vpop.f32.mrf.mxu0
        %v2379 = vadd.f32 %v2264, %v2378
        %v2380 = vpop.f32.mrf.mxu0
        %v2381 = vadd.f32 %v2264, %v2380
        %2382 = vmatmul.bf16.gmra.mxu0 %v2194
        %v2383 = vpop.f32.mrf.mxu0
        %v2384 = vadd.f32 %v2264, %v2383
        %v2385 = vpop.f32.mrf.mxu0
        %v2386 = vadd.f32 %v2264, %v2385
        %2387 = vmatmul.bf16.gmra.mxu0 %v2195
        %v2388 = vpop.f32.mrf.mxu0
        %v2389 = vadd.f32 %v2264, %v2388
        %v2390 = vpop.f32.mrf.mxu0
        %v2391 = vadd.f32 %v2264, %v2390
        %2392 = vmatmul.bf16.gmra.mxu0 %v2196
        %v2393 = vpop.f32.mrf.mxu0
        %v2394 = vadd.f32 %v2264, %v2393
        %v2395 = vpop.f32.mrf.mxu0
        %v2396 = vadd.f32 %v2264, %v2395
        %2397 = vmatmul.bf16.gmra.mxu0 %v2197
        %v2398 = vpop.f32.mrf.mxu0
        %v2399 = vadd.f32 %v2264, %v2398
        %v2400 = vpop.f32.mrf.mxu0
        %v2401 = vadd.f32 %v2264, %v2400
        %2402 = vmatmul.bf16.gmra.mxu0 %v2198
        %v2403 = vpop.f32.mrf.mxu0
        %v2404 = vadd.f32 %v2264, %v2403
        %v2405 = vpop.f32.mrf.mxu0
        %v2406 = vadd.f32 %v2264, %v2405
        %2407 = vmatmul.bf16.gmra.mxu0 %v2199
        %v2408 = vpop.f32.mrf.mxu0
        %v2409 = vadd.f32 %v2264, %v2408
        %v2410 = vpop.f32.mrf.mxu0
        %v2411 = vadd.f32 %v2264, %v2410
        %2412 = vmatmul.bf16.gmra.mxu0 %v2200
        %v2413 = vpop.f32.mrf.mxu0
        %v2414 = vadd.f32 %v2264, %v2413
        %v2415 = vpop.f32.mrf.mxu0
        %v2416 = vadd.f32 %v2264, %v2415
        %2417 = vmatmul.bf16.gmra.mxu0 %v2201
        %v2418 = vpop.f32.mrf.mxu0
        %v2419 = vadd.f32 %v2264, %v2418
        %v2420 = vpop.f32.mrf.mxu0
        %v2421 = vadd.f32 %v2264, %v2420
        %2422 = vmatmul.bf16.gmra.mxu0 %v2202
        %v2423 = vpop.f32.mrf.mxu0
        %v2424 = vadd.f32 %v2264, %v2423
        %v2425 = vpop.f32.mrf.mxu0
        %v2426 = vadd.f32 %v2264, %v2425
        %2427 = vmatmul.bf16.gmra.mxu0 %v2203
        %v2428 = vpop.f32.mrf.mxu0
        %v2429 = vadd.f32 %v2264, %v2428
        %v2430 = vpop.f32.mrf.mxu0
        %v2431 = vadd.f32 %v2264, %v2430
        %2432 = vmatmul.bf16.gmra.mxu0 %v2204
        %v2433 = vpop.f32.mrf.mxu0
        %v2434 = vadd.f32 %v2264, %v2433
        %v2435 = vpop.f32.mrf.mxu0
        %v2436 = vadd.f32 %v2264, %v2435
        %2437 = vmatmul.bf16.gmra.mxu0 %v2205
        %v2438 = vpop.f32.mrf.mxu0
        %v2439 = vadd.f32 %v2264, %v2438
        %v2440 = vpop.f32.mrf.mxu0
        %v2441 = vadd.f32 %v2264, %v2440
        %2442 = vmatmul.bf16.gmra.mxu0 %v2206
        %v2443 = vpop.f32.mrf.mxu0
        %v2444 = vadd.f32 %v2264, %v2443
        %v2445 = vpop.f32.mrf.mxu0
        %v2446 = vadd.f32 %v2264, %v2445
        %2447 = vmatmul.bf16.gmra.mxu0 %v2207
        %v2448 = vpop.f32.mrf.mxu0
        %v2449 = vadd.f32 %v2264, %v2448
        %v2450 = vpop.f32.mrf.mxu0
        %v2451 = vadd.f32 %v2264, %v2450
        %2452 = vmatmul.bf16.gmra.mxu0 %v2208
        %v2453 = vpop.f32.mrf.mxu0
        %v2454 = vadd.f32 %v2264, %v2453
        %v2455 = vpop.f32.mrf.mxu0
        %v2456 = vadd.f32 %v2264, %v2455
        %2457 = vmatmul.bf16.gmra.mxu0 %v2209
        %v2458 = vpop.f32.mrf.mxu0
        %v2459 = vadd.f32 %v2264, %v2458
        %v2460 = vpop.f32.mrf.mxu0
        %v2461 = vadd.f32 %v2264, %v2460
        %2462 = vmatmul.bf16.gmra.mxu0 %v2210
        %v2463 = vpop.f32.mrf.mxu0
        %v2464 = vadd.f32 %v2264, %v2463
        %v2465 = vpop.f32.mrf.mxu0
        %v2466 = vadd.f32 %v2264, %v2465
        %2467 = vmatmul.bf16.gmra.mxu0 %v2211
        %v2468 = vpop.f32.mrf.mxu0
        %v2469 = vadd.f32 %v2264, %v2468
        %v2470 = vpop.f32.mrf.mxu0
        %v2471 = vadd.f32 %v2264, %v2470
        %2472 = vmatmul.bf16.gmra.mxu0 %v2212
        %v2473 = vpop.f32.mrf.mxu0
        %v2474 = vadd.f32 %v2264, %v2473
        %v2475 = vpop.f32.mrf.mxu0
        %v2476 = vadd.f32 %v2264, %v2475
        %2477 = vmatmul.bf16.gmra.mxu0 %v2213
        %v2478 = vpop.f32.mrf.mxu0
        %v2479 = vadd.f32 %v2264, %v2478
        %v2480 = vpop.f32.mrf.mxu0
        %v2481 = vadd.f32 %v2264, %v2480
        %2482 = vmatmul.bf16.gmra.mxu0 %v2214
        %v2483 = vpop.f32.mrf.mxu0
        %v2484 = vadd.f32 %v2264, %v2483
        %v2485 = vpop.f32.mrf.mxu0
        %v2486 = vadd.f32 %v2264, %v2485
        %2487 = vmatmul.bf16.gmra.mxu0 %v2215
        %v2488 = vpop.f32.mrf.mxu0
        %v2489 = vadd.f32 %v2264, %v2488
        %v2490 = vpop.f32.mrf.mxu0
        %v2491 = vadd.f32 %v2264, %v2490
        %2492 = vmatmul.bf16.gmra.mxu0 %v2216
        %v2493 = vpop.f32.mrf.mxu0
        %v2494 = vadd.f32 %v2264, %v2493
        %v2495 = vpop.f32.mrf.mxu0
        %v2496 = vadd.f32 %v2264, %v2495
        %2497 = vmatmul.bf16.gmra.mxu0 %v2217
        %v2498 = vpop.f32.mrf.mxu0
        %v2499 = vadd.f32 %v2264, %v2498
        %v2500 = vpop.f32.mrf.mxu0
        %v2501 = vadd.f32 %v2264, %v2500
        %2502 = vmatmul.bf16.gmra.mxu0 %v2218
        %v2503 = vpop.f32.mrf.mxu0
        %v2504 = vadd.f32 %v2264, %v2503
        %v2505 = vpop.f32.mrf.mxu0
        %v2506 = vadd.f32 %v2264, %v2505
        %2507 = vmatmul.bf16.gmra.mxu0 %v2219
        %v2508 = vpop.f32.mrf.mxu0
        %v2509 = vadd.f32 %v2264, %v2508
        %v2510 = vpop.f32.mrf.mxu0
        %v2511 = vadd.f32 %v2264, %v2510
        %2512 = vmatmul.bf16.gmra.mxu0 %v2220
        %v2513 = vpop.f32.mrf.mxu0
        %v2514 = vadd.f32 %v2264, %v2513
        %v2515 = vpop.f32.mrf.mxu0
        %v2516 = vadd.f32 %v2264, %v2515
        %2517 = vmatmul.bf16.gmra.mxu0 %v2221
        %v2518 = vpop.f32.mrf.mxu0
        %v2519 = vadd.f32 %v2264, %v2518
        %v2520 = vpop.f32.mrf.mxu0
        %v2521 = vadd.f32 %v2264, %v2520
        %2522 = vmatmul.bf16.gmra.mxu0 %v2222
        %v2523 = vpop.f32.mrf.mxu0
        %v2524 = vadd.f32 %v2264, %v2523
        %v2525 = vpop.f32.mrf.mxu0
        %v2526 = vadd.f32 %v2264, %v2525
        %2527 = vmatmul.bf16.gmra.mxu0 %v2223
        %v2528 = vpop.f32.mrf.mxu0
        %v2529 = vadd.f32 %v2264, %v2528
        %v2530 = vpop.f32.mrf.mxu0
        %v2531 = vadd.f32 %v2264, %v2530
        %2532 = vmatmul.bf16.gmra.mxu0 %v2224
        %v2533 = vpop.f32.mrf.mxu0
        %v2534 = vadd.f32 %v2264, %v2533
        %v2535 = vpop.f32.mrf.mxu0
        %v2536 = vadd.f32 %v2264, %v2535
        %2537 = vmatmul.bf16.gmra.mxu0 %v2225
        %v2538 = vpop.f32.mrf.mxu0
        %v2539 = vadd.f32 %v2264, %v2538
        %v2540 = vpop.f32.mrf.mxu0
        %v2541 = vadd.f32 %v2264, %v2540
        %2542 = vmatmul.bf16.gmra.mxu0 %v2226
        %v2543 = vpop.f32.mrf.mxu0
        %v2544 = vadd.f32 %v2264, %v2543
        %v2545 = vpop.f32.mrf.mxu0
        %v2546 = vadd.f32 %v2264, %v2545
        %2547 = vmatmul.bf16.gmra.mxu0 %v2227
        %v2548 = vpop.f32.mrf.mxu0
        %v2549 = vadd.f32 %v2264, %v2548
        %v2550 = vpop.f32.mrf.mxu0
        %v2551 = vadd.f32 %v2264, %v2550
        %2552 = vmatmul.bf16.gmra.mxu0 %v2228
        %v2553 = vpop.f32.mrf.mxu0
        %v2554 = vadd.f32 %v2264, %v2553
        %v2555 = vpop.f32.mrf.mxu0
        %v2556 = vadd.f32 %v2264, %v2555
        %2557 = vmatmul.bf16.gmra.mxu0 %v2229
        %v2558 = vpop.f32.mrf.mxu0
        %v2559 = vadd.f32 %v2264, %v2558
        %v2560 = vpop.f32.mrf.mxu0
        %v2561 = vadd.f32 %v2264, %v2560
        %2562 = vmatmul.bf16.gmra.mxu0 %v2230
        %v2563 = vpop.f32.mrf.mxu0
        %v2564 = vadd.f32 %v2264, %v2563
        %v2565 = vpop.f32.mrf.mxu0
        %v2566 = vadd.f32 %v2264, %v2565
        %2567 = vmatmul.bf16.gmra.mxu0 %v2231
        %v2568 = vpop.f32.mrf.mxu0
        %v2569 = vadd.f32 %v2264, %v2568
        %v2570 = vpop.f32.mrf.mxu0
        %v2571 = vadd.f32 %v2264, %v2570
        %2572 = vmatmul.bf16.gmra.mxu0 %v2232
        %v2573 = vpop.f32.mrf.mxu0
        %v2574 = vadd.f32 %v2264, %v2573
        %v2575 = vpop.f32.mrf.mxu0
        %v2576 = vadd.f32 %v2264, %v2575
        %2577 = vmatmul.bf16.gmra.mxu0 %v2233
        %v2578 = vpop.f32.mrf.mxu0
        %v2579 = vadd.f32 %v2264, %v2578
        %v2580 = vpop.f32.mrf.mxu0
        %v2581 = vadd.f32 %v2264, %v2580
        %2582 = vmatmul.bf16.gmra.mxu0 %v2234
        %v2583 = vpop.f32.mrf.mxu0
        %v2584 = vadd.f32 %v2264, %v2583
        %v2585 = vpop.f32.mrf.mxu0
        %v2586 = vadd.f32 %v2264, %v2585
        %2587 = vmatmul.bf16.gmra.mxu0 %v2235
        %v2588 = vpop.f32.mrf.mxu0
        %v2589 = vadd.f32 %v2264, %v2588
        %v2590 = vpop.f32.mrf.mxu0
        %v2591 = vadd.f32 %v2264, %v2590
        %2592 = vmatmul.bf16.gmra.mxu0 %v2236
        %v2593 = vpop.f32.mrf.mxu0
        %v2594 = vadd.f32 %v2264, %v2593
        %v2595 = vpop.f32.mrf.mxu0
        %v2596 = vadd.f32 %v2264, %v2595
        %2597 = vmatmul.bf16.gmra.mxu0 %v2237
        %v2598 = vpop.f32.mrf.mxu0
        %v2599 = vadd.f32 %v2264, %v2598
        %v2600 = vpop.f32.mrf.mxu0
        %v2601 = vadd.f32 %v2264, %v2600
        %2602 = vmatmul.bf16.gmra.mxu0 %v2238
        %v2603 = vpop.f32.mrf.mxu0
        %v2604 = vadd.f32 %v2264, %v2603
        %v2605 = vpop.f32.mrf.mxu0
        %v2606 = vadd.f32 %v2264, %v2605
        %2607 = vmatmul.bf16.gmra.mxu0 %v2239
        %v2608 = vpop.f32.mrf.mxu0
        %v2609 = vadd.f32 %v2264, %v2608
        %v2610 = vpop.f32.mrf.mxu0
        %v2611 = vadd.f32 %v2264, %v2610
        %2612 = vmatmul.bf16.gmra.mxu0 %v2240
        %v2613 = vpop.f32.mrf.mxu0
        %v2614 = vadd.f32 %v2264, %v2613
        %v2615 = vpop.f32.mrf.mxu0
        %v2616 = vadd.f32 %v2264, %v2615
        %2617 = vmatmul.bf16.gmra.mxu0 %v2241
        %v2618 = vpop.f32.mrf.mxu0
        %v2619 = vadd.f32 %v2264, %v2618
        %v2620 = vpop.f32.mrf.mxu0
        %v2621 = vadd.f32 %v2264, %v2620
        %2622 = vmatmul.bf16.gmra.mxu0 %v2242
        %v2623 = vpop.f32.mrf.mxu0
        %v2624 = vadd.f32 %v2264, %v2623
        %v2625 = vpop.f32.mrf.mxu0
        %v2626 = vadd.f32 %v2264, %v2625
        %2627 = vmatmul.bf16.gmra.mxu0 %v2243
        %v2628 = vpop.f32.mrf.mxu0
        %v2629 = vadd.f32 %v2264, %v2628
        %v2630 = vpop.f32.mrf.mxu0
        %v2631 = vadd.f32 %v2264, %v2630
        %2632 = vmatmul.bf16.gmra.mxu0 %v2244
        %v2633 = vpop.f32.mrf.mxu0
        %v2634 = vadd.f32 %v2264, %v2633
        %v2635 = vpop.f32.mrf.mxu0
        %v2636 = vadd.f32 %v2264, %v2635
        %2637 = vmatmul.bf16.gmra.mxu0 %v2245
        %v2638 = vpop.f32.mrf.mxu0
        %v2639 = vadd.f32 %v2264, %v2638
        %v2640 = vpop.f32.mrf.mxu0
        %v2641 = vadd.f32 %v2264, %v2640
        %2642 = vdwg.mxu0
        %v2643 = vmax.f32 %v2324, %v2326
        %v2644 = vmax.f32 %v2643, %v2329
        %v2645 = vmax.f32 %v2644, %v2331
        %v2646 = vmax.f32 %v2645, %v2334
        %v2647 = vmax.f32 %v2646, %v2336
        %v2648 = vmax.f32 %v2647, %v2339
        %v2649 = vmax.f32 %v2648, %v2341
        %v2650 = vmax.f32 %v2649, %v2344
        %v2651 = vmax.f32 %v2650, %v2346
        %v2652 = vmax.f32 %v2651, %v2349
        %v2653 = vmax.f32 %v2652, %v2351
        %v2654 = vmax.f32 %v2653, %v2354
        %v2655 = vmax.f32 %v2654, %v2356
        %v2656 = vmax.f32 %v2655, %v2359
        %v2657 = vmax.f32 %v2656, %v2361
        %v2658 = vrot.slane %v2657, 4
        %v2659 = vmax.f32 %v2657, %v2658
        %v2660 = vrot.slane %v2659, 2
        %v2661 = vmax.f32 %v2659, %v2660
        %v2662 = vrot.slane %v2661, 1
        %v2663 = vmax.f32 %v2661, %v2662
        %v2664 = vmax.f32 %v2364, %v2366
        %v2665 = vmax.f32 %v2664, %v2369
        %v2666 = vmax.f32 %v2665, %v2371
        %v2667 = vmax.f32 %v2666, %v2374
        %v2668 = vmax.f32 %v2667, %v2376
        %v2669 = vmax.f32 %v2668, %v2379
        %v2670 = vmax.f32 %v2669, %v2381
        %v2671 = vmax.f32 %v2670, %v2384
        %v2672 = vmax.f32 %v2671, %v2386
        %v2673 = vmax.f32 %v2672, %v2389
        %v2674 = vmax.f32 %v2673, %v2391
        %v2675 = vmax.f32 %v2674, %v2394
        %v2676 = vmax.f32 %v2675, %v2396
        %v2677 = vmax.f32 %v2676, %v2399
        %v2678 = vmax.f32 %v2677, %v2401
        %v2679 = vrot.slane %v2678, 4
        %v2680 = vmax.f32 %v2678, %v2679
        %v2681 = vrot.slane %v2680, 2
        %v2682 = vmax.f32 %v2680, %v2681
        %v2683 = vrot.slane %v2682, 1
        %v2684 = vmax.f32 %v2682, %v2683
        %v2685 = vmax.f32 %v2404, %v2406
        %v2686 = vmax.f32 %v2685, %v2409
        %v2687 = vmax.f32 %v2686, %v2411
        %v2688 = vmax.f32 %v2687, %v2414
        %v2689 = vmax.f32 %v2688, %v2416
        %v2690 = vmax.f32 %v2689, %v2419
        %v2691 = vmax.f32 %v2690, %v2421
        %v2692 = vmax.f32 %v2691, %v2424
        %v2693 = vmax.f32 %v2692, %v2426
        %v2694 = vmax.f32 %v2693, %v2429
        %v2695 = vmax.f32 %v2694, %v2431
        %v2696 = vmax.f32 %v2695, %v2434
        %v2697 = vmax.f32 %v2696, %v2436
        %v2698 = vmax.f32 %v2697, %v2439
        %v2699 = vmax.f32 %v2698, %v2441
        %v2700 = vrot.slane %v2699, 4
        %v2701 = vmax.f32 %v2699, %v2700
        %v2702 = vrot.slane %v2701, 2
        %v2703 = vmax.f32 %v2701, %v2702
        %v2704 = vrot.slane %v2703, 1
        %v2705 = vmax.f32 %v2703, %v2704
        %v2706 = vmax.f32 %v2444, %v2446
        %v2707 = vmax.f32 %v2706, %v2449
        %v2708 = vmax.f32 %v2707, %v2451
        %v2709 = vmax.f32 %v2708, %v2454
        %v2710 = vmax.f32 %v2709, %v2456
        %v2711 = vmax.f32 %v2710, %v2459
        %v2712 = vmax.f32 %v2711, %v2461
        %v2713 = vmax.f32 %v2712, %v2464
        %v2714 = vmax.f32 %v2713, %v2466
        %v2715 = vmax.f32 %v2714, %v2469
        %v2716 = vmax.f32 %v2715, %v2471
        %v2717 = vmax.f32 %v2716, %v2474
        %v2718 = vmax.f32 %v2717, %v2476
        %v2719 = vmax.f32 %v2718, %v2479
        %v2720 = vmax.f32 %v2719, %v2481
        %v2721 = vrot.slane %v2720, 4
        %v2722 = vmax.f32 %v2720, %v2721
        %v2723 = vrot.slane %v2722, 2
        %v2724 = vmax.f32 %v2722, %v2723
        %v2725 = vrot.slane %v2724, 1
        %v2726 = vmax.f32 %v2724, %v2725
        %v2727 = vmax.f32 %v2484, %v2486
        %v2728 = vmax.f32 %v2727, %v2489
        %v2729 = vmax.f32 %v2728, %v2491
        %v2730 = vmax.f32 %v2729, %v2494
        %v2731 = vmax.f32 %v2730, %v2496
        %v2732 = vmax.f32 %v2731, %v2499
        %v2733 = vmax.f32 %v2732, %v2501
        %v2734 = vmax.f32 %v2733, %v2504
        %v2735 = vmax.f32 %v2734, %v2506
        %v2736 = vmax.f32 %v2735, %v2509
        %v2737 = vmax.f32 %v2736, %v2511
        %v2738 = vmax.f32 %v2737, %v2514
        %v2739 = vmax.f32 %v2738, %v2516
        %v2740 = vmax.f32 %v2739, %v2519
        %v2741 = vmax.f32 %v2740, %v2521
        %v2742 = vrot.slane %v2741, 4
        %v2743 = vmax.f32 %v2741, %v2742
        %v2744 = vrot.slane %v2743, 2
        %v2745 = vmax.f32 %v2743, %v2744
        %v2746 = vrot.slane %v2745, 1
        %v2747 = vmax.f32 %v2745, %v2746
        %v2748 = vmax.f32 %v2524, %v2526
        %v2749 = vmax.f32 %v2748, %v2529
        %v2750 = vmax.f32 %v2749, %v2531
        %v2751 = vmax.f32 %v2750, %v2534
        %v2752 = vmax.f32 %v2751, %v2536
        %v2753 = vmax.f32 %v2752, %v2539
        %v2754 = vmax.f32 %v2753, %v2541
        %v2755 = vmax.f32 %v2754, %v2544
        %v2756 = vmax.f32 %v2755, %v2546
        %v2757 = vmax.f32 %v2756, %v2549
        %v2758 = vmax.f32 %v2757, %v2551
        %v2759 = vmax.f32 %v2758, %v2554
        %v2760 = vmax.f32 %v2759, %v2556
        %v2761 = vmax.f32 %v2760, %v2559
        %v2762 = vmax.f32 %v2761, %v2561
        %v2763 = vrot.slane %v2762, 4
        %v2764 = vmax.f32 %v2762, %v2763
        %v2765 = vrot.slane %v2764, 2
        %v2766 = vmax.f32 %v2764, %v2765
        %v2767 = vrot.slane %v2766, 1
        %v2768 = vmax.f32 %v2766, %v2767
        %v2769 = vmax.f32 %v2564, %v2566
        %v2770 = vmax.f32 %v2769, %v2569
        %v2771 = vmax.f32 %v2770, %v2571
        %v2772 = vmax.f32 %v2771, %v2574
        %v2773 = vmax.f32 %v2772, %v2576
        %v2774 = vmax.f32 %v2773, %v2579
        %v2775 = vmax.f32 %v2774, %v2581
        %v2776 = vmax.f32 %v2775, %v2584
        %v2777 = vmax.f32 %v2776, %v2586
        %v2778 = vmax.f32 %v2777, %v2589
        %v2779 = vmax.f32 %v2778, %v2591
        %v2780 = vmax.f32 %v2779, %v2594
        %v2781 = vmax.f32 %v2780, %v2596
        %v2782 = vmax.f32 %v2781, %v2599
        %v2783 = vmax.f32 %v2782, %v2601
        %v2784 = vrot.slane %v2783, 4
        %v2785 = vmax.f32 %v2783, %v2784
        %v2786 = vrot.slane %v2785, 2
        %v2787 = vmax.f32 %v2785, %v2786
        %v2788 = vrot.slane %v2787, 1
        %v2789 = vmax.f32 %v2787, %v2788
        %v2790 = vmax.f32 %v2604, %v2606
        %v2791 = vmax.f32 %v2790, %v2609
        %v2792 = vmax.f32 %v2791, %v2611
        %v2793 = vmax.f32 %v2792, %v2614
        %v2794 = vmax.f32 %v2793, %v2616
        %v2795 = vmax.f32 %v2794, %v2619
        %v2796 = vmax.f32 %v2795, %v2621
        %v2797 = vmax.f32 %v2796, %v2624
        %v2798 = vmax.f32 %v2797, %v2626
        %v2799 = vmax.f32 %v2798, %v2629
        %v2800 = vmax.f32 %v2799, %v2631
        %v2801 = vmax.f32 %v2800, %v2634
        %v2802 = vmax.f32 %v2801, %v2636
        %v2803 = vmax.f32 %v2802, %v2639
        %v2804 = vmax.f32 %v2803, %v2641
        %v2805 = vrot.slane %v2804, 4
        %v2806 = vmax.f32 %v2804, %v2805
        %v2807 = vrot.slane %v2806, 2
        %v2808 = vmax.f32 %v2806, %v2807
        %v2809 = vrot.slane %v2808, 1
        %v2810 = vmax.f32 %v2808, %v2809
        %vm2819 = vcmask 1041409
        %v2820 = vsel %vm2819, %v2684, %v2663
        %vm2821 = vcmask 1042434
        %v2822 = vsel %vm2821, %v2705, %v2820
        %vm2823 = vcmask 1043459
        %v2824 = vsel %vm2823, %v2726, %v2822
        %vm2825 = vcmask 1044484
        %v2826 = vsel %vm2825, %v2747, %v2824
        %vm2827 = vcmask 1045509
        %v2828 = vsel %vm2827, %v2768, %v2826
        %vm2829 = vcmask 1046534
        %v2830 = vsel %vm2829, %v2789, %v2828
        %vm2831 = vcmask 1047559
        %v2832 = vsel %vm2831, %v2810, %v2830
        %2834 = vst [vmem:[%s516] sm:$0xff] %v2832
        %v2835 = vpack.c.bf16 %v2663, %v2663
        %v2836 = vpack.c.bf16 %v2684, %v2684
        %v2837 = vpack.c.bf16 %v2705, %v2705
        %v2838 = vpack.c.bf16 %v2726, %v2726
        %v2839 = vpack.c.bf16 %v2747, %v2747
        %v2840 = vpack.c.bf16 %v2768, %v2768
        %v2841 = vpack.c.bf16 %v2789, %v2789
        %v2842 = vpack.c.bf16 %v2810, %v2810
        %v2843 = vld [vmem:[%s7] sm:$0xff]
        %v2844 = vld [vmem:[%s7 + $0x8] sm:$0xff]
        %v2845 = vld [vmem:[%s7 + $0x10] sm:$0xff]
        %v2846 = vld [vmem:[%s7 + $0x18] sm:$0xff]
        %v2847 = vld [vmem:[%s7 + $0x20] sm:$0xff]
        %v2848 = vld [vmem:[%s7 + $0x28] sm:$0xff]
        %v2849 = vld [vmem:[%s7 + $0x30] sm:$0xff]
        %v2850 = vld [vmem:[%s7 + $0x38] sm:$0xff]
        %v2851 = vld [vmem:[%s7 + $0x40] sm:$0xff]
        %v2852 = vld [vmem:[%s7 + $0x48] sm:$0xff]
        %v2853 = vld [vmem:[%s7 + $0x50] sm:$0xff]
        %v2854 = vld [vmem:[%s7 + $0x58] sm:$0xff]
        %v2855 = vld [vmem:[%s7 + $0x60] sm:$0xff]
        %v2856 = vld [vmem:[%s7 + $0x68] sm:$0xff]
        %v2857 = vld [vmem:[%s7 + $0x70] sm:$0xff]
        %v2858 = vld [vmem:[%s7 + $0x78] sm:$0xff]
        %v2867 = vunpack.c.l.b16 %v2835
        %v2868 = vunpack.c.l.b16 %v2836
        %v2869 = vunpack.c.l.b16 %v2837
        %v2870 = vunpack.c.l.b16 %v2838
        %v2871 = vunpack.c.l.b16 %v2839
        %v2872 = vunpack.c.l.b16 %v2840
        %v2873 = vunpack.c.l.b16 %v2841
        %v2874 = vunpack.c.l.b16 %v2842
        %v2875 = vsel %vm2819, %v2868, %v2867
        %v2876 = vsel %vm2821, %v2869, %v2875
        %v2877 = vsel %vm2823, %v2870, %v2876
        %v2878 = vsel %vm2825, %v2871, %v2877
        %v2879 = vsel %vm2827, %v2872, %v2878
        %v2880 = vsel %vm2829, %v2873, %v2879
        %v2881 = vsel %vm2831, %v2874, %v2880
        %v2882 = vpack.c.b16 %v2881, %v2881
        %v2900 = vunpack.c.l.b16 %v2843
        %v2901 = vunpack.c.h.b16 %v2843
        %v2902 = vunpack.c.l.b16 %v2844
        %v2903 = vunpack.c.h.b16 %v2844
        %v2904 = vunpack.c.l.b16 %v2845
        %v2905 = vunpack.c.h.b16 %v2845
        %v2906 = vunpack.c.l.b16 %v2846
        %v2907 = vunpack.c.h.b16 %v2846
        %v2908 = vunpack.c.l.b16 %v2847
        %v2909 = vunpack.c.h.b16 %v2847
        %v2910 = vunpack.c.l.b16 %v2848
        %v2911 = vunpack.c.h.b16 %v2848
        %v2912 = vunpack.c.l.b16 %v2849
        %v2913 = vunpack.c.h.b16 %v2849
        %v2914 = vunpack.c.l.b16 %v2850
        %v2915 = vunpack.c.h.b16 %v2850
        %v2916 = vunpack.c.l.b16 %v2851
        %v2917 = vunpack.c.h.b16 %v2851
        %v2918 = vunpack.c.l.b16 %v2852
        %v2919 = vunpack.c.h.b16 %v2852
        %v2920 = vunpack.c.l.b16 %v2853
        %v2921 = vunpack.c.h.b16 %v2853
        %v2922 = vunpack.c.l.b16 %v2854
        %v2923 = vunpack.c.h.b16 %v2854
        %v2924 = vunpack.c.l.b16 %v2855
        %v2925 = vunpack.c.h.b16 %v2855
        %v2926 = vunpack.c.l.b16 %v2856
        %v2927 = vunpack.c.h.b16 %v2856
        %v2928 = vunpack.c.l.b16 %v2857
        %v2929 = vunpack.c.h.b16 %v2857
        %v2930 = vunpack.c.l.b16 %v2858
        %v2931 = vunpack.c.h.b16 %v2858
        %v2932 = vpack.c.b16 %v2902, %v2900
        %v2933 = vpack.c.b16 %v2903, %v2901
        %v2934 = vpack.c.b16 %v2906, %v2904
        %v2935 = vpack.c.b16 %v2907, %v2905
        %v2936 = vpack.c.b16 %v2910, %v2908
        %v2937 = vpack.c.b16 %v2911, %v2909
        %v2938 = vpack.c.b16 %v2914, %v2912
        %v2939 = vpack.c.b16 %v2915, %v2913
        %v2940 = vpack.c.b16 %v2918, %v2916
        %v2941 = vpack.c.b16 %v2919, %v2917
        %v2942 = vpack.c.b16 %v2922, %v2920
        %v2943 = vpack.c.b16 %v2923, %v2921
        %v2944 = vpack.c.b16 %v2926, %v2924
        %v2945 = vpack.c.b16 %v2927, %v2925
        %v2946 = vpack.c.b16 %v2930, %v2928
        %v2947 = vpack.c.b16 %v2931, %v2929
        %2964 = vmatpush.bf16.msra.mxu0 %v2946
        %2965 = vmatpush.bf16.msra.mxu0 %v2944
        %2966 = vmatpush.bf16.msra.mxu0 %v2942
        %2967 = vmatpush.bf16.msra.mxu0 %v2940
        %2968 = vmatpush.bf16.msra.mxu0 %v2938
        %2969 = vmatpush.bf16.msra.mxu0 %v2936
        %2970 = vmatpush.bf16.msra.mxu0 %v2934
        %2971 = vmatpush.bf16.msra.mxu0 %v2932
        %2972 = vmatmul.bf16.gmra.mxu0 %v2882
        %v2973 = vpop.f32.mrf.mxu0
        %v2974 = vadd.f32 0.0, %v2973
        %v2975 = vpop.f32.mrf.mxu0
        %2976 = vdwg.mxu0
        %2977 = vmatpush.bf16.msra.mxu0 %v2947
        %2978 = vmatpush.bf16.msra.mxu0 %v2945
        %2979 = vmatpush.bf16.msra.mxu0 %v2943
        %2980 = vmatpush.bf16.msra.mxu0 %v2941
        %2981 = vmatpush.bf16.msra.mxu0 %v2939
        %2982 = vmatpush.bf16.msra.mxu0 %v2937
        %2983 = vmatpush.bf16.msra.mxu0 %v2935
        %2984 = vmatpush.bf16.msra.mxu0 %v2933
        %2985 = vmatmul.bf16.gmra.mxu0 %v2882
        %v2986 = vpop.f32.mrf.mxu0
        %v2987 = vadd.f32 0.0, %v2986
        %v2988 = vpop.f32.mrf.mxu0
        %2989 = vdwg.mxu0
        %v2990 = vld [vmem:[%s8] sm:$0x3]
        %v2992 = vperm.slane %v2990, 0
        %v2993 = vperm.slane %v2990, 1
        %v2996 = vmul.f32 %v2974, %v2992
        %v2997 = vmul.f32 %v2987, %v2993
        %v2998 = vld [vmem:[%s9] sm:$0x3]
        %v3000 = vperm.slane %v2998, 0
        %v3001 = vperm.slane %v2998, 1
        %v3004 = vadd.f32 %v2996, %v3000
        %v3005 = vadd.f32 %v2997, %v3001
        %v3006 = vmax.f32 %v3004, 0.0
        %v3007 = vmax.f32 %v3005, 0.0
        %v3008 = vpack.c.bf16 %v3006, %v3006
        %v3009 = vpack.c.bf16 %v3007, %v3007
        %v3010 = vld [vmem:[%s10] sm:$0xff]
        %v3011 = vld [vmem:[%s10 + $0x8] sm:$0xff]
        %v3012 = vld [vmem:[%s10 + $0x10] sm:$0xff]
        %v3013 = vld [vmem:[%s10 + $0x18] sm:$0xff]
        %v3014 = vld [vmem:[%s10 + $0x20] sm:$0xff]
        %v3015 = vld [vmem:[%s10 + $0x28] sm:$0xff]
        %v3016 = vld [vmem:[%s10 + $0x30] sm:$0xff]
        %v3017 = vld [vmem:[%s10 + $0x38] sm:$0xff]
        %v3018 = vld [vmem:[%s10 + $0x40] sm:$0xff]
        %v3019 = vld [vmem:[%s10 + $0x48] sm:$0xff]
        %v3020 = vld [vmem:[%s10 + $0x50] sm:$0xff]
        %v3021 = vld [vmem:[%s10 + $0x58] sm:$0xff]
        %v3022 = vld [vmem:[%s10 + $0x60] sm:$0xff]
        %v3023 = vld [vmem:[%s10 + $0x68] sm:$0xff]
        %v3024 = vld [vmem:[%s10 + $0x70] sm:$0xff]
        %v3025 = vld [vmem:[%s10 + $0x78] sm:$0xff]
        %v3026 = vld [vmem:[%s10 + $0x80] sm:$0xff]
        %v3027 = vld [vmem:[%s10 + $0x88] sm:$0xff]
        %v3028 = vld [vmem:[%s10 + $0x90] sm:$0xff]
        %v3029 = vld [vmem:[%s10 + $0x98] sm:$0xff]
        %v3030 = vld [vmem:[%s10 + $0xa0] sm:$0xff]
        %v3031 = vld [vmem:[%s10 + $0xa8] sm:$0xff]
        %v3032 = vld [vmem:[%s10 + $0xb0] sm:$0xff]
        %v3033 = vld [vmem:[%s10 + $0xb8] sm:$0xff]
        %v3034 = vld [vmem:[%s10 + $0xc0] sm:$0xff]
        %v3035 = vld [vmem:[%s10 + $0xc8] sm:$0xff]
        %v3036 = vld [vmem:[%s10 + $0xd0] sm:$0xff]
        %v3037 = vld [vmem:[%s10 + $0xd8] sm:$0xff]
        %v3038 = vld [vmem:[%s10 + $0xe0] sm:$0xff]
        %v3039 = vld [vmem:[%s10 + $0xe8] sm:$0xff]
        %v3040 = vld [vmem:[%s10 + $0xf0] sm:$0xff]
        %v3041 = vld [vmem:[%s10 + $0xf8] sm:$0xff]
        %v3074 = vunpack.c.l.b16 %v3010
        %v3075 = vunpack.c.h.b16 %v3010
        %v3076 = vunpack.c.l.b16 %v3011
        %v3077 = vunpack.c.h.b16 %v3011
        %v3078 = vunpack.c.l.b16 %v3012
        %v3079 = vunpack.c.h.b16 %v3012
        %v3080 = vunpack.c.l.b16 %v3013
        %v3081 = vunpack.c.h.b16 %v3013
        %v3082 = vunpack.c.l.b16 %v3014
        %v3083 = vunpack.c.h.b16 %v3014
        %v3084 = vunpack.c.l.b16 %v3015
        %v3085 = vunpack.c.h.b16 %v3015
        %v3086 = vunpack.c.l.b16 %v3016
        %v3087 = vunpack.c.h.b16 %v3016
        %v3088 = vunpack.c.l.b16 %v3017
        %v3089 = vunpack.c.h.b16 %v3017
        %v3090 = vunpack.c.l.b16 %v3018
        %v3091 = vunpack.c.h.b16 %v3018
        %v3092 = vunpack.c.l.b16 %v3019
        %v3093 = vunpack.c.h.b16 %v3019
        %v3094 = vunpack.c.l.b16 %v3020
        %v3095 = vunpack.c.h.b16 %v3020
        %v3096 = vunpack.c.l.b16 %v3021
        %v3097 = vunpack.c.h.b16 %v3021
        %v3098 = vunpack.c.l.b16 %v3022
        %v3099 = vunpack.c.h.b16 %v3022
        %v3100 = vunpack.c.l.b16 %v3023
        %v3101 = vunpack.c.h.b16 %v3023
        %v3102 = vunpack.c.l.b16 %v3024
        %v3103 = vunpack.c.h.b16 %v3024
        %v3104 = vunpack.c.l.b16 %v3025
        %v3105 = vunpack.c.h.b16 %v3025
        %v3106 = vunpack.c.l.b16 %v3026
        %v3107 = vunpack.c.h.b16 %v3026
        %v3108 = vunpack.c.l.b16 %v3027
        %v3109 = vunpack.c.h.b16 %v3027
        %v3110 = vunpack.c.l.b16 %v3028
        %v3111 = vunpack.c.h.b16 %v3028
        %v3112 = vunpack.c.l.b16 %v3029
        %v3113 = vunpack.c.h.b16 %v3029
        %v3114 = vunpack.c.l.b16 %v3030
        %v3115 = vunpack.c.h.b16 %v3030
        %v3116 = vunpack.c.l.b16 %v3031
        %v3117 = vunpack.c.h.b16 %v3031
        %v3118 = vunpack.c.l.b16 %v3032
        %v3119 = vunpack.c.h.b16 %v3032
        %v3120 = vunpack.c.l.b16 %v3033
        %v3121 = vunpack.c.h.b16 %v3033
        %v3122 = vunpack.c.l.b16 %v3034
        %v3123 = vunpack.c.h.b16 %v3034
        %v3124 = vunpack.c.l.b16 %v3035
        %v3125 = vunpack.c.h.b16 %v3035
        %v3126 = vunpack.c.l.b16 %v3036
        %v3127 = vunpack.c.h.b16 %v3036
        %v3128 = vunpack.c.l.b16 %v3037
        %v3129 = vunpack.c.h.b16 %v3037
        %v3130 = vunpack.c.l.b16 %v3038
        %v3131 = vunpack.c.h.b16 %v3038
        %v3132 = vunpack.c.l.b16 %v3039
        %v3133 = vunpack.c.h.b16 %v3039
        %v3134 = vunpack.c.l.b16 %v3040
        %v3135 = vunpack.c.h.b16 %v3040
        %v3136 = vunpack.c.l.b16 %v3041
        %v3137 = vunpack.c.h.b16 %v3041
        %v3138 = vpack.c.b16 %v3076, %v3074
        %v3139 = vpack.c.b16 %v3077, %v3075
        %v3140 = vpack.c.b16 %v3080, %v3078
        %v3141 = vpack.c.b16 %v3081, %v3079
        %v3142 = vpack.c.b16 %v3084, %v3082
        %v3143 = vpack.c.b16 %v3085, %v3083
        %v3144 = vpack.c.b16 %v3088, %v3086
        %v3145 = vpack.c.b16 %v3089, %v3087
        %v3146 = vpack.c.b16 %v3092, %v3090
        %v3147 = vpack.c.b16 %v3093, %v3091
        %v3148 = vpack.c.b16 %v3096, %v3094
        %v3149 = vpack.c.b16 %v3097, %v3095
        %v3150 = vpack.c.b16 %v3100, %v3098
        %v3151 = vpack.c.b16 %v3101, %v3099
        %v3152 = vpack.c.b16 %v3104, %v3102
        %v3153 = vpack.c.b16 %v3105, %v3103
        %v3154 = vpack.c.b16 %v3108, %v3106
        %v3155 = vpack.c.b16 %v3109, %v3107
        %v3156 = vpack.c.b16 %v3112, %v3110
        %v3157 = vpack.c.b16 %v3113, %v3111
        %v3158 = vpack.c.b16 %v3116, %v3114
        %v3159 = vpack.c.b16 %v3117, %v3115
        %v3160 = vpack.c.b16 %v3120, %v3118
        %v3161 = vpack.c.b16 %v3121, %v3119
        %v3162 = vpack.c.b16 %v3124, %v3122
        %v3163 = vpack.c.b16 %v3125, %v3123
        %v3164 = vpack.c.b16 %v3128, %v3126
        %v3165 = vpack.c.b16 %v3129, %v3127
        %v3166 = vpack.c.b16 %v3132, %v3130
        %v3167 = vpack.c.b16 %v3133, %v3131
        %v3168 = vpack.c.b16 %v3136, %v3134
        %v3169 = vpack.c.b16 %v3137, %v3135
        %3202 = vmatpush.bf16.msra.mxu0 %v3152
        %3203 = vmatpush.bf16.msra.mxu0 %v3150
        %3204 = vmatpush.bf16.msra.mxu0 %v3148
        %3205 = vmatpush.bf16.msra.mxu0 %v3146
        %3206 = vmatpush.bf16.msra.mxu0 %v3144
        %3207 = vmatpush.bf16.msra.mxu0 %v3142
        %3208 = vmatpush.bf16.msra.mxu0 %v3140
        %3209 = vmatpush.bf16.msra.mxu0 %v3138
        %3210 = vmatmul.bf16.gmra.mxu0 %v3008
        %v3211 = vpop.f32.mrf.mxu0
        %v3212 = vadd.f32 0.0, %v3211
        %v3213 = vpop.f32.mrf.mxu0
        %3214 = vdwg.mxu0
        %3215 = vmatpush.bf16.msra.mxu0 %v3168
        %3216 = vmatpush.bf16.msra.mxu0 %v3166
        %3217 = vmatpush.bf16.msra.mxu0 %v3164
        %3218 = vmatpush.bf16.msra.mxu0 %v3162
        %3219 = vmatpush.bf16.msra.mxu0 %v3160
        %3220 = vmatpush.bf16.msra.mxu0 %v3158
        %3221 = vmatpush.bf16.msra.mxu0 %v3156
        %3222 = vmatpush.bf16.msra.mxu0 %v3154
        %3223 = vmatmul.bf16.gmra.mxu0 %v3009
        %v3224 = vpop.f32.mrf.mxu0
        %v3225 = vadd.f32 %v3212, %v3224
        %v3226 = vpop.f32.mrf.mxu0
        %3227 = vdwg.mxu0
        %3228 = vmatpush.bf16.msra.mxu0 %v3153
        %3229 = vmatpush.bf16.msra.mxu0 %v3151
        %3230 = vmatpush.bf16.msra.mxu0 %v3149
        %3231 = vmatpush.bf16.msra.mxu0 %v3147
        %3232 = vmatpush.bf16.msra.mxu0 %v3145
        %3233 = vmatpush.bf16.msra.mxu0 %v3143
        %3234 = vmatpush.bf16.msra.mxu0 %v3141
        %3235 = vmatpush.bf16.msra.mxu0 %v3139
        %3236 = vmatmul.bf16.gmra.mxu0 %v3008
        %v3237 = vpop.f32.mrf.mxu0
        %v3238 = vadd.f32 0.0, %v3237
        %v3239 = vpop.f32.mrf.mxu0
        %3240 = vdwg.mxu0
        %3241 = vmatpush.bf16.msra.mxu0 %v3169
        %3242 = vmatpush.bf16.msra.mxu0 %v3167
        %3243 = vmatpush.bf16.msra.mxu0 %v3165
        %3244 = vmatpush.bf16.msra.mxu0 %v3163
        %3245 = vmatpush.bf16.msra.mxu0 %v3161
        %3246 = vmatpush.bf16.msra.mxu0 %v3159
        %3247 = vmatpush.bf16.msra.mxu0 %v3157
        %3248 = vmatpush.bf16.msra.mxu0 %v3155
        %3249 = vmatmul.bf16.gmra.mxu0 %v3009
        %v3250 = vpop.f32.mrf.mxu0
        %v3251 = vadd.f32 %v3238, %v3250
        %v3252 = vpop.f32.mrf.mxu0
        %3253 = vdwg.mxu0
        %v3254 = vld [vmem:[%s11] sm:$0x3]
        %v3256 = vperm.slane %v3254, 0
        %v3257 = vperm.slane %v3254, 1
        %v3260 = vmul.f32 %v3225, %v3256
        %v3261 = vmul.f32 %v3251, %v3257
        %v3262 = vld [vmem:[%s12] sm:$0x3]
        %v3264 = vperm.slane %v3262, 0
        %v3265 = vperm.slane %v3262, 1
        %v3268 = vadd.f32 %v3260, %v3264
        %v3269 = vadd.f32 %v3261, %v3265
        %v3270 = vmax.f32 %v3268, 0.0
        %v3271 = vmax.f32 %v3269, 0.0
        %v3272 = vpack.c.bf16 %v3270, %v3270
        %v3273 = vpack.c.bf16 %v3271, %v3271
        %v3274 = vld [vmem:[%s13] sm:$0xff]
        %v3275 = vld [vmem:[%s13 + $0x8] sm:$0xf]
        %v3276 = vld [vmem:[%s13 + $0xc] sm:$0xff]
        %v3277 = vld [vmem:[%s13 + $0x14] sm:$0xf]
        %v3278 = vld [vmem:[%s13 + $0x18] sm:$0xff]
        %v3279 = vld [vmem:[%s13 + $0x20] sm:$0xf]
        %v3280 = vld [vmem:[%s13 + $0x24] sm:$0xff]
        %v3281 = vld [vmem:[%s13 + $0x2c] sm:$0xf]
        %v3282 = vld [vmem:[%s13 + $0x30] sm:$0xff]
        %v3283 = vld [vmem:[%s13 + $0x38] sm:$0xf]
        %v3284 = vld [vmem:[%s13 + $0x3c] sm:$0xff]
        %v3285 = vld [vmem:[%s13 + $0x44] sm:$0xf]
        %v3286 = vld [vmem:[%s13 + $0x48] sm:$0xff]
        %v3287 = vld [vmem:[%s13 + $0x50] sm:$0xf]
        %v3288 = vld [vmem:[%s13 + $0x54] sm:$0xff]
        %v3289 = vld [vmem:[%s13 + $0x5c] sm:$0xf]
        %v3290 = vld [vmem:[%s13 + $0x60] sm:$0xff]
        %v3291 = vld [vmem:[%s13 + $0x68] sm:$0xf]
        %v3292 = vld [vmem:[%s13 + $0x6c] sm:$0xff]
        %v3293 = vld [vmem:[%s13 + $0x74] sm:$0xf]
        %v3294 = vld [vmem:[%s13 + $0x78] sm:$0xff]
        %v3295 = vld [vmem:[%s13 + $0x80] sm:$0xf]
        %v3296 = vld [vmem:[%s13 + $0x84] sm:$0xff]
        %v3297 = vld [vmem:[%s13 + $0x8c] sm:$0xf]
        %v3298 = vld [vmem:[%s13 + $0x90] sm:$0xff]
        %v3299 = vld [vmem:[%s13 + $0x98] sm:$0xf]
        %v3300 = vld [vmem:[%s13 + $0x9c] sm:$0xff]
        %v3301 = vld [vmem:[%s13 + $0xa4] sm:$0xf]
        %v3302 = vld [vmem:[%s13 + $0xa8] sm:$0xff]
        %v3303 = vld [vmem:[%s13 + $0xb0] sm:$0xf]
        %v3304 = vld [vmem:[%s13 + $0xb4] sm:$0xff]
        %v3305 = vld [vmem:[%s13 + $0xbc] sm:$0xf]
        %v3306 = vld [vmem:[%s13 + $0xc0] sm:$0xff]
        %v3307 = vld [vmem:[%s13 + $0xc8] sm:$0xf]
        %v3308 = vld [vmem:[%s13 + $0xcc] sm:$0xff]
        %v3309 = vld [vmem:[%s13 + $0xd4] sm:$0xf]
        %v3310 = vld [vmem:[%s13 + $0xd8] sm:$0xff]
        %v3311 = vld [vmem:[%s13 + $0xe0] sm:$0xf]
        %v3312 = vld [vmem:[%s13 + $0xe4] sm:$0xff]
        %v3313 = vld [vmem:[%s13 + $0xec] sm:$0xf]
        %v3314 = vld [vmem:[%s13 + $0xf0] sm:$0xff]
        %v3315 = vld [vmem:[%s13 + $0xf8] sm:$0xf]
        %v3316 = vld [vmem:[%s13 + $0xfc] sm:$0xff]
        %v3317 = vld [vmem:[%s13 + $0x104] sm:$0xf]
        %v3318 = vld [vmem:[%s13 + $0x108] sm:$0xff]
        %v3319 = vld [vmem:[%s13 + $0x110] sm:$0xf]
        %v3320 = vld [vmem:[%s13 + $0x114] sm:$0xff]
        %v3321 = vld [vmem:[%s13 + $0x11c] sm:$0xf]
        %v3322 = vld [vmem:[%s13 + $0x120] sm:$0xff]
        %v3323 = vld [vmem:[%s13 + $0x128] sm:$0xf]
        %v3324 = vld [vmem:[%s13 + $0x12c] sm:$0xff]
        %v3325 = vld [vmem:[%s13 + $0x134] sm:$0xf]
        %v3326 = vld [vmem:[%s13 + $0x138] sm:$0xff]
        %v3327 = vld [vmem:[%s13 + $0x140] sm:$0xf]
        %v3328 = vld [vmem:[%s13 + $0x144] sm:$0xff]
        %v3329 = vld [vmem:[%s13 + $0x14c] sm:$0xf]
        %v3330 = vld [vmem:[%s13 + $0x150] sm:$0xff]
        %v3331 = vld [vmem:[%s13 + $0x158] sm:$0xf]
        %v3332 = vld [vmem:[%s13 + $0x15c] sm:$0xff]
        %v3333 = vld [vmem:[%s13 + $0x164] sm:$0xf]
        %v3334 = vld [vmem:[%s13 + $0x168] sm:$0xff]
        %v3335 = vld [vmem:[%s13 + $0x170] sm:$0xf]
        %v3336 = vld [vmem:[%s13 + $0x174] sm:$0xff]
        %v3337 = vld [vmem:[%s13 + $0x17c] sm:$0xf]
        %v3338 = vld [vmem:[%s14] sm:$0x7]
        %v3340 = vperm.slane %v3338, 0
        %v3341 = vperm.slane %v3338, 1
        %v3342 = vperm.slane %v3338, 2
        %v3410 = vunpack.c.l.b16 %v3274
        %v3411 = vunpack.c.h.b16 %v3274
        %v3412 = vunpack.c.l.b16 %v3275
        %v3413 = vunpack.c.l.b16 %v3276
        %v3414 = vunpack.c.h.b16 %v3276
        %v3415 = vunpack.c.l.b16 %v3277
        %v3416 = vunpack.c.l.b16 %v3278
        %v3417 = vunpack.c.h.b16 %v3278
        %v3418 = vunpack.c.l.b16 %v3279
        %v3419 = vunpack.c.l.b16 %v3280
        %v3420 = vunpack.c.h.b16 %v3280
        %v3421 = vunpack.c.l.b16 %v3281
        %v3422 = vunpack.c.l.b16 %v3282
        %v3423 = vunpack.c.h.b16 %v3282
        %v3424 = vunpack.c.l.b16 %v3283
        %v3425 = vunpack.c.l.b16 %v3284
        %v3426 = vunpack.c.h.b16 %v3284
        %v3427 = vunpack.c.l.b16 %v3285
        %v3428 = vunpack.c.l.b16 %v3286
        %v3429 = vunpack.c.h.b16 %v3286
        %v3430 = vunpack.c.l.b16 %v3287
        %v3431 = vunpack.c.l.b16 %v3288
        %v3432 = vunpack.c.h.b16 %v3288
        %v3433 = vunpack.c.l.b16 %v3289
        %v3434 = vunpack.c.l.b16 %v3290
        %v3435 = vunpack.c.h.b16 %v3290
        %v3436 = vunpack.c.l.b16 %v3291
        %v3437 = vunpack.c.l.b16 %v3292
        %v3438 = vunpack.c.h.b16 %v3292
        %v3439 = vunpack.c.l.b16 %v3293
        %v3440 = vunpack.c.l.b16 %v3294
        %v3441 = vunpack.c.h.b16 %v3294
        %v3442 = vunpack.c.l.b16 %v3295
        %v3443 = vunpack.c.l.b16 %v3296
        %v3444 = vunpack.c.h.b16 %v3296
        %v3445 = vunpack.c.l.b16 %v3297
        %v3446 = vunpack.c.l.b16 %v3298
        %v3447 = vunpack.c.h.b16 %v3298
        %v3448 = vunpack.c.l.b16 %v3299
        %v3449 = vunpack.c.l.b16 %v3300
        %v3450 = vunpack.c.h.b16 %v3300
        %v3451 = vunpack.c.l.b16 %v3301
        %v3452 = vunpack.c.l.b16 %v3302
        %v3453 = vunpack.c.h.b16 %v3302
        %v3454 = vunpack.c.l.b16 %v3303
        %v3455 = vunpack.c.l.b16 %v3304
        %v3456 = vunpack.c.h.b16 %v3304
        %v3457 = vunpack.c.l.b16 %v3305
        %v3458 = vunpack.c.l.b16 %v3306
        %v3459 = vunpack.c.h.b16 %v3306
        %v3460 = vunpack.c.l.b16 %v3307
        %v3461 = vunpack.c.l.b16 %v3308
        %v3462 = vunpack.c.h.b16 %v3308
        %v3463 = vunpack.c.l.b16 %v3309
        %v3464 = vunpack.c.l.b16 %v3310
        %v3465 = vunpack.c.h.b16 %v3310
        %v3466 = vunpack.c.l.b16 %v3311
        %v3467 = vunpack.c.l.b16 %v3312
        %v3468 = vunpack.c.h.b16 %v3312
        %v3469 = vunpack.c.l.b16 %v3313
        %v3470 = vunpack.c.l.b16 %v3314
        %v3471 = vunpack.c.h.b16 %v3314
        %v3472 = vunpack.c.l.b16 %v3315
        %v3473 = vunpack.c.l.b16 %v3316
        %v3474 = vunpack.c.h.b16 %v3316
        %v3475 = vunpack.c.l.b16 %v3317
        %v3476 = vunpack.c.l.b16 %v3318
        %v3477 = vunpack.c.h.b16 %v3318
        %v3478 = vunpack.c.l.b16 %v3319
        %v3479 = vunpack.c.l.b16 %v3320
        %v3480 = vunpack.c.h.b16 %v3320
        %v3481 = vunpack.c.l.b16 %v3321
        %v3482 = vunpack.c.l.b16 %v3322
        %v3483 = vunpack.c.h.b16 %v3322
        %v3484 = vunpack.c.l.b16 %v3323
        %v3485 = vunpack.c.l.b16 %v3324
        %v3486 = vunpack.c.h.b16 %v3324
        %v3487 = vunpack.c.l.b16 %v3325
        %v3488 = vunpack.c.l.b16 %v3326
        %v3489 = vunpack.c.h.b16 %v3326
        %v3490 = vunpack.c.l.b16 %v3327
        %v3491 = vunpack.c.l.b16 %v3328
        %v3492 = vunpack.c.h.b16 %v3328
        %v3493 = vunpack.c.l.b16 %v3329
        %v3494 = vunpack.c.l.b16 %v3330
        %v3495 = vunpack.c.h.b16 %v3330
        %v3496 = vunpack.c.l.b16 %v3331
        %v3497 = vunpack.c.l.b16 %v3332
        %v3498 = vunpack.c.h.b16 %v3332
        %v3499 = vunpack.c.l.b16 %v3333
        %v3500 = vunpack.c.l.b16 %v3334
        %v3501 = vunpack.c.h.b16 %v3334
        %v3502 = vunpack.c.l.b16 %v3335
        %v3503 = vunpack.c.l.b16 %v3336
        %v3504 = vunpack.c.h.b16 %v3336
        %v3505 = vunpack.c.l.b16 %v3337
        %v3506 = vpack.c.b16 %v3413, %v3410
        %v3507 = vpack.c.b16 %v3414, %v3411
        %v3508 = vpack.c.b16 %v3415, %v3412
        %v3509 = vpack.c.b16 %v3419, %v3416
        %v3510 = vpack.c.b16 %v3420, %v3417
        %v3511 = vpack.c.b16 %v3421, %v3418
        %v3512 = vpack.c.b16 %v3425, %v3422
        %v3513 = vpack.c.b16 %v3426, %v3423
        %v3514 = vpack.c.b16 %v3427, %v3424
        %v3515 = vpack.c.b16 %v3431, %v3428
        %v3516 = vpack.c.b16 %v3432, %v3429
        %v3517 = vpack.c.b16 %v3433, %v3430
        %v3518 = vpack.c.b16 %v3437, %v3434
        %v3519 = vpack.c.b16 %v3438, %v3435
        %v3520 = vpack.c.b16 %v3439, %v3436
        %v3521 = vpack.c.b16 %v3443, %v3440
        %v3522 = vpack.c.b16 %v3444, %v3441
        %v3523 = vpack.c.b16 %v3445, %v3442
        %v3524 = vpack.c.b16 %v3449, %v3446
        %v3525 = vpack.c.b16 %v3450, %v3447
        %v3526 = vpack.c.b16 %v3451, %v3448
        %v3527 = vpack.c.b16 %v3455, %v3452
        %v3528 = vpack.c.b16 %v3456, %v3453
        %v3529 = vpack.c.b16 %v3457, %v3454
        %v3530 = vpack.c.b16 %v3461, %v3458
        %v3531 = vpack.c.b16 %v3462, %v3459
        %v3532 = vpack.c.b16 %v3463, %v3460
        %v3533 = vpack.c.b16 %v3467, %v3464
        %v3534 = vpack.c.b16 %v3468, %v3465
        %v3535 = vpack.c.b16 %v3469, %v3466
        %v3536 = vpack.c.b16 %v3473, %v3470
        %v3537 = vpack.c.b16 %v3474, %v3471
        %v3538 = vpack.c.b16 %v3475, %v3472
        %v3539 = vpack.c.b16 %v3479, %v3476
        %v3540 = vpack.c.b16 %v3480, %v3477
        %v3541 = vpack.c.b16 %v3481, %v3478
        %v3542 = vpack.c.b16 %v3485, %v3482
        %v3543 = vpack.c.b16 %v3486, %v3483
        %v3544 = vpack.c.b16 %v3487, %v3484
        %v3545 = vpack.c.b16 %v3491, %v3488
        %v3546 = vpack.c.b16 %v3492, %v3489
        %v3547 = vpack.c.b16 %v3493, %v3490
        %v3548 = vpack.c.b16 %v3497, %v3494
        %v3549 = vpack.c.b16 %v3498, %v3495
        %v3550 = vpack.c.b16 %v3499, %v3496
        %v3551 = vpack.c.b16 %v3503, %v3500
        %v3552 = vpack.c.b16 %v3504, %v3501
        %v3553 = vpack.c.b16 %v3505, %v3502
        %3602 = vmatpush.bf16.msra.mxu0 %v3527
        %3603 = vmatpush.bf16.msra.mxu0 %v3524
        %3604 = vmatpush.bf16.msra.mxu0 %v3521
        %3605 = vmatpush.bf16.msra.mxu0 %v3518
        %3606 = vmatpush.bf16.msra.mxu0 %v3515
        %3607 = vmatpush.bf16.msra.mxu0 %v3512
        %3608 = vmatpush.bf16.msra.mxu0 %v3509
        %3609 = vmatpush.bf16.msra.mxu0 %v3506
        %3610 = vmatmul.bf16.gmra.mxu0 %v3272
        %v3611 = vpop.f32.mrf.mxu0
        %v3612 = vadd.f32 %v3340, %v3611
        %v3613 = vpop.f32.mrf.mxu0
        %3614 = vdwg.mxu0
        %3615 = vmatpush.bf16.msra.mxu0 %v3551
        %3616 = vmatpush.bf16.msra.mxu0 %v3548
        %3617 = vmatpush.bf16.msra.mxu0 %v3545
        %3618 = vmatpush.bf16.msra.mxu0 %v3542
        %3619 = vmatpush.bf16.msra.mxu0 %v3539
        %3620 = vmatpush.bf16.msra.mxu0 %v3536
        %3621 = vmatpush.bf16.msra.mxu0 %v3533
        %3622 = vmatpush.bf16.msra.mxu0 %v3530
        %3623 = vmatmul.bf16.gmra.mxu0 %v3273
        %v3624 = vpop.f32.mrf.mxu0
        %v3625 = vadd.f32 %v3612, %v3624
        %v3626 = vpop.f32.mrf.mxu0
        %3627 = vdwg.mxu0
        %3628 = vmatpush.bf16.msra.mxu0 %v3528
        %3629 = vmatpush.bf16.msra.mxu0 %v3525
        %3630 = vmatpush.bf16.msra.mxu0 %v3522
        %3631 = vmatpush.bf16.msra.mxu0 %v3519
        %3632 = vmatpush.bf16.msra.mxu0 %v3516
        %3633 = vmatpush.bf16.msra.mxu0 %v3513
        %3634 = vmatpush.bf16.msra.mxu0 %v3510
        %3635 = vmatpush.bf16.msra.mxu0 %v3507
        %3636 = vmatmul.bf16.gmra.mxu0 %v3272
        %v3637 = vpop.f32.mrf.mxu0
        %v3638 = vadd.f32 %v3341, %v3637
        %v3639 = vpop.f32.mrf.mxu0
        %3640 = vdwg.mxu0
        %3641 = vmatpush.bf16.msra.mxu0 %v3552
        %3642 = vmatpush.bf16.msra.mxu0 %v3549
        %3643 = vmatpush.bf16.msra.mxu0 %v3546
        %3644 = vmatpush.bf16.msra.mxu0 %v3543
        %3645 = vmatpush.bf16.msra.mxu0 %v3540
        %3646 = vmatpush.bf16.msra.mxu0 %v3537
        %3647 = vmatpush.bf16.msra.mxu0 %v3534
        %3648 = vmatpush.bf16.msra.mxu0 %v3531
        %3649 = vmatmul.bf16.gmra.mxu0 %v3273
        %v3650 = vpop.f32.mrf.mxu0
        %v3651 = vadd.f32 %v3638, %v3650
        %v3652 = vpop.f32.mrf.mxu0
        %3653 = vdwg.mxu0
        %3654 = vmatpush.bf16.msra.mxu0 %v3529
        %3655 = vmatpush.bf16.msra.mxu0 %v3526
        %3656 = vmatpush.bf16.msra.mxu0 %v3523
        %3657 = vmatpush.bf16.msra.mxu0 %v3520
        %3658 = vmatpush.bf16.msra.mxu0 %v3517
        %3659 = vmatpush.bf16.msra.mxu0 %v3514
        %3660 = vmatpush.bf16.msra.mxu0 %v3511
        %3661 = vmatpush.bf16.msra.mxu0 %v3508
        %3662 = vmatmul.bf16.gmra.mxu0 %v3272
        %v3663 = vpop.f32.mrf.mxu0
        %v3664 = vadd.f32 %v3342, %v3663
        %v3665 = vpop.f32.mrf.mxu0
        %3666 = vdwg.mxu0
        %3667 = vmatpush.bf16.msra.mxu0 %v3553
        %3668 = vmatpush.bf16.msra.mxu0 %v3550
        %3669 = vmatpush.bf16.msra.mxu0 %v3547
        %3670 = vmatpush.bf16.msra.mxu0 %v3544
        %3671 = vmatpush.bf16.msra.mxu0 %v3541
        %3672 = vmatpush.bf16.msra.mxu0 %v3538
        %3673 = vmatpush.bf16.msra.mxu0 %v3535
        %3674 = vmatpush.bf16.msra.mxu0 %v3532
        %3675 = vmatmul.bf16.gmra.mxu0 %v3273
        %v3676 = vpop.f32.mrf.mxu0
        %v3677 = vadd.f32 %v3664, %v3676
        %v3678 = vpop.f32.mrf.mxu0
        %3679 = vdwg.mxu0
        %3680 = vst [vmem:[%s534] sm:$0xff] %v3625
        %3681 = vst [vmem:[%s534 + $0x8] sm:$0xff] %v3651
        %3682 = vst [vmem:[%s534 + $0x10] sm:$0xff] %v3677
        %s3683 = sand.u32 %s359, 1
        %s3684 = scalar_lea.sflag [#allocation3], %s3683
        %s3685 = sand.u32 %s359, 1
        %s3686 = smul.addr %s3685, 8
        %s3687 = scalar_lea.vmem [#allocation2], %s3686
        %p3688 = scmp.lt.s32.totalorder %s31, 1
        %s3689 = scalar_select %p3688, %s31, 1
        %s3690 = smul.addr %s3689, 3
        %s3691 = smul.addr %s3690, 8
        %s3692 = scalar_lea.vmem %s16, %s3691
        // Predicated region
        $region81: #{autoencoder_pn_forward.1} parent=79 // pred_check
          %p3693 = pneg %p369
        $region82: #{autoencoder_pn_forward.1} parent=79 // pred_check_branch
          %3695 = sbr.rel (%p3693) target = $region84
        $region83: #{autoencoder_pn_forward.1} parent=79 // pred_region
          %3697 = vsyncadd %s3684, 0
          %s3698 = smul.addr %s31, 8
          %s3699 = scalar_lea.hbm %s15, %s3698
          %s3701 = sshll.u32 %s3687, 4
          %s3702 = int_to_ptr.vmem [resolvable:$true] %s3701
          %s3703 = sshll.u32 %s3699, 4
          %s3704 = int_to_ptr.hbm [resolvable:$true] %s3703
          %3706 = dma.vmem_to_hbm [thread:$0]  %s3702, 128, %s3704, %s3684
        $region84: #{autoencoder_pn_forward.1} parent=79 // pred_fallthru
          _
        // Predicated region
        $region85: #{autoencoder_pn_forward.1} parent=79 // pred_check
          %p3707 = pneg %p395
        $region86: #{autoencoder_pn_forward.1} parent=79 // pred_check_branch
          %3709 = sbr.rel (%p3707) target = $region88
        $region87: #{autoencoder_pn_forward.1} parent=79 // pred_region
          _
        $region88: #{autoencoder_pn_forward.1} parent=79 // pred_fallthru
          _
      $region80: #{autoencoder_pn_forward.1} parent=5 // pred_fallthru
        _
      %p3710 = scmp.le.s32.totalorder 2, %s26
      // Predicated region
      $region89: #{autoencoder_pn_forward.1} parent=5 // pred_check
        %p3711 = pneg %p3710
      $region90: #{autoencoder_pn_forward.1} parent=5 // pred_check_branch
        %3713 = sbr.rel (%p3711) target = $region92
      $region91: #{autoencoder_pn_forward.1} parent=5 // pred_region
        %s3714 = ssub.s32 %s26, 2
        // Predicated region
        $region93: #{autoencoder_pn_forward.1} parent=91 // pred_check
          %p3715 = pneg %p375
        $region94: #{autoencoder_pn_forward.1} parent=91 // pred_check_branch
          %3717 = sbr.rel (%p3715) target = $region96
        $region95: #{autoencoder_pn_forward.1} parent=91 // pred_region
          %s3718 = sand.u32 %s360, 1
          %s3719 = scalar_lea.sflag [#allocation3], %s3718
          %s3720 = sand.u32 %s360, 1
          %s3721 = smul.addr %s3720, 8
          %s3722 = scalar_lea.vmem [#allocation2], %s3721
          %3724 = dma.done %s3719, 128
        $region96: #{autoencoder_pn_forward.1} parent=91 // pred_fallthru
          _
        // Predicated region
        $region97: #{autoencoder_pn_forward.1} parent=91 // pred_check
          %p3725 = pneg %p401
        $region98: #{autoencoder_pn_forward.1} parent=91 // pred_check_branch
          %3727 = sbr.rel (%p3725) target = $region100
        $region99: #{autoencoder_pn_forward.1} parent=91 // pred_region
          %p3728 = scmp.lt.s32.totalorder %s32, 1
          %s3729 = scalar_select %p3728, %s32, 1
          %s3730 = smul.addr %s3729, 3
          %s3731 = smul.addr %s3730, 8
          %s3732 = scalar_lea.vmem %s16, %s3731
        $region100: #{autoencoder_pn_forward.1} parent=91 // pred_fallthru
          _
      $region92: #{autoencoder_pn_forward.1} parent=5 // pred_fallthru
        _
    $region6: #{autoencoder_pn_forward.1} parent=1 // loop_footer
      %s30 = sadd.s32 1, %s26
    $region7: #{autoencoder_pn_forward.1} parent=1 // loop_footer_branch
      %25 = sbr.rel target = $region3
    $region8: #{autoencoder_pn_forward.1} parent=1 // loop_exit
      _
    %3733 = vsyncpa [#allocation3], 1
    %s3734 = scalar_lea.sflag [#allocation3], 1
    %3735 = vsyncpa %s3734, 1

</llo_original>
